<compile_context>
chip_gen: v6e
topology: v6e:2x2x1
jax: 0.10.0
libtpu: 0.0.40
codegen_flags: <defaults>
</compile_context>

<pallas_src>
import functools
import math

import jax
import jax.numpy as jnp
from jax.experimental import pallas as pl
from jax.experimental.pallas import tpu as pltpu


def _flash_cross_attention_kernel(
        q_ref, k_ref, v_ref,
        wq_ref, bq_ref, wo_ref, bo_ref,
        o_ref,
        q_scratch, m_scratch, l_scratch, acc_scratch,
        *, num_heads: int, head_dim: int):
    """Grid = (batch, q-tile, k-tile); the k-tile axis is the flash reduction.

    q_ref:            (tq, H)  raw query tile (input dtype)
    k_ref / v_ref:    (tk, H)  PRE-PROJECTED key / value tiles (MXU dtype)
    wq_ref / wo_ref:  (H, H)   [in, out];  bq_ref / bo_ref: (1, H) f32
    o_ref:            (tq, H)
    q_scratch:        (tq, H)  MXU dtype (scaled Q projection)
    m_scratch / l_scratch: (num_heads, tq, 1) f32
    acc_scratch:      (tq, H)  f32 (un-normalized attention output)
    """
    ki = pl.program_id(2)
    nk = pl.num_programs(2)
    scale = 1.0 / math.sqrt(head_dim)

    mxu_dtype = q_scratch.dtype
    # bf16 exp only on the bf16 path (v6e/v7x); f32 path (demo / v5e) stays f32.
    exp_dtype = jnp.bfloat16 if mxu_dtype == jnp.bfloat16 else jnp.float32

    @pl.when(ki == 0)
    def _init():
        # Project the query tile once per (batch, q-tile); fold in the
        # 1/sqrt(head_dim) scale so the score matmul needs no extra multiply.
        q_proj = (jnp.dot(q_ref[...].astype(mxu_dtype), wq_ref[...],
                          preferred_element_type=jnp.float32)
                  + bq_ref[...]) * scale
        q_scratch[...] = q_proj.astype(mxu_dtype)
        m_scratch[...] = jnp.full(m_scratch.shape, -jnp.inf, jnp.float32)
        l_scratch[...] = jnp.zeros(l_scratch.shape, jnp.float32)
        acc_scratch[...] = jnp.zeros(acc_scratch.shape, jnp.float32)

    Qc = q_scratch[...]            # (tq, H), MXU dtype, already scaled
    Kc = k_ref[...]                # (tk, H), pre-projected, MXU dtype
    Vc = v_ref[...]                # (tk, H)
    tq = Qc.shape[0]
    tk = Kc.shape[0]
    ones_col = jnp.ones((tk, 1), mxu_dtype)   # row-sum of p via the MXU

    # Online-softmax update, one head at a time via static lane slices
    # (no head-transpose einsums -> no XLU relayout traffic).
    # TODO(synk): at num_heads >= ~16 with 256-tiles switch this to
    # lax.fori_loop + pl.ds lane slices to bound vreg live ranges.
    alpha_cols = []
    pv_cols = []
    for h in range(num_heads):
        sl = slice(h * head_dim, (h + 1) * head_dim)
        Qh = Qc[:, sl]                                     # (tq, hd)
        Kh = Kc[:, sl]                                     # (tk, hd)
        Vh = Vc[:, sl]                                     # (tk, hd)

        # scores_h = (Q * scale) @ K^T
        s = jax.lax.dot_general(
            Qh, Kh, (((1,), (1,)), ((), ())),
            preferred_element_type=jnp.float32)            # (tq, tk)

        m_prev = m_scratch[h]                              # (tq, 1)
        l_prev = l_scratch[h]                              # (tq, 1)
        m_new = jnp.maximum(m_prev, jnp.max(s, axis=-1, keepdims=True))
        alpha = jnp.exp(m_prev - m_new)                    # rescale of old acc
        p = jnp.exp((s - m_new).astype(exp_dtype))         # (tq, tk)
        p_mxu = p.astype(mxu_dtype)

        # Row-sum of p via an MXU dot (off the XLU).
        p_sum = jnp.dot(p_mxu, ones_col,
                        preferred_element_type=jnp.float32)  # (tq, 1)
        l_scratch[h] = alpha * l_prev + p_sum
        m_scratch[h] = m_new

        alpha_cols.append(jnp.broadcast_to(alpha, (tq, head_dim)))
        pv_cols.append(jnp.dot(p_mxu, Vh,
                               preferred_element_type=jnp.float32))

    # One full-width accumulator RMW per k-step (avoids num_heads masked
    # partial-lane stores when head_dim < 128).
    alpha_full = jnp.concatenate(alpha_cols, axis=-1)        # (tq, H)
    pv_full = jnp.concatenate(pv_cols, axis=-1)              # (tq, H)
    acc_scratch[...] = alpha_full * acc_scratch[...] + pv_full

    @pl.when(ki == nk - 1)
    def _finalize():
        # Per-head softmax normalization via the EUP reciprocal, then the
        # output projection, then one full-width (tq, H) store.
        inv_cols = [
            jnp.broadcast_to(pl.reciprocal(l_scratch[h], approx=True),
                             (tq, head_dim))
            for h in range(num_heads)
        ]
        inv_full = jnp.concatenate(inv_cols, axis=-1)        # (tq, H)
        attn = (acc_scratch[...] * inv_full).astype(mxu_dtype)
        out = (jnp.dot(attn, wo_ref[...],
                       preferred_element_type=jnp.float32)
               + bo_ref[...])
        o_ref[...] = out.astype(o_ref.dtype)


def cross_attention(query, key, value, params, num_heads,
                    *, block_q=None, block_k=None,
                    vmem_limit_bytes=32 * 1024 * 1024):
    """query: (B, Lq, H); key/value: (B, Lk, H).  params: weights stored as
    [in, out] (H, H) plus (1, H) biases (f32).

    The K/V projections are single XLA GEMMs (done once per call); the kernel
    fuses the Q projection, flash attention, and the output projection.

    block_q / block_k default to min(seq, 256) (fills the v6e/v7x 2x256 MXU);
    pass 128 on v5e (4x128 MXU).  On v6e, block_k=512 with a larger
    vmem_limit_bytes is worth trying; do not copy that to v7x (64 MiB VMEM).
    # TODO(synk): auto-select block sizes per chip via pltpu.get_tpu_info.
    """
    B, Lq, H = query.shape
    _, Lk, _ = key.shape
    assert H % num_heads == 0
    head_dim = H // num_heads

    if block_q is None:
        block_q = min(Lq, 256)
    if block_k is None:
        block_k = min(Lk, 256)
    assert Lq % block_q == 0 and Lk % block_k == 0, \
        "sequence lengths must be divisible by the tile sizes"

    # bf16 inputs -> bf16 weights / bf16 MXU path; f32 inputs -> f32.
    mxu_dtype = jnp.bfloat16 if query.dtype == jnp.bfloat16 else jnp.float32

    wq = params["wq"].astype(mxu_dtype)
    wk = params["wk"].astype(mxu_dtype)
    wv = params["wv"].astype(mxu_dtype)
    wo = params["wo"].astype(mxu_dtype)
    bq = params["bq"].astype(jnp.float32)
    bk = params["bk"].astype(jnp.float32)
    bv = params["bv"].astype(jnp.float32)
    bo = params["bo"].astype(jnp.float32)

    # Hoisted K/V projections: one GEMM each over the full key/value tensors,
    # no per-q-tile recompute inside the kernel.
    k_proj = (jnp.dot(key.astype(mxu_dtype), wk,
                      preferred_element_type=jnp.float32) + bk).astype(mxu_dtype)
    v_proj = (jnp.dot(value.astype(mxu_dtype), wv,
                      preferred_element_type=jnp.float32) + bv).astype(mxu_dtype)

    kernel = functools.partial(_flash_cross_attention_kernel,
                               num_heads=num_heads, head_dim=head_dim)

    # Constant index maps: Pallas DMAs each weight/bias block once and skips
    # the copy on revisits.
    # TODO(synk): add pipeline_mode=pl.Buffered(1) (or hoist to persistent
    # scratch) to drop the dead second buffer once validated on the target jax
    # version -- reclaims ~H*H*dtype bytes per weight under v7x's 64 MiB VMEM.
    weight_spec = pl.BlockSpec((H, H), lambda b, qi, ki: (0, 0))
    bias_spec = pl.BlockSpec((1, H), lambda b, qi, ki: (0, 0))

    grid = (B, Lq // block_q, Lk // block_k)

    return pl.pallas_call(
        kernel,
        out_shape=jax.ShapeDtypeStruct((B, Lq, H), query.dtype),
        grid_spec=pltpu.PrefetchScalarGridSpec(
            num_scalar_prefetch=0,
            grid=grid,
            in_specs=[
                pl.BlockSpec((pl.Squeezed(), block_q, H),
                             lambda b, qi, ki: (b, qi, 0)),   # raw query
                pl.BlockSpec((pl.Squeezed(), block_k, H),
                             lambda b, qi, ki: (b, ki, 0)),   # projected key
                pl.BlockSpec((pl.Squeezed(), block_k, H),
                             lambda b, qi, ki: (b, ki, 0)),   # projected value
                weight_spec, bias_spec,   # q_proj
                weight_spec, bias_spec,   # out_proj
            ],
            out_specs=pl.BlockSpec((pl.Squeezed(), block_q, H),
                                   lambda b, qi, ki: (b, qi, 0)),
            scratch_shapes=[
                pltpu.VMEM((block_q, H), mxu_dtype),               # scaled Q proj
                pltpu.VMEM((num_heads, block_q, 1), jnp.float32),  # running max
                pltpu.VMEM((num_heads, block_q, 1), jnp.float32),  # running sum
                pltpu.VMEM((block_q, H), jnp.float32),             # un-normalized out
            ]),
        compiler_params=pltpu.CompilerParams(
            dimension_semantics=("parallel", "parallel", "arbitrary"),
            vmem_limit_bytes=vmem_limit_bytes),
    )(query, k_proj, v_proj, wq, bq, wo, bo)


def reference_cross_attention(query, key, value, params, num_heads):
    """Pure-JAX reference matching the PyTorch forward exactly."""
    B, Lq, H = query.shape
    _, Lk, _ = key.shape
    hd = H // num_heads

    def lin(x, w, b):
        return x @ w + b  # w already [in, out]

    Q = lin(query, params["wq"], params["bq"]).reshape(B, Lq, num_heads, hd).transpose(0, 2, 1, 3)
    K = lin(key, params["wk"], params["bk"]).reshape(B, Lk, num_heads, hd).transpose(0, 2, 1, 3)
    V = lin(value, params["wv"], params["bv"]).reshape(B, Lk, num_heads, hd).transpose(0, 2, 1, 3)

    scores = Q @ K.transpose(0, 1, 3, 2) / math.sqrt(hd)
    w = jax.nn.softmax(scores, axis=-1)
    att = (w @ V).transpose(0, 2, 1, 3).reshape(B, Lq, H)
    return lin(att, params["wo"], params["bo"])


def init_params(key, hidden_dim):
    """Deterministic nn.Linear-style init. Weights stored as [in, out]."""
    bound = 1.0 / math.sqrt(hidden_dim)
    keys = jax.random.split(key, 8)

    def w(k):
        return jax.random.uniform(k, (hidden_dim, hidden_dim), jnp.float32, -bound, bound)

    def b(k):
        return jax.random.uniform(k, (1, hidden_dim), jnp.float32, -bound, bound)

    return {
        "wq": w(keys[0]), "bq": b(keys[1]),
        "wk": w(keys[2]), "bk": b(keys[3]),
        "wv": w(keys[4]), "bv": b(keys[5]),
        "wo": w(keys[6]), "bo": b(keys[7]),
    }


if __name__ == "__main__":
    # Small demo config (module default num_heads=8).  block_q / block_k are
    # chosen smaller than Lq / Lk so the test exercises the multi-tile grid and
    # the online-softmax accumulation across key tiles.
    B, Lq, Lk, H, NH = 2, 16, 32, 64, 8
    BQ, BK = 8, 16

    root = jax.random.PRNGKey(0)
    kq, kk, kv, kp = jax.random.split(root, 4)
    query = jax.random.normal(kq, (B, Lq, H), jnp.float32)
    key_ = jax.random.normal(kk, (B, Lk, H), jnp.float32)
    value = jax.random.normal(kv, (B, Lk, H), jnp.float32)
    params = init_params(kp, H)

    out = cross_attention(query, key_, value, params, NH, block_q=BQ, block_k=BK)
    out = jax.block_until_ready(out)

    ref = reference_cross_attention(query, key_, value, params, NH)
    assert out.shape == (B, Lq, H)
    # Tolerance accommodates the approximate EUP reciprocal used for the
    # softmax normalization (use approx=False if bit-tight output is needed).
    assert jnp.allclose(out, ref, atol=1e-2, rtol=1e-2), "mismatch vs reference"

    print("KERNEL_OK")
</pallas_src>

<mosaic_0001>
module attributes {stable_mosaic.version = 11 : i64} {
  func.func @_flash_cross_attention_kernel(%arg0: i32, %arg1: i32, %arg2: i32, %arg3: memref<1x8x64xf32, #tpu.memory_space<vmem>>, %arg4: memref<1x16x64xf32, #tpu.memory_space<vmem>>, %arg5: memref<1x16x64xf32, #tpu.memory_space<vmem>>, %arg6: memref<64x64xf32, #tpu.memory_space<vmem>>, %arg7: memref<1x64xf32, #tpu.memory_space<vmem>>, %arg8: memref<64x64xf32, #tpu.memory_space<vmem>>, %arg9: memref<1x64xf32, #tpu.memory_space<vmem>>, %arg10: memref<1x8x64xf32, #tpu.memory_space<vmem>>, %arg11: memref<8x64xf32, #tpu.memory_space<vmem>>, %arg12: memref<8x8x1xf32, #tpu.memory_space<vmem>>, %arg13: memref<8x8x1xf32, #tpu.memory_space<vmem>>, %arg14: memref<8x64xf32, #tpu.memory_space<vmem>>) attributes {dimension_semantics = [#tpu.dimension_semantics<parallel>, #tpu.dimension_semantics<parallel>, #tpu.dimension_semantics<arbitrary>], iteration_bounds = array<i64: 2, 2, 2>, scalar_prefetch = 0 : i64, scratch_operands = 4 : i64, tpu.core_type = #tpu.core_type<tc>, window_params = [{transform_indices = @transform_0, window_bounds = array<i64: 1, 8, 64>}, {transform_indices = @transform_1, window_bounds = array<i64: 1, 16, 64>}, {transform_indices = @transform_2, window_bounds = array<i64: 1, 16, 64>}, {pipeline_mode = #tpu.pipeline_mode<synchronous>, transform_indices = @transform_3, window_bounds = array<i64: 64, 64>}, {pipeline_mode = #tpu.pipeline_mode<synchronous>, transform_indices = @transform_4, window_bounds = array<i64: 1, 64>}, {pipeline_mode = #tpu.pipeline_mode<synchronous>, transform_indices = @transform_5, window_bounds = array<i64: 64, 64>}, {pipeline_mode = #tpu.pipeline_mode<synchronous>, transform_indices = @transform_6, window_bounds = array<i64: 1, 64>}, {transform_indices = @transform_7, window_bounds = array<i64: 1, 8, 64>}]} {
    %c0_i32 = arith.constant 0 : i32
    %0 = arith.cmpi eq, %arg2, %c0_i32 : i32
    %1 = arith.extui %0 : i1 to i32
    %c0_i32_0 = arith.constant 0 : i32
    %2 = arith.cmpi ne, %1, %c0_i32_0 : i32
    scf.if %2 {
      %c0_134 = arith.constant 0 : index
      %c0_135 = arith.constant 0 : index
      %c0_136 = arith.constant 0 : index
      %242 = vector.load %arg3[%c0_134, %c0_135, %c0_136] : memref<1x8x64xf32, #tpu.memory_space<vmem>>, vector<1x8x64xf32>
      %243 = vector.shape_cast %242 : vector<1x8x64xf32> to vector<8x64xf32>
      %c0_137 = arith.constant 0 : index
      %c0_138 = arith.constant 0 : index
      %244 = vector.load %arg6[%c0_137, %c0_138] : memref<64x64xf32, #tpu.memory_space<vmem>>, vector<64x64xf32>
      %cst_139 = arith.constant dense<0.000000e+00> : vector<8x64xf32>
      %245 = tpu.matmul %243, %244, %cst_139 {dimension_numbers = #tpu.dot_dimension_numbers<[1], [0], [0], [1], [0, 0, 1, 1], [], []>} : vector<8x64xf32>, vector<64x64xf32>, vector<8x64xf32> -> vector<8x64xf32>
      %c0_140 = arith.constant 0 : index
      %c0_141 = arith.constant 0 : index
      %246 = vector.load %arg7[%c0_140, %c0_141] : memref<1x64xf32, #tpu.memory_space<vmem>>, vector<1x64xf32>
      %247 = vector.broadcast %246 : vector<1x64xf32> to vector<8x64xf32>
      %248 = arith.addf %245, %247 : vector<8x64xf32>
      %cst_142 = arith.constant 0.353553385 : f32
      %249 = vector.broadcast %cst_142 : f32 to vector<8x64xf32>
      %250 = arith.mulf %248, %249 : vector<8x64xf32>
      %c0_143 = arith.constant 0 : index
      %c0_144 = arith.constant 0 : index
      %251 = vector.load %arg11[%c0_143, %c0_144] : memref<8x64xf32, #tpu.memory_space<vmem>>, vector<8x64xf32>
      tpu.vector_store %arg11[%c0_143, %c0_144], %250 {strides = array<i32>} : memref<8x64xf32, #tpu.memory_space<vmem>>, vector<8x64xf32>,
      %cst_145 = arith.constant 0xFF800000 : f32
      %252 = vector.broadcast %cst_145 : f32 to vector<8x8x1xf32>
      %c0_146 = arith.constant 0 : index
      %c0_147 = arith.constant 0 : index
      %c0_148 = arith.constant 0 : index
      %253 = vector.load %arg12[%c0_146, %c0_147, %c0_148] : memref<8x8x1xf32, #tpu.memory_space<vmem>>, vector<8x8x1xf32>
      tpu.vector_store %arg12[%c0_146, %c0_147, %c0_148], %252 {strides = array<i32>} : memref<8x8x1xf32, #tpu.memory_space<vmem>>, vector<8x8x1xf32>,
      %cst_149 = arith.constant 0.000000e+00 : f32
      %254 = vector.broadcast %cst_149 : f32 to vector<8x8x1xf32>
      %c0_150 = arith.constant 0 : index
      %c0_151 = arith.constant 0 : index
      %c0_152 = arith.constant 0 : index
      %255 = vector.load %arg13[%c0_150, %c0_151, %c0_152] : memref<8x8x1xf32, #tpu.memory_space<vmem>>, vector<8x8x1xf32>
      tpu.vector_store %arg13[%c0_150, %c0_151, %c0_152], %254 {strides = array<i32>} : memref<8x8x1xf32, #tpu.memory_space<vmem>>, vector<8x8x1xf32>,
      %cst_153 = arith.constant 0.000000e+00 : f32
      %256 = vector.broadcast %cst_153 : f32 to vector<8x64xf32>
      %c0_154 = arith.constant 0 : index
      %c0_155 = arith.constant 0 : index
      %257 = vector.load %arg14[%c0_154, %c0_155] : memref<8x64xf32, #tpu.memory_space<vmem>>, vector<8x64xf32>
      tpu.vector_store %arg14[%c0_154, %c0_155], %256 {strides = array<i32>} : memref<8x64xf32, #tpu.memory_space<vmem>>, vector<8x64xf32>,
    } else {
    }
    %c0 = arith.constant 0 : index
    %c0_1 = arith.constant 0 : index
    %3 = vector.load %arg11[%c0, %c0_1] : memref<8x64xf32, #tpu.memory_space<vmem>>, vector<8x64xf32>
    %c0_2 = arith.constant 0 : index
    %c0_3 = arith.constant 0 : index
    %c0_4 = arith.constant 0 : index
    %4 = vector.load %arg4[%c0_2, %c0_3, %c0_4] : memref<1x16x64xf32, #tpu.memory_space<vmem>>, vector<1x16x64xf32>
    %5 = vector.shape_cast %4 : vector<1x16x64xf32> to vector<16x64xf32>
    %c0_5 = arith.constant 0 : index
    %c0_6 = arith.constant 0 : index
    %c0_7 = arith.constant 0 : index
    %6 = vector.load %arg5[%c0_5, %c0_6, %c0_7] : memref<1x16x64xf32, #tpu.memory_space<vmem>>, vector<1x16x64xf32>
    %7 = vector.shape_cast %6 : vector<1x16x64xf32> to vector<16x64xf32>
    %cst = arith.constant 1.000000e+00 : f32
    %8 = vector.broadcast %cst : f32 to vector<16x1xf32>
    %9 = vector.extract_strided_slice %3 {offsets = [0, 0], sizes = [8, 8], strides = [1, 1]} : vector<8x64xf32> to vector<8x8xf32>
    %10 = vector.extract_strided_slice %5 {offsets = [0, 0], sizes = [16, 8], strides = [1, 1]} : vector<16x64xf32> to vector<16x8xf32>
    %11 = vector.extract_strided_slice %7 {offsets = [0, 0], sizes = [16, 8], strides = [1, 1]} : vector<16x64xf32> to vector<16x8xf32>
    %cst_8 = arith.constant dense<0.000000e+00> : vector<8x16xf32>
    %12 = tpu.matmul %9, %10, %cst_8 {dimension_numbers = #tpu.dot_dimension_numbers<[1], [1], [0], [0], [0, 0, 1, 0], [], []>} : vector<8x8xf32>, vector<16x8xf32>, vector<8x16xf32> -> vector<8x16xf32>
    %c0_9 = arith.constant 0 : index
    %c0_10 = arith.constant 0 : index
    %c0_11 = arith.constant 0 : index
    %13 = vector.load %arg12[%c0_9, %c0_10, %c0_11] : memref<8x8x1xf32, #tpu.memory_space<vmem>>, vector<1x8x1xf32>
    %14 = vector.shape_cast %13 : vector<1x8x1xf32> to vector<8x1xf32>
    %c0_12 = arith.constant 0 : index
    %c0_13 = arith.constant 0 : index
    %c0_14 = arith.constant 0 : index
    %15 = vector.load %arg13[%c0_12, %c0_13, %c0_14] : memref<8x8x1xf32, #tpu.memory_space<vmem>>, vector<1x8x1xf32>
    %16 = vector.shape_cast %15 : vector<1x8x1xf32> to vector<8x1xf32>
    %cst_15 = arith.constant dense<0xFF800000> : vector<8xf32>
    %17 = vector.multi_reduction <maximumf>, %12, %cst_15 [1] : vector<8x16xf32> to vector<8xf32>
    %18 = vector.shape_cast %17 : vector<8xf32> to vector<8x1xf32>
    %19 = arith.maximumf %14, %18 : vector<8x1xf32>
    %20 = arith.subf %14, %19 : vector<8x1xf32>
    %21 = math.exp %20 : vector<8x1xf32>
    %22 = vector.broadcast %19 : vector<8x1xf32> to vector<8x16xf32>
    %23 = arith.subf %12, %22 : vector<8x16xf32>
    %24 = math.exp %23 : vector<8x16xf32>
    %cst_16 = arith.constant dense<0.000000e+00> : vector<8x1xf32>
    %25 = tpu.matmul %24, %8, %cst_16 {dimension_numbers = #tpu.dot_dimension_numbers<[1], [0], [0], [1], [0, 0, 1, 1], [], []>} : vector<8x16xf32>, vector<16x1xf32>, vector<8x1xf32> -> vector<8x1xf32>
    %26 = arith.mulf %21, %16 : vector<8x1xf32>
    %27 = arith.addf %26, %25 : vector<8x1xf32>
    %c0_17 = arith.constant 0 : index
    %c0_18 = arith.constant 0 : index
    %c0_19 = arith.constant 0 : index
    %28 = vector.load %arg13[%c0_17, %c0_18, %c0_19] : memref<8x8x1xf32, #tpu.memory_space<vmem>>, vector<1x8x1xf32>
    %29 = vector.shape_cast %28 : vector<1x8x1xf32> to vector<8x1xf32>
    %30 = vector.shape_cast %27 : vector<8x1xf32> to vector<1x8x1xf32>
    tpu.vector_store %arg13[%c0_17, %c0_18, %c0_19], %30 {strides = array<i32>} : memref<8x8x1xf32, #tpu.memory_space<vmem>>, vector<1x8x1xf32>,
    %c0_20 = arith.constant 0 : index
    %c0_21 = arith.constant 0 : index
    %c0_22 = arith.constant 0 : index
    %31 = vector.load %arg12[%c0_20, %c0_21, %c0_22] : memref<8x8x1xf32, #tpu.memory_space<vmem>>, vector<1x8x1xf32>
    %32 = vector.shape_cast %31 : vector<1x8x1xf32> to vector<8x1xf32>
    %33 = vector.shape_cast %19 : vector<8x1xf32> to vector<1x8x1xf32>
    tpu.vector_store %arg12[%c0_20, %c0_21, %c0_22], %33 {strides = array<i32>} : memref<8x8x1xf32, #tpu.memory_space<vmem>>, vector<1x8x1xf32>,
    %34 = vector.shape_cast %21 : vector<8x1xf32> to vector<8x1xf32>
    %35 = vector.broadcast %34 : vector<8x1xf32> to vector<8x8xf32>
    %cst_23 = arith.constant dense<0.000000e+00> : vector<8x8xf32>
    %36 = tpu.matmul %24, %11, %cst_23 {dimension_numbers = #tpu.dot_dimension_numbers<[1], [0], [0], [1], [0, 0, 1, 1], [], []>} : vector<8x16xf32>, vector<16x8xf32>, vector<8x8xf32> -> vector<8x8xf32>
    %37 = vector.extract_strided_slice %3 {offsets = [0, 8], sizes = [8, 8], strides = [1, 1]} : vector<8x64xf32> to vector<8x8xf32>
    %38 = vector.extract_strided_slice %5 {offsets = [0, 8], sizes = [16, 8], strides = [1, 1]} : vector<16x64xf32> to vector<16x8xf32>
    %39 = vector.extract_strided_slice %7 {offsets = [0, 8], sizes = [16, 8], strides = [1, 1]} : vector<16x64xf32> to vector<16x8xf32>
    %cst_24 = arith.constant dense<0.000000e+00> : vector<8x16xf32>
    %40 = tpu.matmul %37, %38, %cst_24 {dimension_numbers = #tpu.dot_dimension_numbers<[1], [1], [0], [0], [0, 0, 1, 0], [], []>} : vector<8x8xf32>, vector<16x8xf32>, vector<8x16xf32> -> vector<8x16xf32>
    %c1 = arith.constant 1 : index
    %c0_25 = arith.constant 0 : index
    %c0_26 = arith.constant 0 : index
    %41 = vector.load %arg12[%c1, %c0_25, %c0_26] : memref<8x8x1xf32, #tpu.memory_space<vmem>>, vector<1x8x1xf32>
    %42 = vector.shape_cast %41 : vector<1x8x1xf32> to vector<8x1xf32>
    %c1_27 = arith.constant 1 : index
    %c0_28 = arith.constant 0 : index
    %c0_29 = arith.constant 0 : index
    %43 = vector.load %arg13[%c1_27, %c0_28, %c0_29] : memref<8x8x1xf32, #tpu.memory_space<vmem>>, vector<1x8x1xf32>
    %44 = vector.shape_cast %43 : vector<1x8x1xf32> to vector<8x1xf32>
    %cst_30 = arith.constant dense<0xFF800000> : vector<8xf32>
    %45 = vector.multi_reduction <maximumf>, %40, %cst_30 [1] : vector<8x16xf32> to vector<8xf32>
    %46 = vector.shape_cast %45 : vector<8xf32> to vector<8x1xf32>
    %47 = arith.maximumf %42, %46 : vector<8x1xf32>
    %48 = arith.subf %42, %47 : vector<8x1xf32>
    %49 = math.exp %48 : vector<8x1xf32>
    %50 = vector.broadcast %47 : vector<8x1xf32> to vector<8x16xf32>
    %51 = arith.subf %40, %50 : vector<8x16xf32>
    %52 = math.exp %51 : vector<8x16xf32>
    %cst_31 = arith.constant dense<0.000000e+00> : vector<8x1xf32>
    %53 = tpu.matmul %52, %8, %cst_31 {dimension_numbers = #tpu.dot_dimension_numbers<[1], [0], [0], [1], [0, 0, 1, 1], [], []>} : vector<8x16xf32>, vector<16x1xf32>, vector<8x1xf32> -> vector<8x1xf32>
    %54 = arith.mulf %49, %44 : vector<8x1xf32>
    %55 = arith.addf %54, %53 : vector<8x1xf32>
    %c1_32 = arith.constant 1 : index
    %c0_33 = arith.constant 0 : index
    %c0_34 = arith.constant 0 : index
    %56 = vector.load %arg13[%c1_32, %c0_33, %c0_34] : memref<8x8x1xf32, #tpu.memory_space<vmem>>, vector<1x8x1xf32>
    %57 = vector.shape_cast %56 : vector<1x8x1xf32> to vector<8x1xf32>
    %58 = vector.shape_cast %55 : vector<8x1xf32> to vector<1x8x1xf32>
    tpu.vector_store %arg13[%c1_32, %c0_33, %c0_34], %58 {strides = array<i32>} : memref<8x8x1xf32, #tpu.memory_space<vmem>>, vector<1x8x1xf32>,
    %c1_35 = arith.constant 1 : index
    %c0_36 = arith.constant 0 : index
    %c0_37 = arith.constant 0 : index
    %59 = vector.load %arg12[%c1_35, %c0_36, %c0_37] : memref<8x8x1xf32, #tpu.memory_space<vmem>>, vector<1x8x1xf32>
    %60 = vector.shape_cast %59 : vector<1x8x1xf32> to vector<8x1xf32>
    %61 = vector.shape_cast %47 : vector<8x1xf32> to vector<1x8x1xf32>
    tpu.vector_store %arg12[%c1_35, %c0_36, %c0_37], %61 {strides = array<i32>} : memref<8x8x1xf32, #tpu.memory_space<vmem>>, vector<1x8x1xf32>,
    %62 = vector.shape_cast %49 : vector<8x1xf32> to vector<8x1xf32>
    %63 = vector.broadcast %62 : vector<8x1xf32> to vector<8x8xf32>
    %cst_38 = arith.constant dense<0.000000e+00> : vector<8x8xf32>
    %64 = tpu.matmul %52, %39, %cst_38 {dimension_numbers = #tpu.dot_dimension_numbers<[1], [0], [0], [1], [0, 0, 1, 1], [], []>} : vector<8x16xf32>, vector<16x8xf32>, vector<8x8xf32> -> vector<8x8xf32>
    %65 = vector.extract_strided_slice %3 {offsets = [0, 16], sizes = [8, 8], strides = [1, 1]} : vector<8x64xf32> to vector<8x8xf32>
    %66 = vector.extract_strided_slice %5 {offsets = [0, 16], sizes = [16, 8], strides = [1, 1]} : vector<16x64xf32> to vector<16x8xf32>
    %67 = vector.extract_strided_slice %7 {offsets = [0, 16], sizes = [16, 8], strides = [1, 1]} : vector<16x64xf32> to vector<16x8xf32>
    %cst_39 = arith.constant dense<0.000000e+00> : vector<8x16xf32>
    %68 = tpu.matmul %65, %66, %cst_39 {dimension_numbers = #tpu.dot_dimension_numbers<[1], [1], [0], [0], [0, 0, 1, 0], [], []>} : vector<8x8xf32>, vector<16x8xf32>, vector<8x16xf32> -> vector<8x16xf32>
    %c2 = arith.constant 2 : index
    %c0_40 = arith.constant 0 : index
    %c0_41 = arith.constant 0 : index
    %69 = vector.load %arg12[%c2, %c0_40, %c0_41] : memref<8x8x1xf32, #tpu.memory_space<vmem>>, vector<1x8x1xf32>
    %70 = vector.shape_cast %69 : vector<1x8x1xf32> to vector<8x1xf32>
    %c2_42 = arith.constant 2 : index
    %c0_43 = arith.constant 0 : index
    %c0_44 = arith.constant 0 : index
    %71 = vector.load %arg13[%c2_42, %c0_43, %c0_44] : memref<8x8x1xf32, #tpu.memory_space<vmem>>, vector<1x8x1xf32>
    %72 = vector.shape_cast %71 : vector<1x8x1xf32> to vector<8x1xf32>
    %cst_45 = arith.constant dense<0xFF800000> : vector<8xf32>
    %73 = vector.multi_reduction <maximumf>, %68, %cst_45 [1] : vector<8x16xf32> to vector<8xf32>
    %74 = vector.shape_cast %73 : vector<8xf32> to vector<8x1xf32>
    %75 = arith.maximumf %70, %74 : vector<8x1xf32>
    %76 = arith.subf %70, %75 : vector<8x1xf32>
    %77 = math.exp %76 : vector<8x1xf32>
    %78 = vector.broadcast %75 : vector<8x1xf32> to vector<8x16xf32>
    %79 = arith.subf %68, %78 : vector<8x16xf32>
    %80 = math.exp %79 : vector<8x16xf32>
    %cst_46 = arith.constant dense<0.000000e+00> : vector<8x1xf32>
    %81 = tpu.matmul %80, %8, %cst_46 {dimension_numbers = #tpu.dot_dimension_numbers<[1], [0], [0], [1], [0, 0, 1, 1], [], []>} : vector<8x16xf32>, vector<16x1xf32>, vector<8x1xf32> -> vector<8x1xf32>
    %82 = arith.mulf %77, %72 : vector<8x1xf32>
    %83 = arith.addf %82, %81 : vector<8x1xf32>
    %c2_47 = arith.constant 2 : index
    %c0_48 = arith.constant 0 : index
    %c0_49 = arith.constant 0 : index
    %84 = vector.load %arg13[%c2_47, %c0_48, %c0_49] : memref<8x8x1xf32, #tpu.memory_space<vmem>>, vector<1x8x1xf32>
    %85 = vector.shape_cast %84 : vector<1x8x1xf32> to vector<8x1xf32>
    %86 = vector.shape_cast %83 : vector<8x1xf32> to vector<1x8x1xf32>
    tpu.vector_store %arg13[%c2_47, %c0_48, %c0_49], %86 {strides = array<i32>} : memref<8x8x1xf32, #tpu.memory_space<vmem>>, vector<1x8x1xf32>,
    %c2_50 = arith.constant 2 : index
    %c0_51 = arith.constant 0 : index
    %c0_52 = arith.constant 0 : index
    %87 = vector.load %arg12[%c2_50, %c0_51, %c0_52] : memref<8x8x1xf32, #tpu.memory_space<vmem>>, vector<1x8x1xf32>
    %88 = vector.shape_cast %87 : vector<1x8x1xf32> to vector<8x1xf32>
    %89 = vector.shape_cast %75 : vector<8x1xf32> to vector<1x8x1xf32>
    tpu.vector_store %arg12[%c2_50, %c0_51, %c0_52], %89 {strides = array<i32>} : memref<8x8x1xf32, #tpu.memory_space<vmem>>, vector<1x8x1xf32>,
    %90 = vector.shape_cast %77 : vector<8x1xf32> to vector<8x1xf32>
    %91 = vector.broadcast %90 : vector<8x1xf32> to vector<8x8xf32>
    %cst_53 = arith.constant dense<0.000000e+00> : vector<8x8xf32>
    %92 = tpu.matmul %80, %67, %cst_53 {dimension_numbers = #tpu.dot_dimension_numbers<[1], [0], [0], [1], [0, 0, 1, 1], [], []>} : vector<8x16xf32>, vector<16x8xf32>, vector<8x8xf32> -> vector<8x8xf32>
    %93 = vector.extract_strided_slice %3 {offsets = [0, 24], sizes = [8, 8], strides = [1, 1]} : vector<8x64xf32> to vector<8x8xf32>
    %94 = vector.extract_strided_slice %5 {offsets = [0, 24], sizes = [16, 8], strides = [1, 1]} : vector<16x64xf32> to vector<16x8xf32>
    %95 = vector.extract_strided_slice %7 {offsets = [0, 24], sizes = [16, 8], strides = [1, 1]} : vector<16x64xf32> to vector<16x8xf32>
    %cst_54 = arith.constant dense<0.000000e+00> : vector<8x16xf32>
    %96 = tpu.matmul %93, %94, %cst_54 {dimension_numbers = #tpu.dot_dimension_numbers<[1], [1], [0], [0], [0, 0, 1, 0], [], []>} : vector<8x8xf32>, vector<16x8xf32>, vector<8x16xf32> -> vector<8x16xf32>
    %c3 = arith.constant 3 : index
    %c0_55 = arith.constant 0 : index
    %c0_56 = arith.constant 0 : index
    %97 = vector.load %arg12[%c3, %c0_55, %c0_56] : memref<8x8x1xf32, #tpu.memory_space<vmem>>, vector<1x8x1xf32>
    %98 = vector.shape_cast %97 : vector<1x8x1xf32> to vector<8x1xf32>
    %c3_57 = arith.constant 3 : index
    %c0_58 = arith.constant 0 : index
    %c0_59 = arith.constant 0 : index
    %99 = vector.load %arg13[%c3_57, %c0_58, %c0_59] : memref<8x8x1xf32, #tpu.memory_space<vmem>>, vector<1x8x1xf32>
    %100 = vector.shape_cast %99 : vector<1x8x1xf32> to vector<8x1xf32>
    %cst_60 = arith.constant dense<0xFF800000> : vector<8xf32>
    %101 = vector.multi_reduction <maximumf>, %96, %cst_60 [1] : vector<8x16xf32> to vector<8xf32>
    %102 = vector.shape_cast %101 : vector<8xf32> to vector<8x1xf32>
    %103 = arith.maximumf %98, %102 : vector<8x1xf32>
    %104 = arith.subf %98, %103 : vector<8x1xf32>
    %105 = math.exp %104 : vector<8x1xf32>
    %106 = vector.broadcast %103 : vector<8x1xf32> to vector<8x16xf32>
    %107 = arith.subf %96, %106 : vector<8x16xf32>
    %108 = math.exp %107 : vector<8x16xf32>
    %cst_61 = arith.constant dense<0.000000e+00> : vector<8x1xf32>
    %109 = tpu.matmul %108, %8, %cst_61 {dimension_numbers = #tpu.dot_dimension_numbers<[1], [0], [0], [1], [0, 0, 1, 1], [], []>} : vector<8x16xf32>, vector<16x1xf32>, vector<8x1xf32> -> vector<8x1xf32>
    %110 = arith.mulf %105, %100 : vector<8x1xf32>
    %111 = arith.addf %110, %109 : vector<8x1xf32>
    %c3_62 = arith.constant 3 : index
    %c0_63 = arith.constant 0 : index
    %c0_64 = arith.constant 0 : index
    %112 = vector.load %arg13[%c3_62, %c0_63, %c0_64] : memref<8x8x1xf32, #tpu.memory_space<vmem>>, vector<1x8x1xf32>
    %113 = vector.shape_cast %112 : vector<1x8x1xf32> to vector<8x1xf32>
    %114 = vector.shape_cast %111 : vector<8x1xf32> to vector<1x8x1xf32>
    tpu.vector_store %arg13[%c3_62, %c0_63, %c0_64], %114 {strides = array<i32>} : memref<8x8x1xf32, #tpu.memory_space<vmem>>, vector<1x8x1xf32>,
    %c3_65 = arith.constant 3 : index
    %c0_66 = arith.constant 0 : index
    %c0_67 = arith.constant 0 : index
    %115 = vector.load %arg12[%c3_65, %c0_66, %c0_67] : memref<8x8x1xf32, #tpu.memory_space<vmem>>, vector<1x8x1xf32>
    %116 = vector.shape_cast %115 : vector<1x8x1xf32> to vector<8x1xf32>
    %117 = vector.shape_cast %103 : vector<8x1xf32> to vector<1x8x1xf32>
    tpu.vector_store %arg12[%c3_65, %c0_66, %c0_67], %117 {strides = array<i32>} : memref<8x8x1xf32, #tpu.memory_space<vmem>>, vector<1x8x1xf32>,
    %118 = vector.shape_cast %105 : vector<8x1xf32> to vector<8x1xf32>
    %119 = vector.broadcast %118 : vector<8x1xf32> to vector<8x8xf32>
    %cst_68 = arith.constant dense<0.000000e+00> : vector<8x8xf32>
    %120 = tpu.matmul %108, %95, %cst_68 {dimension_numbers = #tpu.dot_dimension_numbers<[1], [0], [0], [1], [0, 0, 1, 1], [], []>} : vector<8x16xf32>, vector<16x8xf32>, vector<8x8xf32> -> vector<8x8xf32>
    %121 = vector.extract_strided_slice %3 {offsets = [0, 32], sizes = [8, 8], strides = [1, 1]} : vector<8x64xf32> to vector<8x8xf32>
    %122 = vector.extract_strided_slice %5 {offsets = [0, 32], sizes = [16, 8], strides = [1, 1]} : vector<16x64xf32> to vector<16x8xf32>
    %123 = vector.extract_strided_slice %7 {offsets = [0, 32], sizes = [16, 8], strides = [1, 1]} : vector<16x64xf32> to vector<16x8xf32>
    %cst_69 = arith.constant dense<0.000000e+00> : vector<8x16xf32>
    %124 = tpu.matmul %121, %122, %cst_69 {dimension_numbers = #tpu.dot_dimension_numbers<[1], [1], [0], [0], [0, 0, 1, 0], [], []>} : vector<8x8xf32>, vector<16x8xf32>, vector<8x16xf32> -> vector<8x16xf32>
    %c4 = arith.constant 4 : index
    %c0_70 = arith.constant 0 : index
    %c0_71 = arith.constant 0 : index
    %125 = vector.load %arg12[%c4, %c0_70, %c0_71] : memref<8x8x1xf32, #tpu.memory_space<vmem>>, vector<1x8x1xf32>
    %126 = vector.shape_cast %125 : vector<1x8x1xf32> to vector<8x1xf32>
    %c4_72 = arith.constant 4 : index
    %c0_73 = arith.constant 0 : index
    %c0_74 = arith.constant 0 : index
    %127 = vector.load %arg13[%c4_72, %c0_73, %c0_74] : memref<8x8x1xf32, #tpu.memory_space<vmem>>, vector<1x8x1xf32>
    %128 = vector.shape_cast %127 : vector<1x8x1xf32> to vector<8x1xf32>
    %cst_75 = arith.constant dense<0xFF800000> : vector<8xf32>
    %129 = vector.multi_reduction <maximumf>, %124, %cst_75 [1] : vector<8x16xf32> to vector<8xf32>
    %130 = vector.shape_cast %129 : vector<8xf32> to vector<8x1xf32>
    %131 = arith.maximumf %126, %130 : vector<8x1xf32>
    %132 = arith.subf %126, %131 : vector<8x1xf32>
    %133 = math.exp %132 : vector<8x1xf32>
    %134 = vector.broadcast %131 : vector<8x1xf32> to vector<8x16xf32>
    %135 = arith.subf %124, %134 : vector<8x16xf32>
    %136 = math.exp %135 : vector<8x16xf32>
    %cst_76 = arith.constant dense<0.000000e+00> : vector<8x1xf32>
    %137 = tpu.matmul %136, %8, %cst_76 {dimension_numbers = #tpu.dot_dimension_numbers<[1], [0], [0], [1], [0, 0, 1, 1], [], []>} : vector<8x16xf32>, vector<16x1xf32>, vector<8x1xf32> -> vector<8x1xf32>
    %138 = arith.mulf %133, %128 : vector<8x1xf32>
    %139 = arith.addf %138, %137 : vector<8x1xf32>
    %c4_77 = arith.constant 4 : index
    %c0_78 = arith.constant 0 : index
    %c0_79 = arith.constant 0 : index
    %140 = vector.load %arg13[%c4_77, %c0_78, %c0_79] : memref<8x8x1xf32, #tpu.memory_space<vmem>>, vector<1x8x1xf32>
    %141 = vector.shape_cast %140 : vector<1x8x1xf32> to vector<8x1xf32>
    %142 = vector.shape_cast %139 : vector<8x1xf32> to vector<1x8x1xf32>
    tpu.vector_store %arg13[%c4_77, %c0_78, %c0_79], %142 {strides = array<i32>} : memref<8x8x1xf32, #tpu.memory_space<vmem>>, vector<1x8x1xf32>,
    %c4_80 = arith.constant 4 : index
    %c0_81 = arith.constant 0 : index
    %c0_82 = arith.constant 0 : index
    %143 = vector.load %arg12[%c4_80, %c0_81, %c0_82] : memref<8x8x1xf32, #tpu.memory_space<vmem>>, vector<1x8x1xf32>
    %144 = vector.shape_cast %143 : vector<1x8x1xf32> to vector<8x1xf32>
    %145 = vector.shape_cast %131 : vector<8x1xf32> to vector<1x8x1xf32>
    tpu.vector_store %arg12[%c4_80, %c0_81, %c0_82], %145 {strides = array<i32>} : memref<8x8x1xf32, #tpu.memory_space<vmem>>, vector<1x8x1xf32>,
    %146 = vector.shape_cast %133 : vector<8x1xf32> to vector<8x1xf32>
    %147 = vector.broadcast %146 : vector<8x1xf32> to vector<8x8xf32>
    %cst_83 = arith.constant dense<0.000000e+00> : vector<8x8xf32>
    %148 = tpu.matmul %136, %123, %cst_83 {dimension_numbers = #tpu.dot_dimension_numbers<[1], [0], [0], [1], [0, 0, 1, 1], [], []>} : vector<8x16xf32>, vector<16x8xf32>, vector<8x8xf32> -> vector<8x8xf32>
    %149 = vector.extract_strided_slice %3 {offsets = [0, 40], sizes = [8, 8], strides = [1, 1]} : vector<8x64xf32> to vector<8x8xf32>
    %150 = vector.extract_strided_slice %5 {offsets = [0, 40], sizes = [16, 8], strides = [1, 1]} : vector<16x64xf32> to vector<16x8xf32>
    %151 = vector.extract_strided_slice %7 {offsets = [0, 40], sizes = [16, 8], strides = [1, 1]} : vector<16x64xf32> to vector<16x8xf32>
    %cst_84 = arith.constant dense<0.000000e+00> : vector<8x16xf32>
    %152 = tpu.matmul %149, %150, %cst_84 {dimension_numbers = #tpu.dot_dimension_numbers<[1], [1], [0], [0], [0, 0, 1, 0], [], []>} : vector<8x8xf32>, vector<16x8xf32>, vector<8x16xf32> -> vector<8x16xf32>
    %c5 = arith.constant 5 : index
    %c0_85 = arith.constant 0 : index
    %c0_86 = arith.constant 0 : index
    %153 = vector.load %arg12[%c5, %c0_85, %c0_86] : memref<8x8x1xf32, #tpu.memory_space<vmem>>, vector<1x8x1xf32>
    %154 = vector.shape_cast %153 : vector<1x8x1xf32> to vector<8x1xf32>
    %c5_87 = arith.constant 5 : index
    %c0_88 = arith.constant 0 : index
    %c0_89 = arith.constant 0 : index
    %155 = vector.load %arg13[%c5_87, %c0_88, %c0_89] : memref<8x8x1xf32, #tpu.memory_space<vmem>>, vector<1x8x1xf32>
    %156 = vector.shape_cast %155 : vector<1x8x1xf32> to vector<8x1xf32>
    %cst_90 = arith.constant dense<0xFF800000> : vector<8xf32>
    %157 = vector.multi_reduction <maximumf>, %152, %cst_90 [1] : vector<8x16xf32> to vector<8xf32>
    %158 = vector.shape_cast %157 : vector<8xf32> to vector<8x1xf32>
    %159 = arith.maximumf %154, %158 : vector<8x1xf32>
    %160 = arith.subf %154, %159 : vector<8x1xf32>
    %161 = math.exp %160 : vector<8x1xf32>
    %162 = vector.broadcast %159 : vector<8x1xf32> to vector<8x16xf32>
    %163 = arith.subf %152, %162 : vector<8x16xf32>
    %164 = math.exp %163 : vector<8x16xf32>
    %cst_91 = arith.constant dense<0.000000e+00> : vector<8x1xf32>
    %165 = tpu.matmul %164, %8, %cst_91 {dimension_numbers = #tpu.dot_dimension_numbers<[1], [0], [0], [1], [0, 0, 1, 1], [], []>} : vector<8x16xf32>, vector<16x1xf32>, vector<8x1xf32> -> vector<8x1xf32>
    %166 = arith.mulf %161, %156 : vector<8x1xf32>
    %167 = arith.addf %166, %165 : vector<8x1xf32>
    %c5_92 = arith.constant 5 : index
    %c0_93 = arith.constant 0 : index
    %c0_94 = arith.constant 0 : index
    %168 = vector.load %arg13[%c5_92, %c0_93, %c0_94] : memref<8x8x1xf32, #tpu.memory_space<vmem>>, vector<1x8x1xf32>
    %169 = vector.shape_cast %168 : vector<1x8x1xf32> to vector<8x1xf32>
    %170 = vector.shape_cast %167 : vector<8x1xf32> to vector<1x8x1xf32>
    tpu.vector_store %arg13[%c5_92, %c0_93, %c0_94], %170 {strides = array<i32>} : memref<8x8x1xf32, #tpu.memory_space<vmem>>, vector<1x8x1xf32>,
    %c5_95 = arith.constant 5 : index
    %c0_96 = arith.constant 0 : index
    %c0_97 = arith.constant 0 : index
    %171 = vector.load %arg12[%c5_95, %c0_96, %c0_97] : memref<8x8x1xf32, #tpu.memory_space<vmem>>, vector<1x8x1xf32>
    %172 = vector.shape_cast %171 : vector<1x8x1xf32> to vector<8x1xf32>
    %173 = vector.shape_cast %159 : vector<8x1xf32> to vector<1x8x1xf32>
    tpu.vector_store %arg12[%c5_95, %c0_96, %c0_97], %173 {strides = array<i32>} : memref<8x8x1xf32, #tpu.memory_space<vmem>>, vector<1x8x1xf32>,
    %174 = vector.shape_cast %161 : vector<8x1xf32> to vector<8x1xf32>
    %175 = vector.broadcast %174 : vector<8x1xf32> to vector<8x8xf32>
    %cst_98 = arith.constant dense<0.000000e+00> : vector<8x8xf32>
    %176 = tpu.matmul %164, %151, %cst_98 {dimension_numbers = #tpu.dot_dimension_numbers<[1], [0], [0], [1], [0, 0, 1, 1], [], []>} : vector<8x16xf32>, vector<16x8xf32>, vector<8x8xf32> -> vector<8x8xf32>
    %177 = vector.extract_strided_slice %3 {offsets = [0, 48], sizes = [8, 8], strides = [1, 1]} : vector<8x64xf32> to vector<8x8xf32>
    %178 = vector.extract_strided_slice %5 {offsets = [0, 48], sizes = [16, 8], strides = [1, 1]} : vector<16x64xf32> to vector<16x8xf32>
    %179 = vector.extract_strided_slice %7 {offsets = [0, 48], sizes = [16, 8], strides = [1, 1]} : vector<16x64xf32> to vector<16x8xf32>
    %cst_99 = arith.constant dense<0.000000e+00> : vector<8x16xf32>
    %180 = tpu.matmul %177, %178, %cst_99 {dimension_numbers = #tpu.dot_dimension_numbers<[1], [1], [0], [0], [0, 0, 1, 0], [], []>} : vector<8x8xf32>, vector<16x8xf32>, vector<8x16xf32> -> vector<8x16xf32>
    %c6 = arith.constant 6 : index
    %c0_100 = arith.constant 0 : index
    %c0_101 = arith.constant 0 : index
    %181 = vector.load %arg12[%c6, %c0_100, %c0_101] : memref<8x8x1xf32, #tpu.memory_space<vmem>>, vector<1x8x1xf32>
    %182 = vector.shape_cast %181 : vector<1x8x1xf32> to vector<8x1xf32>
    %c6_102 = arith.constant 6 : index
    %c0_103 = arith.constant 0 : index
    %c0_104 = arith.constant 0 : index
    %183 = vector.load %arg13[%c6_102, %c0_103, %c0_104] : memref<8x8x1xf32, #tpu.memory_space<vmem>>, vector<1x8x1xf32>
    %184 = vector.shape_cast %183 : vector<1x8x1xf32> to vector<8x1xf32>
    %cst_105 = arith.constant dense<0xFF800000> : vector<8xf32>
    %185 = vector.multi_reduction <maximumf>, %180, %cst_105 [1] : vector<8x16xf32> to vector<8xf32>
    %186 = vector.shape_cast %185 : vector<8xf32> to vector<8x1xf32>
    %187 = arith.maximumf %182, %186 : vector<8x1xf32>
    %188 = arith.subf %182, %187 : vector<8x1xf32>
    %189 = math.exp %188 : vector<8x1xf32>
    %190 = vector.broadcast %187 : vector<8x1xf32> to vector<8x16xf32>
    %191 = arith.subf %180, %190 : vector<8x16xf32>
    %192 = math.exp %191 : vector<8x16xf32>
    %cst_106 = arith.constant dense<0.000000e+00> : vector<8x1xf32>
    %193 = tpu.matmul %192, %8, %cst_106 {dimension_numbers = #tpu.dot_dimension_numbers<[1], [0], [0], [1], [0, 0, 1, 1], [], []>} : vector<8x16xf32>, vector<16x1xf32>, vector<8x1xf32> -> vector<8x1xf32>
    %194 = arith.mulf %189, %184 : vector<8x1xf32>
    %195 = arith.addf %194, %193 : vector<8x1xf32>
    %c6_107 = arith.constant 6 : index
    %c0_108 = arith.constant 0 : index
    %c0_109 = arith.constant 0 : index
    %196 = vector.load %arg13[%c6_107, %c0_108, %c0_109] : memref<8x8x1xf32, #tpu.memory_space<vmem>>, vector<1x8x1xf32>
    %197 = vector.shape_cast %196 : vector<1x8x1xf32> to vector<8x1xf32>
    %198 = vector.shape_cast %195 : vector<8x1xf32> to vector<1x8x1xf32>
    tpu.vector_store %arg13[%c6_107, %c0_108, %c0_109], %198 {strides = array<i32>} : memref<8x8x1xf32, #tpu.memory_space<vmem>>, vector<1x8x1xf32>,
    %c6_110 = arith.constant 6 : index
    %c0_111 = arith.constant 0 : index
    %c0_112 = arith.constant 0 : index
    %199 = vector.load %arg12[%c6_110, %c0_111, %c0_112] : memref<8x8x1xf32, #tpu.memory_space<vmem>>, vector<1x8x1xf32>
    %200 = vector.shape_cast %199 : vector<1x8x1xf32> to vector<8x1xf32>
    %201 = vector.shape_cast %187 : vector<8x1xf32> to vector<1x8x1xf32>
    tpu.vector_store %arg12[%c6_110, %c0_111, %c0_112], %201 {strides = array<i32>} : memref<8x8x1xf32, #tpu.memory_space<vmem>>, vector<1x8x1xf32>,
    %202 = vector.shape_cast %189 : vector<8x1xf32> to vector<8x1xf32>
    %203 = vector.broadcast %202 : vector<8x1xf32> to vector<8x8xf32>
    %cst_113 = arith.constant dense<0.000000e+00> : vector<8x8xf32>
    %204 = tpu.matmul %192, %179, %cst_113 {dimension_numbers = #tpu.dot_dimension_numbers<[1], [0], [0], [1], [0, 0, 1, 1], [], []>} : vector<8x16xf32>, vector<16x8xf32>, vector<8x8xf32> -> vector<8x8xf32>
    %205 = vector.extract_strided_slice %3 {offsets = [0, 56], sizes = [8, 8], strides = [1, 1]} : vector<8x64xf32> to vector<8x8xf32>
    %206 = vector.extract_strided_slice %5 {offsets = [0, 56], sizes = [16, 8], strides = [1, 1]} : vector<16x64xf32> to vector<16x8xf32>
    %207 = vector.extract_strided_slice %7 {offsets = [0, 56], sizes = [16, 8], strides = [1, 1]} : vector<16x64xf32> to vector<16x8xf32>
    %cst_114 = arith.constant dense<0.000000e+00> : vector<8x16xf32>
    %208 = tpu.matmul %205, %206, %cst_114 {dimension_numbers = #tpu.dot_dimension_numbers<[1], [1], [0], [0], [0, 0, 1, 0], [], []>} : vector<8x8xf32>, vector<16x8xf32>, vector<8x16xf32> -> vector<8x16xf32>
    %c7 = arith.constant 7 : index
    %c0_115 = arith.constant 0 : index
    %c0_116 = arith.constant 0 : index
    %209 = vector.load %arg12[%c7, %c0_115, %c0_116] : memref<8x8x1xf32, #tpu.memory_space<vmem>>, vector<1x8x1xf32>
    %210 = vector.shape_cast %209 : vector<1x8x1xf32> to vector<8x1xf32>
    %c7_117 = arith.constant 7 : index
    %c0_118 = arith.constant 0 : index
    %c0_119 = arith.constant 0 : index
    %211 = vector.load %arg13[%c7_117, %c0_118, %c0_119] : memref<8x8x1xf32, #tpu.memory_space<vmem>>, vector<1x8x1xf32>
    %212 = vector.shape_cast %211 : vector<1x8x1xf32> to vector<8x1xf32>
    %cst_120 = arith.constant dense<0xFF800000> : vector<8xf32>
    %213 = vector.multi_reduction <maximumf>, %208, %cst_120 [1] : vector<8x16xf32> to vector<8xf32>
    %214 = vector.shape_cast %213 : vector<8xf32> to vector<8x1xf32>
    %215 = arith.maximumf %210, %214 : vector<8x1xf32>
    %216 = arith.subf %210, %215 : vector<8x1xf32>
    %217 = math.exp %216 : vector<8x1xf32>
    %218 = vector.broadcast %215 : vector<8x1xf32> to vector<8x16xf32>
    %219 = arith.subf %208, %218 : vector<8x16xf32>
    %220 = math.exp %219 : vector<8x16xf32>
    %cst_121 = arith.constant dense<0.000000e+00> : vector<8x1xf32>
    %221 = tpu.matmul %220, %8, %cst_121 {dimension_numbers = #tpu.dot_dimension_numbers<[1], [0], [0], [1], [0, 0, 1, 1], [], []>} : vector<8x16xf32>, vector<16x1xf32>, vector<8x1xf32> -> vector<8x1xf32>
    %222 = arith.mulf %217, %212 : vector<8x1xf32>
    %223 = arith.addf %222, %221 : vector<8x1xf32>
    %c7_122 = arith.constant 7 : index
    %c0_123 = arith.constant 0 : index
    %c0_124 = arith.constant 0 : index
    %224 = vector.load %arg13[%c7_122, %c0_123, %c0_124] : memref<8x8x1xf32, #tpu.memory_space<vmem>>, vector<1x8x1xf32>
    %225 = vector.shape_cast %224 : vector<1x8x1xf32> to vector<8x1xf32>
    %226 = vector.shape_cast %223 : vector<8x1xf32> to vector<1x8x1xf32>
    tpu.vector_store %arg13[%c7_122, %c0_123, %c0_124], %226 {strides = array<i32>} : memref<8x8x1xf32, #tpu.memory_space<vmem>>, vector<1x8x1xf32>,
    %c7_125 = arith.constant 7 : index
    %c0_126 = arith.constant 0 : index
    %c0_127 = arith.constant 0 : index
    %227 = vector.load %arg12[%c7_125, %c0_126, %c0_127] : memref<8x8x1xf32, #tpu.memory_space<vmem>>, vector<1x8x1xf32>
    %228 = vector.shape_cast %227 : vector<1x8x1xf32> to vector<8x1xf32>
    %229 = vector.shape_cast %215 : vector<8x1xf32> to vector<1x8x1xf32>
    tpu.vector_store %arg12[%c7_125, %c0_126, %c0_127], %229 {strides = array<i32>} : memref<8x8x1xf32, #tpu.memory_space<vmem>>, vector<1x8x1xf32>,
    %230 = vector.shape_cast %217 : vector<8x1xf32> to vector<8x1xf32>
    %231 = vector.broadcast %230 : vector<8x1xf32> to vector<8x8xf32>
    %cst_128 = arith.constant dense<0.000000e+00> : vector<8x8xf32>
    %232 = tpu.matmul %220, %207, %cst_128 {dimension_numbers = #tpu.dot_dimension_numbers<[1], [0], [0], [1], [0, 0, 1, 1], [], []>} : vector<8x16xf32>, vector<16x8xf32>, vector<8x8xf32> -> vector<8x8xf32>
    %233 = tpu.concatenate %35, %63, %91, %119, %147, %175, %203, %231 in 1 : vector<8x8xf32>, vector<8x8xf32>, vector<8x8xf32>, vector<8x8xf32>, vector<8x8xf32>, vector<8x8xf32>, vector<8x8xf32>, vector<8x8xf32> -> vector<8x64xf32>
    %234 = tpu.concatenate %36, %64, %92, %120, %148, %176, %204, %232 in 1 : vector<8x8xf32>, vector<8x8xf32>, vector<8x8xf32>, vector<8x8xf32>, vector<8x8xf32>, vector<8x8xf32>, vector<8x8xf32>, vector<8x8xf32> -> vector<8x64xf32>
    %c0_129 = arith.constant 0 : index
    %c0_130 = arith.constant 0 : index
    %235 = vector.load %arg14[%c0_129, %c0_130] : memref<8x64xf32, #tpu.memory_space<vmem>>, vector<8x64xf32>
    %236 = arith.mulf %233, %235 : vector<8x64xf32>
    %237 = arith.addf %236, %234 : vector<8x64xf32>
    %c0_131 = arith.constant 0 : index
    %c0_132 = arith.constant 0 : index
    %238 = vector.load %arg14[%c0_131, %c0_132] : memref<8x64xf32, #tpu.memory_space<vmem>>, vector<8x64xf32>
    tpu.vector_store %arg14[%c0_131, %c0_132], %237 {strides = array<i32>} : memref<8x64xf32, #tpu.memory_space<vmem>>, vector<8x64xf32>,
    %c1_i32 = arith.constant 1 : i32
    %239 = arith.cmpi eq, %arg2, %c1_i32 : i32
    %240 = arith.extui %239 : i1 to i32
    %c0_i32_133 = arith.constant 0 : i32
    %241 = arith.cmpi ne, %240, %c0_i32_133 : i32
    scf.if %241 {
      %c0_134 = arith.constant 0 : index
      %c0_135 = arith.constant 0 : index
      %c0_136 = arith.constant 0 : index
      %242 = vector.load %arg13[%c0_134, %c0_135, %c0_136] : memref<8x8x1xf32, #tpu.memory_space<vmem>>, vector<1x8x1xf32>
      %243 = vector.shape_cast %242 : vector<1x8x1xf32> to vector<8x1xf32>
      %244 = tpu.reciprocal %243 {approx = true} : vector<8x1xf32> -> vector<8x1xf32>
      %245 = vector.shape_cast %244 : vector<8x1xf32> to vector<8x1xf32>
      %246 = vector.broadcast %245 : vector<8x1xf32> to vector<8x8xf32>
      %c1_137 = arith.constant 1 : index
      %c0_138 = arith.constant 0 : index
      %c0_139 = arith.constant 0 : index
      %247 = vector.load %arg13[%c1_137, %c0_138, %c0_139] : memref<8x8x1xf32, #tpu.memory_space<vmem>>, vector<1x8x1xf32>
      %248 = vector.shape_cast %247 : vector<1x8x1xf32> to vector<8x1xf32>
      %249 = tpu.reciprocal %248 {approx = true} : vector<8x1xf32> -> vector<8x1xf32>
      %250 = vector.shape_cast %249 : vector<8x1xf32> to vector<8x1xf32>
      %251 = vector.broadcast %250 : vector<8x1xf32> to vector<8x8xf32>
      %c2_140 = arith.constant 2 : index
      %c0_141 = arith.constant 0 : index
      %c0_142 = arith.constant 0 : index
      %252 = vector.load %arg13[%c2_140, %c0_141, %c0_142] : memref<8x8x1xf32, #tpu.memory_space<vmem>>, vector<1x8x1xf32>
      %253 = vector.shape_cast %252 : vector<1x8x1xf32> to vector<8x1xf32>
      %254 = tpu.reciprocal %253 {approx = true} : vector<8x1xf32> -> vector<8x1xf32>
      %255 = vector.shape_cast %254 : vector<8x1xf32> to vector<8x1xf32>
      %256 = vector.broadcast %255 : vector<8x1xf32> to vector<8x8xf32>
      %c3_143 = arith.constant 3 : index
      %c0_144 = arith.constant 0 : index
      %c0_145 = arith.constant 0 : index
      %257 = vector.load %arg13[%c3_143, %c0_144, %c0_145] : memref<8x8x1xf32, #tpu.memory_space<vmem>>, vector<1x8x1xf32>
      %258 = vector.shape_cast %257 : vector<1x8x1xf32> to vector<8x1xf32>
      %259 = tpu.reciprocal %258 {approx = true} : vector<8x1xf32> -> vector<8x1xf32>
      %260 = vector.shape_cast %259 : vector<8x1xf32> to vector<8x1xf32>
      %261 = vector.broadcast %260 : vector<8x1xf32> to vector<8x8xf32>
      %c4_146 = arith.constant 4 : index
      %c0_147 = arith.constant 0 : index
      %c0_148 = arith.constant 0 : index
      %262 = vector.load %arg13[%c4_146, %c0_147, %c0_148] : memref<8x8x1xf32, #tpu.memory_space<vmem>>, vector<1x8x1xf32>
      %263 = vector.shape_cast %262 : vector<1x8x1xf32> to vector<8x1xf32>
      %264 = tpu.reciprocal %263 {approx = true} : vector<8x1xf32> -> vector<8x1xf32>
      %265 = vector.shape_cast %264 : vector<8x1xf32> to vector<8x1xf32>
      %266 = vector.broadcast %265 : vector<8x1xf32> to vector<8x8xf32>
      %c5_149 = arith.constant 5 : index
      %c0_150 = arith.constant 0 : index
      %c0_151 = arith.constant 0 : index
      %267 = vector.load %arg13[%c5_149, %c0_150, %c0_151] : memref<8x8x1xf32, #tpu.memory_space<vmem>>, vector<1x8x1xf32>
      %268 = vector.shape_cast %267 : vector<1x8x1xf32> to vector<8x1xf32>
      %269 = tpu.reciprocal %268 {approx = true} : vector<8x1xf32> -> vector<8x1xf32>
      %270 = vector.shape_cast %269 : vector<8x1xf32> to vector<8x1xf32>
      %271 = vector.broadcast %270 : vector<8x1xf32> to vector<8x8xf32>
      %c6_152 = arith.constant 6 : index
      %c0_153 = arith.constant 0 : index
      %c0_154 = arith.constant 0 : index
      %272 = vector.load %arg13[%c6_152, %c0_153, %c0_154] : memref<8x8x1xf32, #tpu.memory_space<vmem>>, vector<1x8x1xf32>
      %273 = vector.shape_cast %272 : vector<1x8x1xf32> to vector<8x1xf32>
      %274 = tpu.reciprocal %273 {approx = true} : vector<8x1xf32> -> vector<8x1xf32>
      %275 = vector.shape_cast %274 : vector<8x1xf32> to vector<8x1xf32>
      %276 = vector.broadcast %275 : vector<8x1xf32> to vector<8x8xf32>
      %c7_155 = arith.constant 7 : index
      %c0_156 = arith.constant 0 : index
      %c0_157 = arith.constant 0 : index
      %277 = vector.load %arg13[%c7_155, %c0_156, %c0_157] : memref<8x8x1xf32, #tpu.memory_space<vmem>>, vector<1x8x1xf32>
      %278 = vector.shape_cast %277 : vector<1x8x1xf32> to vector<8x1xf32>
      %279 = tpu.reciprocal %278 {approx = true} : vector<8x1xf32> -> vector<8x1xf32>
      %280 = vector.shape_cast %279 : vector<8x1xf32> to vector<8x1xf32>
      %281 = vector.broadcast %280 : vector<8x1xf32> to vector<8x8xf32>
      %282 = tpu.concatenate %246, %251, %256, %261, %266, %271, %276, %281 in 1 : vector<8x8xf32>, vector<8x8xf32>, vector<8x8xf32>, vector<8x8xf32>, vector<8x8xf32>, vector<8x8xf32>, vector<8x8xf32>, vector<8x8xf32> -> vector<8x64xf32>
      %c0_158 = arith.constant 0 : index
      %c0_159 = arith.constant 0 : index
      %283 = vector.load %arg14[%c0_158, %c0_159] : memref<8x64xf32, #tpu.memory_space<vmem>>, vector<8x64xf32>
      %284 = arith.mulf %283, %282 : vector<8x64xf32>
      %c0_160 = arith.constant 0 : index
      %c0_161 = arith.constant 0 : index
      %285 = vector.load %arg8[%c0_160, %c0_161] : memref<64x64xf32, #tpu.memory_space<vmem>>, vector<64x64xf32>
      %cst_162 = arith.constant dense<0.000000e+00> : vector<8x64xf32>
      %286 = tpu.matmul %284, %285, %cst_162 {dimension_numbers = #tpu.dot_dimension_numbers<[1], [0], [0], [1], [0, 0, 1, 1], [], []>} : vector<8x64xf32>, vector<64x64xf32>, vector<8x64xf32> -> vector<8x64xf32>
      %c0_163 = arith.constant 0 : index
      %c0_164 = arith.constant 0 : index
      %287 = vector.load %arg9[%c0_163, %c0_164] : memref<1x64xf32, #tpu.memory_space<vmem>>, vector<1x64xf32>
      %288 = vector.broadcast %287 : vector<1x64xf32> to vector<8x64xf32>
      %289 = arith.addf %286, %288 : vector<8x64xf32>
      %c0_165 = arith.constant 0 : index
      %c0_166 = arith.constant 0 : index
      %c0_167 = arith.constant 0 : index
      %290 = vector.load %arg10[%c0_165, %c0_166, %c0_167] : memref<1x8x64xf32, #tpu.memory_space<vmem>>, vector<1x8x64xf32>
      %291 = vector.shape_cast %290 : vector<1x8x64xf32> to vector<8x64xf32>
      %292 = vector.shape_cast %289 : vector<8x64xf32> to vector<1x8x64xf32>
      tpu.vector_store %arg10[%c0_165, %c0_166, %c0_167], %292 {strides = array<i32>} : memref<1x8x64xf32, #tpu.memory_space<vmem>>, vector<1x8x64xf32>,
    } else {
    }
    return
  }
  func.func @transform_0(%arg0: i32, %arg1: i32, %arg2: i32) -> (i32, i32, i32) {
    %c0_i32 = arith.constant 0 : i32
    %c0_i32_0 = arith.constant 0 : i32
    return %arg0, %arg1, %c0_i32 : i32, i32, i32
  }
  func.func @transform_1(%arg0: i32, %arg1: i32, %arg2: i32) -> (i32, i32, i32) {
    %c0_i32 = arith.constant 0 : i32
    %c0_i32_0 = arith.constant 0 : i32
    return %arg0, %arg2, %c0_i32 : i32, i32, i32
  }
  func.func @transform_2(%arg0: i32, %arg1: i32, %arg2: i32) -> (i32, i32, i32) {
    %c0_i32 = arith.constant 0 : i32
    %c0_i32_0 = arith.constant 0 : i32
    return %arg0, %arg2, %c0_i32 : i32, i32, i32
  }
  func.func @transform_3(%arg0: i32, %arg1: i32, %arg2: i32) -> (i32, i32) {
    %c0_i32 = arith.constant 0 : i32
    %c0_i32_0 = arith.constant 0 : i32
    %c0_i32_1 = arith.constant 0 : i32
    return %c0_i32, %c0_i32_0 : i32, i32
  }
  func.func @transform_4(%arg0: i32, %arg1: i32, %arg2: i32) -> (i32, i32) {
    %c0_i32 = arith.constant 0 : i32
    %c0_i32_0 = arith.constant 0 : i32
    %c0_i32_1 = arith.constant 0 : i32
    return %c0_i32, %c0_i32_0 : i32, i32
  }
  func.func @transform_5(%arg0: i32, %arg1: i32, %arg2: i32) -> (i32, i32) {
    %c0_i32 = arith.constant 0 : i32
    %c0_i32_0 = arith.constant 0 : i32
    %c0_i32_1 = arith.constant 0 : i32
    return %c0_i32, %c0_i32_0 : i32, i32
  }
  func.func @transform_6(%arg0: i32, %arg1: i32, %arg2: i32) -> (i32, i32) {
    %c0_i32 = arith.constant 0 : i32
    %c0_i32_0 = arith.constant 0 : i32
    %c0_i32_1 = arith.constant 0 : i32
    return %c0_i32, %c0_i32_0 : i32, i32
  }
  func.func @transform_7(%arg0: i32, %arg1: i32, %arg2: i32) -> (i32, i32, i32) {
    %c0_i32 = arith.constant 0 : i32
    %c0_i32_0 = arith.constant 0 : i32
    return %arg0, %arg1, %c0_i32 : i32, i32, i32
  }
}

</mosaic_0001>

<llo_original>
// kernel: tpu_custom_call.1
$region0: #{tpu_custom_call.1}
  #allocation0 [shape = 'u32[]', space=smem, size = 0x4, offset = 0x4, fixed_abs, tag = 'smem constant byte address 0x4 - core index']
  #allocation1 [shape = 'u32[144,128]{1,0:T(1,128)}', space=vmem, size = 0x12000, scoped, tag = 'internal scratch']
  #allocation2 [shape = 'f32[8,64]{1,0:T(8,128)}', space=vmem, size = 0x1000, scoped, tag = 'scratch operand']
  #allocation3 [shape = 'f32[8,8,1]{2,1,0:T(8,128)}', space=vmem, size = 0x8000, scoped, tag = 'scratch operand']
  #allocation4 [shape = 'f32[8,8,1]{2,1,0:T(8,128)}', space=vmem, size = 0x8000, scoped, tag = 'scratch operand']
  #allocation5 [shape = 'f32[8,64]{1,0:T(8,128)}', space=vmem, size = 0x1000, scoped, tag = 'scratch operand']
  %s0 = inlined_call_operand.hbm [shape: f32[2,16,64], index: 0, kind: input, shape index: {}]
  %s1 = inlined_call_operand.hbm [shape: f32[2,32,64], index: 1, kind: input, shape index: {}]
  %s2 = inlined_call_operand.hbm [shape: f32[2,32,64], index: 2, kind: input, shape index: {}]
  %s3 = inlined_call_operand.hbm [shape: f32[64,64], index: 3, kind: input, shape index: {}]
  %s4 = inlined_call_operand.vmem [shape: f32[1,64], index: 4, kind: input, shape index: {}]
  %s5 = inlined_call_operand.hbm [shape: f32[64,64], index: 5, kind: input, shape index: {}]
  %s6 = inlined_call_operand.vmem [shape: f32[1,64], index: 6, kind: input, shape index: {}]
  %s7 = inlined_call_operand.hbm [shape: f32[2,16,64], index: 7, kind: output, shape index: {}]
  %s8 = sld [smem:[#allocation0]]
  $region89: #{tpu_custom_call.1} parent=0
    _
  %s10 = ssub.s32 1, %s8
  %s11 = scalar_select 0, %s10, %s8
  $region1: #{tpu_custom_call.1} parent=0
    #allocation6 [shape = 'u8[8192]{0}', space=vmem, size = 0x2000, scoped, tag = 'input window, operand 0']
    #allocation7 [shape = 's32[2]{0}', space=sflag, size = 0x8, scoped, tag = 'scoped memory for tpu_custom_call.1']
    #allocation8 [shape = 's32[2]{0}', space=sflag, size = 0x8, scoped, tag = 'scoped memory for tpu_custom_call.1']
    #allocation9 [shape = 'u8[16384]{0}', space=vmem, size = 0x4000, scoped, tag = 'input window, operand 1']
    #allocation10 [shape = 's32[2]{0}', space=sflag, size = 0x8, scoped, tag = 'scoped memory for tpu_custom_call.1']
    #allocation11 [shape = 'u8[16384]{0}', space=vmem, size = 0x4000, scoped, tag = 'input window, operand 2']
    #allocation12 [shape = 'u8[32768]{0}', space=vmem, size = 0x8000, scoped, tag = 'input window, operand 3, single buffered']
    #allocation13 [shape = 's32[1]{0}', space=sflag, size = 0x4, scoped, tag = 'scoped memory for tpu_custom_call.1']
    #allocation14 [shape = 'u8[32768]{0}', space=vmem, size = 0x8000, scoped, tag = 'input window, operand 5, single buffered']
    #allocation15 [shape = 'u8[8192]{0}', space=vmem, size = 0x2000, scoped, tag = 'output window, operand 0']
    %12 = vsyncpa [#allocation7], 0
    %s13 = scalar_lea.sflag [#allocation7], 1
    %14 = vsyncpa %s13, 0
    %15 = vsyncpa [#allocation10], 0
    %s16 = scalar_lea.sflag [#allocation10], 1
    %17 = vsyncpa %s16, 0
    %18 = vsyncpa [#allocation13], 0
    %19 = vsyncpa [#allocation8], 0
    %s20 = scalar_lea.sflag [#allocation8], 1
    %21 = vsyncpa %s20, 0
    loop: start=0, step=1, limit=10
    $region2: #{tpu_custom_call.1} parent=1 // loop_pre_header
      _
    $region3: #{tpu_custom_call.1} parent=1 // loop_header
      %s23 = sphi 0, %s27
      %p24 = scmp.ge.s32.totalorder %s23, 10
      %s30 = sphi 0, %s49
      %s31 = sphi 0, %s45
      %s32 = sphi 0, %s41
      %s33 = sphi 0, %s30
      %s34 = sphi 0, %s31
      %s35 = sphi 0, %s32
      %s36 = sphi 0, %s33
      %s37 = sphi 0, %s34
      %s38 = sphi 0, %s35
      %s54 = sphi 0, %s56
      %s57 = sphi 0, %s54
      %s58 = sphi 0, %s57
      %s74 = sphi 0, %s58
      %s82 = sphi 0, %s84
      %s85 = sphi 0, %s82
      %s86 = sphi 0, %s85
      %s102 = sphi 0, %s86
      %s110 = sphi 0, %s112
      %s113 = sphi 0, %s110
      %s114 = sphi 0, %s113
      %s130 = sphi 0, %s114
      %s134 = sphi 0, %s134
      %s136 = sphi 0, %s134
      %s137 = sphi 0, %s136
      %s151 = sphi 0, %s137
      %s155 = sphi 0, %s155
      %s157 = sphi 0, %s155
      %s158 = sphi 0, %s157
      %s172 = sphi 0, %s158
      %s176 = sphi 0, %s176
      %s178 = sphi 0, %s176
      %s179 = sphi 0, %s178
      %s193 = sphi 0, %s179
      %s197 = sphi 0, %s197
      %s199 = sphi 0, %s197
      %s200 = sphi 0, %s199
      %s214 = sphi 0, %s200
      %s222 = sphi 0, %s224
      %s225 = sphi 0, %s222
      %s226 = sphi 0, %s225
      %s242 = sphi 0, %s226
    $region4: #{tpu_custom_call.1} parent=1 // loop_header_branch
      %26 = sbr.rel (%p24) target = $region8
    $region5: #{tpu_custom_call.1} parent=1 // loop_body
      %s28 = ssub.s32 %s23, 1
      %s29 = ssub.s32 %s23, 2
      %s39 = sadd.s32 1, %s32
      %p40 = scmp.ge.s32.totalorder %s39, 2
      %s41 = scalar_select %p40, 0, %s39
      %s42 = sadd.s32 1, %s31
      %s43 = scalar_select %p40, %s42, %s31
      %p44 = scmp.ge.s32.totalorder %s43, 2
      %s45 = scalar_select %p44, 0, %s43
      %s46 = sadd.s32 1, %s30
      %s47 = scalar_select %p44, %s46, %s30
      %p48 = scmp.ge.s32.totalorder %s47, 2
      %s49 = scalar_select %p48, 0, %s47
      %s50 = ssub.s32 %s30, %s49
      %s51 = ssub.s32 %s31, %s45
      %s52 = sor.u32 %s50, %s51
      %p53 = scmp.eq.s32.totalorder %s52, 0
      %s55 = sadd.s32 %s54, 1
      %s56 = scalar_select %p53, %s54, %s55
      %p59 = pneg %p53
      %p60 = scmp.eq.s32.totalorder %s23, 7
      %p61 = por %p59, %p60
      %p62 = scmp.ne.s32.totalorder %s54, %s57
      %p63 = scmp.eq.s32.totalorder %s23, 0
      %p64 = por %p62, %p63
      %p65 = scmp.ne.s32.totalorder %s54, %s57
      %p66 = scmp.eq.s32.totalorder %s28, 7
      %p67 = por %p65, %p66
      %p68 = scmp.ne.s32.totalorder %s57, %s58
      %p69 = scmp.eq.s32.totalorder %s28, 0
      %p70 = por %p68, %p69
      %p71 = scmp.ne.s32.totalorder %s57, %s58
      %p72 = scmp.eq.s32.totalorder %s29, 7
      %p73 = por %p71, %p72
      %p75 = scmp.ne.s32.totalorder %s58, %s74
      %p76 = scmp.eq.s32.totalorder %s29, 0
      %p77 = por %p75, %p76
      %s78 = ssub.s32 %s30, %s49
      %s79 = ssub.s32 %s32, %s41
      %s80 = sor.u32 %s78, %s79
      %p81 = scmp.eq.s32.totalorder %s80, 0
      %s83 = sadd.s32 %s82, 1
      %s84 = scalar_select %p81, %s82, %s83
      %p87 = pneg %p81
      %p88 = scmp.eq.s32.totalorder %s23, 7
      %p89 = por %p87, %p88
      %p90 = scmp.ne.s32.totalorder %s82, %s85
      %p91 = scmp.eq.s32.totalorder %s23, 0
      %p92 = por %p90, %p91
      %p93 = scmp.ne.s32.totalorder %s82, %s85
      %p94 = scmp.eq.s32.totalorder %s28, 7
      %p95 = por %p93, %p94
      %p96 = scmp.ne.s32.totalorder %s85, %s86
      %p97 = scmp.eq.s32.totalorder %s28, 0
      %p98 = por %p96, %p97
      %p99 = scmp.ne.s32.totalorder %s85, %s86
      %p100 = scmp.eq.s32.totalorder %s29, 7
      %p101 = por %p99, %p100
      %p103 = scmp.ne.s32.totalorder %s86, %s102
      %p104 = scmp.eq.s32.totalorder %s29, 0
      %p105 = por %p103, %p104
      %s106 = ssub.s32 %s30, %s49
      %s107 = ssub.s32 %s32, %s41
      %s108 = sor.u32 %s106, %s107
      %p109 = scmp.eq.s32.totalorder %s108, 0
      %s111 = sadd.s32 %s110, 1
      %s112 = scalar_select %p109, %s110, %s111
      %p115 = pneg %p109
      %p116 = scmp.eq.s32.totalorder %s23, 7
      %p117 = por %p115, %p116
      %p118 = scmp.ne.s32.totalorder %s110, %s113
      %p119 = scmp.eq.s32.totalorder %s23, 0
      %p120 = por %p118, %p119
      %p121 = scmp.ne.s32.totalorder %s110, %s113
      %p122 = scmp.eq.s32.totalorder %s28, 7
      %p123 = por %p121, %p122
      %p124 = scmp.ne.s32.totalorder %s113, %s114
      %p125 = scmp.eq.s32.totalorder %s28, 0
      %p126 = por %p124, %p125
      %p127 = scmp.ne.s32.totalorder %s113, %s114
      %p128 = scmp.eq.s32.totalorder %s29, 7
      %p129 = por %p127, %p128
      %p131 = scmp.ne.s32.totalorder %s114, %s130
      %p132 = scmp.eq.s32.totalorder %s29, 0
      %p133 = por %p131, %p132
      %s135 = sadd.s32 %s134, 1
      %p138 = scmp.eq.s32.totalorder %s23, 7
      %p139 = scmp.ne.s32.totalorder %s134, %s136
      %p140 = scmp.eq.s32.totalorder %s23, 0
      %p141 = por %p139, %p140
      %p142 = scmp.ne.s32.totalorder %s134, %s136
      %p143 = scmp.eq.s32.totalorder %s28, 7
      %p144 = por %p142, %p143
      %p145 = scmp.ne.s32.totalorder %s136, %s137
      %p146 = scmp.eq.s32.totalorder %s28, 0
      %p147 = por %p145, %p146
      %p148 = scmp.ne.s32.totalorder %s136, %s137
      %p149 = scmp.eq.s32.totalorder %s29, 7
      %p150 = por %p148, %p149
      %p152 = scmp.ne.s32.totalorder %s137, %s151
      %p153 = scmp.eq.s32.totalorder %s29, 0
      %p154 = por %p152, %p153
      %s156 = sadd.s32 %s155, 1
      %p159 = scmp.eq.s32.totalorder %s23, 7
      %p160 = scmp.ne.s32.totalorder %s155, %s157
      %p161 = scmp.eq.s32.totalorder %s23, 0
      %p162 = por %p160, %p161
      %p163 = scmp.ne.s32.totalorder %s155, %s157
      %p164 = scmp.eq.s32.totalorder %s28, 7
      %p165 = por %p163, %p164
      %p166 = scmp.ne.s32.totalorder %s157, %s158
      %p167 = scmp.eq.s32.totalorder %s28, 0
      %p168 = por %p166, %p167
      %p169 = scmp.ne.s32.totalorder %s157, %s158
      %p170 = scmp.eq.s32.totalorder %s29, 7
      %p171 = por %p169, %p170
      %p173 = scmp.ne.s32.totalorder %s158, %s172
      %p174 = scmp.eq.s32.totalorder %s29, 0
      %p175 = por %p173, %p174
      %s177 = sadd.s32 %s176, 1
      %p180 = scmp.eq.s32.totalorder %s23, 7
      %p181 = scmp.ne.s32.totalorder %s176, %s178
      %p182 = scmp.eq.s32.totalorder %s23, 0
      %p183 = por %p181, %p182
      %p184 = scmp.ne.s32.totalorder %s176, %s178
      %p185 = scmp.eq.s32.totalorder %s28, 7
      %p186 = por %p184, %p185
      %p187 = scmp.ne.s32.totalorder %s178, %s179
      %p188 = scmp.eq.s32.totalorder %s28, 0
      %p189 = por %p187, %p188
      %p190 = scmp.ne.s32.totalorder %s178, %s179
      %p191 = scmp.eq.s32.totalorder %s29, 7
      %p192 = por %p190, %p191
      %p194 = scmp.ne.s32.totalorder %s179, %s193
      %p195 = scmp.eq.s32.totalorder %s29, 0
      %p196 = por %p194, %p195
      %s198 = sadd.s32 %s197, 1
      %p201 = scmp.eq.s32.totalorder %s23, 7
      %p202 = scmp.ne.s32.totalorder %s197, %s199
      %p203 = scmp.eq.s32.totalorder %s23, 0
      %p204 = por %p202, %p203
      %p205 = scmp.ne.s32.totalorder %s197, %s199
      %p206 = scmp.eq.s32.totalorder %s28, 7
      %p207 = por %p205, %p206
      %p208 = scmp.ne.s32.totalorder %s199, %s200
      %p209 = scmp.eq.s32.totalorder %s28, 0
      %p210 = por %p208, %p209
      %p211 = scmp.ne.s32.totalorder %s199, %s200
      %p212 = scmp.eq.s32.totalorder %s29, 7
      %p213 = por %p211, %p212
      %p215 = scmp.ne.s32.totalorder %s200, %s214
      %p216 = scmp.eq.s32.totalorder %s29, 0
      %p217 = por %p215, %p216
      %s218 = ssub.s32 %s30, %s49
      %s219 = ssub.s32 %s31, %s45
      %s220 = sor.u32 %s218, %s219
      %p221 = scmp.eq.s32.totalorder %s220, 0
      %s223 = sadd.s32 %s222, 1
      %s224 = scalar_select %p221, %s222, %s223
      %p227 = pneg %p221
      %p228 = scmp.eq.s32.totalorder %s23, 7
      %p229 = por %p227, %p228
      %p230 = scmp.ne.s32.totalorder %s222, %s225
      %p231 = scmp.eq.s32.totalorder %s23, 0
      %p232 = por %p230, %p231
      %p233 = scmp.ne.s32.totalorder %s222, %s225
      %p234 = scmp.eq.s32.totalorder %s28, 7
      %p235 = por %p233, %p234
      %p236 = scmp.ne.s32.totalorder %s225, %s226
      %p237 = scmp.eq.s32.totalorder %s28, 0
      %p238 = por %p236, %p237
      %p239 = scmp.ne.s32.totalorder %s225, %s226
      %p240 = scmp.eq.s32.totalorder %s29, 7
      %p241 = por %p239, %p240
      %p243 = scmp.ne.s32.totalorder %s226, %s242
      %p244 = scmp.eq.s32.totalorder %s29, 0
      %p245 = por %p243, %p244
      %p246 = scmp.le.s32.totalorder 1, %s23
      %p247 = scmp.lt.s32.totalorder %s23, 9
      %p248 = pnand %p246, %p247
      %p249 = pneg %p248
      // Predicated region
      $region9: #{tpu_custom_call.1} parent=5 // pred_check
        _
      $region10: #{tpu_custom_call.1} parent=5 // pred_check_branch
        %251 = sbr.rel (%p248) target = $region12
      $region11: #{tpu_custom_call.1} parent=5 // pred_region
        %s252 = ssub.s32 %s23, 1
        // Predicated region
        $region13: #{tpu_custom_call.1} parent=11 // pred_check
          %p253 = pneg %p147
        $region14: #{tpu_custom_call.1} parent=11 // pred_check_branch
          %255 = sbr.rel (%p253) target = $region16
        $region15: #{tpu_custom_call.1} parent=11 // pred_region
          %s257 = ssub.s32 1024, 1024
          %258 = vsyncadd [#allocation13], %s257
          %s259 = sshll.u32 [#allocation12], 4
          %s260 = int_to_ptr.vmem [resolvable:$true] %s259
          %265 = dma.hbm_to_vmem [thread:$0]  %s3, 1024, %s260, [#allocation13], 128, 128, 8
        $region16: #{tpu_custom_call.1} parent=11 // pred_fallthru
          _
        // Predicated region
        $region17: #{tpu_custom_call.1} parent=11 // pred_check
          %p266 = pneg %p168
        $region18: #{tpu_custom_call.1} parent=11 // pred_check_branch
          %268 = sbr.rel (%p266) target = $region20
        $region19: #{tpu_custom_call.1} parent=11 // pred_region
          _
        $region20: #{tpu_custom_call.1} parent=11 // pred_fallthru
          _
        // Predicated region
        $region21: #{tpu_custom_call.1} parent=11 // pred_check
          %p269 = pneg %p189
        $region22: #{tpu_custom_call.1} parent=11 // pred_check_branch
          %271 = sbr.rel (%p269) target = $region24
        $region23: #{tpu_custom_call.1} parent=11 // pred_region
          %s273 = ssub.s32 1024, 1024
          %274 = vsyncadd [#allocation13], %s273
          %s275 = sshll.u32 [#allocation14], 4
          %s276 = int_to_ptr.vmem [resolvable:$true] %s275
          %281 = dma.hbm_to_vmem [thread:$0]  %s5, 1024, %s276, [#allocation13], 128, 128, 8
        $region24: #{tpu_custom_call.1} parent=11 // pred_fallthru
          _
        // Predicated region
        $region25: #{tpu_custom_call.1} parent=11 // pred_check
          %p282 = pneg %p210
        $region26: #{tpu_custom_call.1} parent=11 // pred_check_branch
          %284 = sbr.rel (%p282) target = $region28
        $region27: #{tpu_custom_call.1} parent=11 // pred_region
          _
        $region28: #{tpu_custom_call.1} parent=11 // pred_fallthru
          _
      $region12: #{tpu_custom_call.1} parent=5 // pred_fallthru
        _
      %p285 = scmp.lt.s32.totalorder %s23, 8
      // Predicated region
      $region29: #{tpu_custom_call.1} parent=5 // pred_check
        %p286 = pneg %p285
      $region30: #{tpu_custom_call.1} parent=5 // pred_check_branch
        %288 = sbr.rel (%p286) target = $region32
      $region31: #{tpu_custom_call.1} parent=5 // pred_region
        // Predicated region
        $region33: #{tpu_custom_call.1} parent=31 // pred_check
          %p289 = pneg %p64
        $region34: #{tpu_custom_call.1} parent=31 // pred_check_branch
          %291 = sbr.rel (%p289) target = $region36
        $region35: #{tpu_custom_call.1} parent=31 // pred_region
          %s292 = sand.u32 %s54, 1
          %s293 = scalar_lea.sflag [#allocation7], %s292
          %s294 = sand.u32 %s54, 1
          %s295 = smul.addr %s294, 8
          %s296 = scalar_lea.vmem [#allocation6], %s295
          %s298 = ssub.s32 128, 128
          %299 = vsyncadd %s293, %s298
          %s300 = smul.addr %s30, 2
          %s301 = sadd.s32 %s31, %s300
          %s302 = smul.addr %s301, 128
          %s303 = scalar_lea.hbm %s0, %s302
          %s305 = sshll.u32 %s296, 4
          %s306 = int_to_ptr.vmem [resolvable:$true] %s305
          %308 = dma.hbm_to_vmem [thread:$0]  %s303, 128, %s306, %s293
        $region36: #{tpu_custom_call.1} parent=31 // pred_fallthru
          _
        // Predicated region
        $region37: #{tpu_custom_call.1} parent=31 // pred_check
          %p309 = pneg %p92
        $region38: #{tpu_custom_call.1} parent=31 // pred_check_branch
          %311 = sbr.rel (%p309) target = $region40
        $region39: #{tpu_custom_call.1} parent=31 // pred_region
          %s312 = sand.u32 %s23, 1
          %s313 = scalar_lea.sflag [#allocation10], %s312
          %s314 = sand.u32 %s82, 1
          %s315 = smul.addr %s314, 16
          %s316 = scalar_lea.vmem [#allocation9], %s315
          %s317 = smul.u32 2, %s32
          %s319 = ssub.s32 256, 256
          %320 = vsyncadd %s313, %s319
          %s321 = smul.addr %s30, 4
          %s322 = sadd.s32 %s317, %s321
          %s323 = smul.addr %s322, 128
          %s324 = scalar_lea.hbm %s1, %s323
          %s325 = sshll.u32 %s316, 4
          %s326 = int_to_ptr.vmem [resolvable:$true] %s325
          %331 = dma.hbm_to_vmem [thread:$0]  %s324, 256, %s326, %s313, 128, 128, 8
        $region40: #{tpu_custom_call.1} parent=31 // pred_fallthru
          _
        // Predicated region
        $region41: #{tpu_custom_call.1} parent=31 // pred_check
          %p332 = pneg %p120
        $region42: #{tpu_custom_call.1} parent=31 // pred_check_branch
          %334 = sbr.rel (%p332) target = $region44
        $region43: #{tpu_custom_call.1} parent=31 // pred_region
          %s335 = sand.u32 %s23, 1
          %s336 = scalar_lea.sflag [#allocation10], %s335
          %s337 = sand.u32 %s110, 1
          %s338 = smul.addr %s337, 16
          %s339 = scalar_lea.vmem [#allocation11], %s338
          %s340 = smul.u32 2, %s32
          %s342 = ssub.s32 256, 256
          %343 = vsyncadd %s336, %s342
          %s344 = smul.addr %s30, 4
          %s345 = sadd.s32 %s340, %s344
          %s346 = smul.addr %s345, 128
          %s347 = scalar_lea.hbm %s2, %s346
          %s348 = sshll.u32 %s339, 4
          %s349 = int_to_ptr.vmem [resolvable:$true] %s348
          %354 = dma.hbm_to_vmem [thread:$0]  %s347, 256, %s349, %s336, 128, 128, 8
        $region44: #{tpu_custom_call.1} parent=31 // pred_fallthru
          _
      $region32: #{tpu_custom_call.1} parent=5 // pred_fallthru
        _
      %p355 = scmp.le.s32.totalorder 1, %s23
      %p356 = scmp.lt.s32.totalorder %s23, 9
      %p357 = pnand %p355, %p356
      %p358 = pneg %p357
      // Predicated region
      $region45: #{tpu_custom_call.1} parent=5 // pred_check
        _
      $region46: #{tpu_custom_call.1} parent=5 // pred_check_branch
        %360 = sbr.rel (%p357) target = $region48
      $region47: #{tpu_custom_call.1} parent=5 // pred_region
        %s361 = ssub.s32 %s23, 1
        %s362 = sand.u32 %s57, 1
        %s363 = scalar_lea.sflag [#allocation7], %s362
        %s364 = sand.u32 %s57, 1
        %s365 = smul.addr %s364, 8
        %s366 = scalar_lea.vmem [#allocation6], %s365
        // Predicated region
        $region49: #{tpu_custom_call.1} parent=47 // pred_check
          %p367 = pneg %p70
        $region50: #{tpu_custom_call.1} parent=47 // pred_check_branch
          %369 = sbr.rel (%p367) target = $region52
        $region51: #{tpu_custom_call.1} parent=47 // pred_region
          %370 = dma.done %s363, 128
        $region52: #{tpu_custom_call.1} parent=47 // pred_fallthru
          _
        %s371 = sand.u32 %s28, 1
        %s372 = scalar_lea.sflag [#allocation10], %s371
        %s373 = sand.u32 %s85, 1
        %s374 = smul.addr %s373, 16
        %s375 = scalar_lea.vmem [#allocation9], %s374
        // Predicated region
        $region53: #{tpu_custom_call.1} parent=47 // pred_check
          %p376 = pneg %p98
        $region54: #{tpu_custom_call.1} parent=47 // pred_check_branch
          %378 = sbr.rel (%p376) target = $region56
        $region55: #{tpu_custom_call.1} parent=47 // pred_region
          %379 = dma.done %s372, 256
        $region56: #{tpu_custom_call.1} parent=47 // pred_fallthru
          _
        %s380 = sand.u32 %s28, 1
        %s381 = scalar_lea.sflag [#allocation10], %s380
        %s382 = sand.u32 %s113, 1
        %s383 = smul.addr %s382, 16
        %s384 = scalar_lea.vmem [#allocation11], %s383
        // Predicated region
        $region57: #{tpu_custom_call.1} parent=47 // pred_check
          %p385 = pneg %p126
        $region58: #{tpu_custom_call.1} parent=47 // pred_check_branch
          %387 = sbr.rel (%p385) target = $region60
        $region59: #{tpu_custom_call.1} parent=47 // pred_region
          %388 = dma.done %s381, 256
        $region60: #{tpu_custom_call.1} parent=47 // pred_fallthru
          _
        // Predicated region
        $region61: #{tpu_custom_call.1} parent=47 // pred_check
          %p389 = pneg %p147
        $region62: #{tpu_custom_call.1} parent=47 // pred_check_branch
          %391 = sbr.rel (%p389) target = $region64
        $region63: #{tpu_custom_call.1} parent=47 // pred_region
          %392 = dma.done [#allocation13], 1024
        $region64: #{tpu_custom_call.1} parent=47 // pred_fallthru
          _
        // Predicated region
        $region65: #{tpu_custom_call.1} parent=47 // pred_check
          %p393 = pneg %p189
        $region66: #{tpu_custom_call.1} parent=47 // pred_check_branch
          %395 = sbr.rel (%p393) target = $region68
        $region67: #{tpu_custom_call.1} parent=47 // pred_region
          %396 = dma.done [#allocation13], 1024
        $region68: #{tpu_custom_call.1} parent=47 // pred_fallthru
          _
        %s397 = sand.u32 %s57, 1
        %s398 = scalar_lea.sflag [#allocation7], %s397
        %s399 = sand.u32 %s57, 1
        %s400 = smul.addr %s399, 8
        %s401 = scalar_lea.vmem [#allocation6], %s400
        %p402 = pneg %p70
        %p403 = pneg %p67
        %s404 = sand.u32 %s28, 1
        %s405 = scalar_lea.sflag [#allocation10], %s404
        %s406 = sand.u32 %s85, 1
        %s407 = smul.addr %s406, 16
        %s408 = scalar_lea.vmem [#allocation9], %s407
        %p409 = pneg %p98
        %p410 = pneg %p95
        %s411 = sand.u32 %s28, 1
        %s412 = scalar_lea.sflag [#allocation10], %s411
        %s413 = sand.u32 %s113, 1
        %s414 = smul.addr %s413, 16
        %s415 = scalar_lea.vmem [#allocation11], %s414
        %p416 = pneg %p126
        %p417 = pneg %p123
        %p418 = pneg %p147
        %p419 = pneg %p144
        %p420 = pneg %p168
        %p421 = pneg %p165
        %p422 = pneg %p189
        %p423 = pneg %p186
        %p424 = pneg %p210
        %p425 = pneg %p207
        %p426 = pneg %p238
        %p427 = pneg %p235
        %s428 = sand.u32 %s225, 1
        %s429 = scalar_lea.sflag [#allocation8], %s428
        %s430 = sand.u32 %s225, 1
        %s431 = smul.addr %s430, 8
        %s432 = scalar_lea.vmem [#allocation15], %s431
        %s433 = smul.u32 2, %s35
        %s434 = smul.u32 2, %s35
        %p435 = scmp.eq.s32.totalorder %s35, 0
        // Predicated region
        $region69: #{tpu_custom_call.1} parent=47 // pred_check
          %p436 = pneg %p435
        $region70: #{tpu_custom_call.1} parent=47 // pred_check_branch
          %438 = sbr.rel (%p436) target = $region72
        $region71: #{tpu_custom_call.1} parent=47 // pred_region
          %v439 = vld [vmem:[%s366] sm:$0xff]
          %v440 = vld [vmem:[#allocation12] sm:$0xff]
          %v441 = vld [vmem:[#allocation12 + $0x8] sm:$0xff]
          %v442 = vld [vmem:[#allocation12 + $0x10] sm:$0xff]
          %v443 = vld [vmem:[#allocation12 + $0x18] sm:$0xff]
          %v444 = vld [vmem:[#allocation12 + $0x20] sm:$0xff]
          %v445 = vld [vmem:[#allocation12 + $0x28] sm:$0xff]
          %v446 = vld [vmem:[#allocation12 + $0x30] sm:$0xff]
          %v447 = vld [vmem:[#allocation12 + $0x38] sm:$0xff]
          %v448 = vld [vmem:[%s4] sm:$0x1]
          %v450 = vlaneseq
          %v451 = vshrl.u32 %v450, 7
          %v452 = vsub.s32 0, %v451
          %v453 = vrot.slane %v448, %v452
          %vm455 = vcmask 523264
          %v457 = vsel %vm455, %v439, 0
          %459 = vmatprep.subr.mxu0 0.0
          %460 = vmatpush1.msra.mxu0 0.0
          %461 = vmatprep.subr.mxu0 0.0
          %462 = vmatpush1.msra.mxu0 0.0
          %463 = vmatprep.subr.mxu0 0.0
          %464 = vmatpush1.msra.mxu0 0.0
          %465 = vmatprep.subr.mxu0 0.0
          %466 = vmatpush1.msra.mxu0 0.0
          %467 = vmatprep.subr.mxu0 0.0
          %468 = vmatpush1.msra.mxu0 0.0
          %469 = vmatprep.subr.mxu0 0.0
          %470 = vmatpush1.msra.mxu0 0.0
          %471 = vmatprep.subr.mxu0 0.0
          %472 = vmatpush1.msra.mxu0 0.0
          %473 = vmatprep.subr.mxu0 0.0
          %474 = vmatpush1.msra.mxu0 0.0
          %475 = vmatprep.subr.mxu0 0.0
          %476 = vmatpush1.msra.mxu0 %v447
          %477 = vmatprep.subr.mxu0 0.0
          %478 = vmatpush1.msra.mxu0 %v446
          %479 = vmatprep.subr.mxu0 0.0
          %480 = vmatpush1.msra.mxu0 %v445
          %481 = vmatprep.subr.mxu0 0.0
          %482 = vmatpush1.msra.mxu0 %v444
          %483 = vmatprep.subr.mxu0 0.0
          %484 = vmatpush1.msra.mxu0 %v443
          %485 = vmatprep.subr.mxu0 0.0
          %486 = vmatpush1.msra.mxu0 %v442
          %487 = vmatprep.subr.mxu0 0.0
          %488 = vmatpush1.msra.mxu0 %v441
          %489 = vmatprep.subr.mxu0 0.0
          %490 = vmatpush1.msra.mxu0 %v440
          %491 = vmatprep.subr.mxu0 0.0
          %492 = vmatpush2.msra.mxu0 0.0
          %493 = vmatprep.subr.mxu0 0.0
          %494 = vmatpush2.msra.mxu0 0.0
          %495 = vmatprep.subr.mxu0 0.0
          %496 = vmatpush2.msra.mxu0 0.0
          %497 = vmatprep.subr.mxu0 0.0
          %498 = vmatpush2.msra.mxu0 0.0
          %499 = vmatprep.subr.mxu0 0.0
          %500 = vmatpush2.msra.mxu0 0.0
          %501 = vmatprep.subr.mxu0 0.0
          %502 = vmatpush2.msra.mxu0 0.0
          %503 = vmatprep.subr.mxu0 0.0
          %504 = vmatpush2.msra.mxu0 0.0
          %505 = vmatprep.subr.mxu0 0.0
          %506 = vmatpush2.msra.mxu0 0.0
          %507 = vmatprep.subr.mxu0 0.0
          %508 = vmatpush2.msra.mxu0 0.0
          %509 = vmatprep.subr.mxu0 0.0
          %510 = vmatpush2.msra.mxu0 0.0
          %511 = vmatprep.subr.mxu0 0.0
          %512 = vmatpush2.msra.mxu0 0.0
          %513 = vmatprep.subr.mxu0 0.0
          %514 = vmatpush2.msra.mxu0 0.0
          %515 = vmatprep.subr.mxu0 0.0
          %516 = vmatpush2.msra.mxu0 0.0
          %517 = vmatprep.subr.mxu0 0.0
          %518 = vmatpush2.msra.mxu0 0.0
          %519 = vmatprep.subr.mxu0 0.0
          %520 = vmatpush2.msra.mxu0 0.0
          %521 = vmatprep.subr.mxu0 0.0
          %522 = vmatpush2.msra.mxu0 0.0
          %523 = vmatprep.mubr.f32.mxu0 0.0
          %524 = vmatmul.mubr.f32.gmra.mxu0 %v457
          %v525 = vpop.f32.mrf.mxu0
          %v526 = vadd.f32 %v453, %v525
          %v527 = vpop.f32.mrf.mxu0
          %528 = vdwg.mxu0
          %v529 = vmul.f32 %v526, 0.35355338
          %530 = vst.msk [vmem:[#allocation2] sm:$0xff] %vm455, %v529
          %vm531 = vcmask 7168
          %532 = vst.msk [vmem:[#allocation3] sm:$0xff] %vm531, -inf
          %533 = vst.msk [vmem:[#allocation3 + $0x8] sm:$0xff] %vm531, -inf
          %534 = vst.msk [vmem:[#allocation3 + $0x10] sm:$0xff] %vm531, -inf
          %535 = vst.msk [vmem:[#allocation3 + $0x18] sm:$0xff] %vm531, -inf
          %536 = vst.msk [vmem:[#allocation3 + $0x20] sm:$0xff] %vm531, -inf
          %537 = vst.msk [vmem:[#allocation3 + $0x28] sm:$0xff] %vm531, -inf
          %538 = vst.msk [vmem:[#allocation3 + $0x30] sm:$0xff] %vm531, -inf
          %539 = vst.msk [vmem:[#allocation3 + $0x38] sm:$0xff] %vm531, -inf
          %540 = vst.msk [vmem:[#allocation4] sm:$0xff] %vm531, 0.0
          %541 = vst.msk [vmem:[#allocation4 + $0x8] sm:$0xff] %vm531, 0.0
          %542 = vst.msk [vmem:[#allocation4 + $0x10] sm:$0xff] %vm531, 0.0
          %543 = vst.msk [vmem:[#allocation4 + $0x18] sm:$0xff] %vm531, 0.0
          %544 = vst.msk [vmem:[#allocation4 + $0x20] sm:$0xff] %vm531, 0.0
          %545 = vst.msk [vmem:[#allocation4 + $0x28] sm:$0xff] %vm531, 0.0
          %546 = vst.msk [vmem:[#allocation4 + $0x30] sm:$0xff] %vm531, 0.0
          %547 = vst.msk [vmem:[#allocation4 + $0x38] sm:$0xff] %vm531, 0.0
          %548 = vst.msk [vmem:[#allocation5] sm:$0xff] %vm455, 0.0
        $region72: #{tpu_custom_call.1} parent=47 // pred_fallthru
          _
        %v549 = vld [vmem:[#allocation2] sm:$0xff]
        %v550 = vld [vmem:[%s375] sm:$0xff]
        %v551 = vld [vmem:[%s375 + $0x8] sm:$0xff]
        %v552 = vld [vmem:[%s384] sm:$0xff]
        %v553 = vld [vmem:[%s384 + $0x8] sm:$0xff]
        %vm554 = vcmask 64512
        %v556 = vsel %vm554, %v549, 0
        %v559 = vsel %vm554, %v550, 0
        %v562 = vsel %vm554, %v551, 0
        %564 = vmatprep.subr.mxu0 0.0
        %565 = vmatpush1.xpose.msra.mxu0 0.0
        %566 = vmatprep.subr.mxu0 0.0
        %567 = vmatpush1.xpose.msra.mxu0 0.0
        %568 = vmatprep.subr.mxu0 0.0
        %569 = vmatpush1.xpose.msra.mxu0 0.0
        %570 = vmatprep.subr.mxu0 0.0
        %571 = vmatpush1.xpose.msra.mxu0 0.0
        %572 = vmatprep.subr.mxu0 0.0
        %573 = vmatpush1.xpose.msra.mxu0 0.0
        %574 = vmatprep.subr.mxu0 0.0
        %575 = vmatpush1.xpose.msra.mxu0 0.0
        %576 = vmatprep.subr.mxu0 0.0
        %577 = vmatpush1.xpose.msra.mxu0 0.0
        %578 = vmatprep.subr.mxu0 0.0
        %579 = vmatpush1.xpose.msra.mxu0 0.0
        %580 = vmatprep.subr.mxu0 0.0
        %581 = vmatpush1.xpose.msra.mxu0 0.0
        %582 = vmatprep.subr.mxu0 0.0
        %583 = vmatpush1.xpose.msra.mxu0 0.0
        %584 = vmatprep.subr.mxu0 0.0
        %585 = vmatpush1.xpose.msra.mxu0 0.0
        %586 = vmatprep.subr.mxu0 0.0
        %587 = vmatpush1.xpose.msra.mxu0 0.0
        %588 = vmatprep.subr.mxu0 0.0
        %589 = vmatpush1.xpose.msra.mxu0 0.0
        %590 = vmatprep.subr.mxu0 0.0
        %591 = vmatpush1.xpose.msra.mxu0 0.0
        %592 = vmatprep.subr.mxu0 0.0
        %593 = vmatpush1.xpose.msra.mxu0 %v562
        %594 = vmatprep.subr.mxu0 0.0
        %595 = vmatpush1.xpose.msra.mxu0 %v559
        %596 = vmatprep.subr.mxu0 0.0
        %597 = vmatpush2.xpose.msra.mxu0 0.0
        %598 = vmatprep.subr.mxu0 0.0
        %599 = vmatpush2.xpose.msra.mxu0 0.0
        %600 = vmatprep.subr.mxu0 0.0
        %601 = vmatpush2.xpose.msra.mxu0 0.0
        %602 = vmatprep.subr.mxu0 0.0
        %603 = vmatpush2.xpose.msra.mxu0 0.0
        %604 = vmatprep.subr.mxu0 0.0
        %605 = vmatpush2.xpose.msra.mxu0 0.0
        %606 = vmatprep.subr.mxu0 0.0
        %607 = vmatpush2.xpose.msra.mxu0 0.0
        %608 = vmatprep.subr.mxu0 0.0
        %609 = vmatpush2.xpose.msra.mxu0 0.0
        %610 = vmatprep.subr.mxu0 0.0
        %611 = vmatpush2.xpose.msra.mxu0 0.0
        %612 = vmatprep.subr.mxu0 0.0
        %613 = vmatpush2.xpose.msra.mxu0 0.0
        %614 = vmatprep.subr.mxu0 0.0
        %615 = vmatpush2.xpose.msra.mxu0 0.0
        %616 = vmatprep.subr.mxu0 0.0
        %617 = vmatpush2.xpose.msra.mxu0 0.0
        %618 = vmatprep.subr.mxu0 0.0
        %619 = vmatpush2.xpose.msra.mxu0 0.0
        %620 = vmatprep.subr.mxu0 0.0
        %621 = vmatpush2.xpose.msra.mxu0 0.0
        %622 = vmatprep.subr.mxu0 0.0
        %623 = vmatpush2.xpose.msra.mxu0 0.0
        %624 = vmatprep.subr.mxu0 0.0
        %625 = vmatpush2.xpose.msra.mxu0 0.0
        %626 = vmatprep.subr.mxu0 0.0
        %627 = vmatpush2.xpose.msra.mxu0 0.0
        %628 = vmatprep.mubr.f32.mxu0 0.0
        %629 = vmatmul.mubr.f32.gmra.mxu0 %v556
        %v630 = vpop.f32.mrf.mxu0
        %v631 = vadd.f32 0.0, %v630
        %v632 = vpop.f32.mrf.mxu0
        %633 = vdwg.mxu0
        %v634 = vld [vmem:[#allocation3] sm:$0xff]
        %v635 = vld [vmem:[#allocation4] sm:$0xff]
        %vm636 = vcmask 130048
        %v637 = vsel %vm636, %v631, -inf
        %638 = vmax.xlane.f32.xlu0 %v637
        %v639 = vpop.xlane.xlu0 %638
        %v640 = vmax.f32 %v634, %v639
        %v641 = vsub.f32 %v634, %v640
        %v642 = vmul.f32 %v641, 1.442695
        %v643 = vpow.pop %v642
        %645 = vset.pattern.permute.xlu0 0
        %646 = vperm.xlu0 %645, %v640
        %v647 = vpop.permute.xlu0 %646
        %v649 = vsub.f32 %v631, %v647
        %v650 = vmul.f32 %v649, 1.442695
        %v651 = vpow.pop %v650
        %v653 = vsel %vm636, %v651, 0
        %655 = vmatprep.subr.mxu0 0.0
        %656 = vmatpush1.msra.mxu0 0.0
        %657 = vmatprep.subr.mxu0 0.0
        %658 = vmatpush1.msra.mxu0 0.0
        %659 = vmatprep.subr.mxu0 0.0
        %660 = vmatpush1.msra.mxu0 0.0
        %661 = vmatprep.subr.mxu0 0.0
        %662 = vmatpush1.msra.mxu0 0.0
        %663 = vmatprep.subr.mxu0 0.0
        %664 = vmatpush1.msra.mxu0 0.0
        %665 = vmatprep.subr.mxu0 0.0
        %666 = vmatpush1.msra.mxu0 0.0
        %667 = vmatprep.subr.mxu0 0.0
        %668 = vmatpush1.msra.mxu0 0.0
        %669 = vmatprep.subr.mxu0 0.0
        %670 = vmatpush1.msra.mxu0 0.0
        %671 = vmatprep.subr.mxu0 0.0
        %672 = vmatpush1.msra.mxu0 0.0
        %673 = vmatprep.subr.mxu0 0.0
        %674 = vmatpush1.msra.mxu0 0.0
        %675 = vmatprep.subr.mxu0 0.0
        %676 = vmatpush1.msra.mxu0 0.0
        %677 = vmatprep.subr.mxu0 0.0
        %678 = vmatpush1.msra.mxu0 0.0
        %679 = vmatprep.subr.mxu0 0.0
        %680 = vmatpush1.msra.mxu0 0.0
        %681 = vmatprep.subr.mxu0 0.0
        %682 = vmatpush1.msra.mxu0 0.0
        %683 = vmatprep.subr.mxu0 0.0
        %684 = vmatpush1.msra.mxu0 1.0
        %685 = vmatprep.subr.mxu0 0.0
        %686 = vmatpush1.msra.mxu0 1.0
        %687 = vmatprep.subr.mxu0 0.0
        %688 = vmatpush2.msra.mxu0 0.0
        %689 = vmatprep.subr.mxu0 0.0
        %690 = vmatpush2.msra.mxu0 0.0
        %691 = vmatprep.subr.mxu0 0.0
        %692 = vmatpush2.msra.mxu0 0.0
        %693 = vmatprep.subr.mxu0 0.0
        %694 = vmatpush2.msra.mxu0 0.0
        %695 = vmatprep.subr.mxu0 0.0
        %696 = vmatpush2.msra.mxu0 0.0
        %697 = vmatprep.subr.mxu0 0.0
        %698 = vmatpush2.msra.mxu0 0.0
        %699 = vmatprep.subr.mxu0 0.0
        %700 = vmatpush2.msra.mxu0 0.0
        %701 = vmatprep.subr.mxu0 0.0
        %702 = vmatpush2.msra.mxu0 0.0
        %703 = vmatprep.subr.mxu0 0.0
        %704 = vmatpush2.msra.mxu0 0.0
        %705 = vmatprep.subr.mxu0 0.0
        %706 = vmatpush2.msra.mxu0 0.0
        %707 = vmatprep.subr.mxu0 0.0
        %708 = vmatpush2.msra.mxu0 0.0
        %709 = vmatprep.subr.mxu0 0.0
        %710 = vmatpush2.msra.mxu0 0.0
        %711 = vmatprep.subr.mxu0 0.0
        %712 = vmatpush2.msra.mxu0 0.0
        %713 = vmatprep.subr.mxu0 0.0
        %714 = vmatpush2.msra.mxu0 0.0
        %715 = vmatprep.subr.mxu0 0.0
        %716 = vmatpush2.msra.mxu0 0.0
        %717 = vmatprep.subr.mxu0 0.0
        %718 = vmatpush2.msra.mxu0 0.0
        %719 = vmatprep.mubr.f32.mxu0 0.0
        %720 = vmatmul.mubr.f32.gmra.mxu0 %v653
        %v721 = vpop.f32.mrf.mxu0
        %v722 = vadd.f32 0.0, %v721
        %v723 = vpop.f32.mrf.mxu0
        %724 = vdwg.mxu0
        %v725 = vmul.f32 %v643, %v635
        %v726 = vadd.f32 %v725, %v722
        %vm727 = vcmask 7168
        %728 = vst.msk [vmem:[#allocation4] sm:$0xff] %vm727, %v726
        %729 = vst.msk [vmem:[#allocation3] sm:$0xff] %vm727, %v640
        %731 = vset.pattern.permute.xlu0 0
        %732 = vperm.xlu0 %731, %v643
        %v733 = vpop.permute.xlu0 %732
        %735 = vmatprep.subr.mxu0 0.0
        %736 = vmatpush1.msra.mxu0 0.0
        %737 = vmatprep.subr.mxu0 0.0
        %738 = vmatpush1.msra.mxu0 0.0
        %739 = vmatprep.subr.mxu0 0.0
        %740 = vmatpush1.msra.mxu0 0.0
        %741 = vmatprep.subr.mxu0 0.0
        %742 = vmatpush1.msra.mxu0 0.0
        %743 = vmatprep.subr.mxu0 0.0
        %744 = vmatpush1.msra.mxu0 0.0
        %745 = vmatprep.subr.mxu0 0.0
        %746 = vmatpush1.msra.mxu0 0.0
        %747 = vmatprep.subr.mxu0 0.0
        %748 = vmatpush1.msra.mxu0 0.0
        %749 = vmatprep.subr.mxu0 0.0
        %750 = vmatpush1.msra.mxu0 0.0
        %751 = vmatprep.subr.mxu0 0.0
        %752 = vmatpush1.msra.mxu0 0.0
        %753 = vmatprep.subr.mxu0 0.0
        %754 = vmatpush1.msra.mxu0 0.0
        %755 = vmatprep.subr.mxu0 0.0
        %756 = vmatpush1.msra.mxu0 0.0
        %757 = vmatprep.subr.mxu0 0.0
        %758 = vmatpush1.msra.mxu0 0.0
        %759 = vmatprep.subr.mxu0 0.0
        %760 = vmatpush1.msra.mxu0 0.0
        %761 = vmatprep.subr.mxu0 0.0
        %762 = vmatpush1.msra.mxu0 0.0
        %763 = vmatprep.subr.mxu0 0.0
        %764 = vmatpush1.msra.mxu0 %v553
        %765 = vmatprep.subr.mxu0 0.0
        %766 = vmatpush1.msra.mxu0 %v552
        %767 = vmatprep.subr.mxu0 0.0
        %768 = vmatpush2.msra.mxu0 0.0
        %769 = vmatprep.subr.mxu0 0.0
        %770 = vmatpush2.msra.mxu0 0.0
        %771 = vmatprep.subr.mxu0 0.0
        %772 = vmatpush2.msra.mxu0 0.0
        %773 = vmatprep.subr.mxu0 0.0
        %774 = vmatpush2.msra.mxu0 0.0
        %775 = vmatprep.subr.mxu0 0.0
        %776 = vmatpush2.msra.mxu0 0.0
        %777 = vmatprep.subr.mxu0 0.0
        %778 = vmatpush2.msra.mxu0 0.0
        %779 = vmatprep.subr.mxu0 0.0
        %780 = vmatpush2.msra.mxu0 0.0
        %781 = vmatprep.subr.mxu0 0.0
        %782 = vmatpush2.msra.mxu0 0.0
        %783 = vmatprep.subr.mxu0 0.0
        %784 = vmatpush2.msra.mxu0 0.0
        %785 = vmatprep.subr.mxu0 0.0
        %786 = vmatpush2.msra.mxu0 0.0
        %787 = vmatprep.subr.mxu0 0.0
        %788 = vmatpush2.msra.mxu0 0.0
        %789 = vmatprep.subr.mxu0 0.0
        %790 = vmatpush2.msra.mxu0 0.0
        %791 = vmatprep.subr.mxu0 0.0
        %792 = vmatpush2.msra.mxu0 0.0
        %793 = vmatprep.subr.mxu0 0.0
        %794 = vmatpush2.msra.mxu0 0.0
        %795 = vmatprep.subr.mxu0 0.0
        %796 = vmatpush2.msra.mxu0 0.0
        %797 = vmatprep.subr.mxu0 0.0
        %798 = vmatpush2.msra.mxu0 0.0
        %799 = vmatprep.mubr.f32.mxu0 0.0
        %800 = vmatmul.mubr.f32.gmra.mxu0 %v653
        %v801 = vpop.f32.mrf.mxu0
        %v802 = vadd.f32 0.0, %v801
        %v803 = vpop.f32.mrf.mxu0
        %804 = vdwg.mxu0
        %805 = vrot.lane.b32.xlu0 %v549, 120
        %v806 = vpop.permute.xlu0 %805
        %807 = vrot.lane.b32.xlu0 %v550, 120
        %v808 = vpop.permute.xlu0 %807
        %809 = vrot.lane.b32.xlu0 %v551, 120
        %v810 = vpop.permute.xlu0 %809
        %v811 = vsel %vm554, %v806, 0
        %v813 = vsel %vm554, %v808, 0
        %v815 = vsel %vm554, %v810, 0
        %817 = vmatprep.subr.mxu0 0.0
        %818 = vmatpush1.xpose.msra.mxu0 0.0
        %819 = vmatprep.subr.mxu0 0.0
        %820 = vmatpush1.xpose.msra.mxu0 0.0
        %821 = vmatprep.subr.mxu0 0.0
        %822 = vmatpush1.xpose.msra.mxu0 0.0
        %823 = vmatprep.subr.mxu0 0.0
        %824 = vmatpush1.xpose.msra.mxu0 0.0
        %825 = vmatprep.subr.mxu0 0.0
        %826 = vmatpush1.xpose.msra.mxu0 0.0
        %827 = vmatprep.subr.mxu0 0.0
        %828 = vmatpush1.xpose.msra.mxu0 0.0
        %829 = vmatprep.subr.mxu0 0.0
        %830 = vmatpush1.xpose.msra.mxu0 0.0
        %831 = vmatprep.subr.mxu0 0.0
        %832 = vmatpush1.xpose.msra.mxu0 0.0
        %833 = vmatprep.subr.mxu0 0.0
        %834 = vmatpush1.xpose.msra.mxu0 0.0
        %835 = vmatprep.subr.mxu0 0.0
        %836 = vmatpush1.xpose.msra.mxu0 0.0
        %837 = vmatprep.subr.mxu0 0.0
        %838 = vmatpush1.xpose.msra.mxu0 0.0
        %839 = vmatprep.subr.mxu0 0.0
        %840 = vmatpush1.xpose.msra.mxu0 0.0
        %841 = vmatprep.subr.mxu0 0.0
        %842 = vmatpush1.xpose.msra.mxu0 0.0
        %843 = vmatprep.subr.mxu0 0.0
        %844 = vmatpush1.xpose.msra.mxu0 0.0
        %845 = vmatprep.subr.mxu0 0.0
        %846 = vmatpush1.xpose.msra.mxu0 %v815
        %847 = vmatprep.subr.mxu0 0.0
        %848 = vmatpush1.xpose.msra.mxu0 %v813
        %849 = vmatprep.subr.mxu0 0.0
        %850 = vmatpush2.xpose.msra.mxu0 0.0
        %851 = vmatprep.subr.mxu0 0.0
        %852 = vmatpush2.xpose.msra.mxu0 0.0
        %853 = vmatprep.subr.mxu0 0.0
        %854 = vmatpush2.xpose.msra.mxu0 0.0
        %855 = vmatprep.subr.mxu0 0.0
        %856 = vmatpush2.xpose.msra.mxu0 0.0
        %857 = vmatprep.subr.mxu0 0.0
        %858 = vmatpush2.xpose.msra.mxu0 0.0
        %859 = vmatprep.subr.mxu0 0.0
        %860 = vmatpush2.xpose.msra.mxu0 0.0
        %861 = vmatprep.subr.mxu0 0.0
        %862 = vmatpush2.xpose.msra.mxu0 0.0
        %863 = vmatprep.subr.mxu0 0.0
        %864 = vmatpush2.xpose.msra.mxu0 0.0
        %865 = vmatprep.subr.mxu0 0.0
        %866 = vmatpush2.xpose.msra.mxu0 0.0
        %867 = vmatprep.subr.mxu0 0.0
        %868 = vmatpush2.xpose.msra.mxu0 0.0
        %869 = vmatprep.subr.mxu0 0.0
        %870 = vmatpush2.xpose.msra.mxu0 0.0
        %871 = vmatprep.subr.mxu0 0.0
        %872 = vmatpush2.xpose.msra.mxu0 0.0
        %873 = vmatprep.subr.mxu0 0.0
        %874 = vmatpush2.xpose.msra.mxu0 0.0
        %875 = vmatprep.subr.mxu0 0.0
        %876 = vmatpush2.xpose.msra.mxu0 0.0
        %877 = vmatprep.subr.mxu0 0.0
        %878 = vmatpush2.xpose.msra.mxu0 0.0
        %879 = vmatprep.subr.mxu0 0.0
        %880 = vmatpush2.xpose.msra.mxu0 0.0
        %881 = vmatprep.mubr.f32.mxu0 0.0
        %882 = vmatmul.mubr.f32.gmra.mxu0 %v811
        %v883 = vpop.f32.mrf.mxu0
        %v884 = vadd.f32 0.0, %v883
        %v885 = vpop.f32.mrf.mxu0
        %886 = vdwg.mxu0
        %s887 = scalar_lea.vmem [#allocation3], 8
        %v888 = vld [vmem:[%s887] sm:$0xff]
        %s889 = scalar_lea.vmem [#allocation4], 8
        %v890 = vld [vmem:[%s889] sm:$0xff]
        %v891 = vsel %vm636, %v884, -inf
        %892 = vmax.xlane.f32.xlu0 %v891
        %v893 = vpop.xlane.xlu0 %892
        %v894 = vmax.f32 %v888, %v893
        %v895 = vsub.f32 %v888, %v894
        %v896 = vmul.f32 %v895, 1.442695
        %v897 = vpow.pop %v896
        %899 = vset.pattern.permute.xlu0 0
        %900 = vperm.xlu0 %899, %v894
        %v901 = vpop.permute.xlu0 %900
        %v903 = vsub.f32 %v884, %v901
        %v904 = vmul.f32 %v903, 1.442695
        %v905 = vpow.pop %v904
        %v907 = vsel %vm636, %v905, 0
        %909 = vmatprep.subr.mxu0 0.0
        %910 = vmatpush1.msra.mxu0 0.0
        %911 = vmatprep.subr.mxu0 0.0
        %912 = vmatpush1.msra.mxu0 0.0
        %913 = vmatprep.subr.mxu0 0.0
        %914 = vmatpush1.msra.mxu0 0.0
        %915 = vmatprep.subr.mxu0 0.0
        %916 = vmatpush1.msra.mxu0 0.0
        %917 = vmatprep.subr.mxu0 0.0
        %918 = vmatpush1.msra.mxu0 0.0
        %919 = vmatprep.subr.mxu0 0.0
        %920 = vmatpush1.msra.mxu0 0.0
        %921 = vmatprep.subr.mxu0 0.0
        %922 = vmatpush1.msra.mxu0 0.0
        %923 = vmatprep.subr.mxu0 0.0
        %924 = vmatpush1.msra.mxu0 0.0
        %925 = vmatprep.subr.mxu0 0.0
        %926 = vmatpush1.msra.mxu0 0.0
        %927 = vmatprep.subr.mxu0 0.0
        %928 = vmatpush1.msra.mxu0 0.0
        %929 = vmatprep.subr.mxu0 0.0
        %930 = vmatpush1.msra.mxu0 0.0
        %931 = vmatprep.subr.mxu0 0.0
        %932 = vmatpush1.msra.mxu0 0.0
        %933 = vmatprep.subr.mxu0 0.0
        %934 = vmatpush1.msra.mxu0 0.0
        %935 = vmatprep.subr.mxu0 0.0
        %936 = vmatpush1.msra.mxu0 0.0
        %937 = vmatprep.subr.mxu0 0.0
        %938 = vmatpush1.msra.mxu0 1.0
        %939 = vmatprep.subr.mxu0 0.0
        %940 = vmatpush1.msra.mxu0 1.0
        %941 = vmatprep.subr.mxu0 0.0
        %942 = vmatpush2.msra.mxu0 0.0
        %943 = vmatprep.subr.mxu0 0.0
        %944 = vmatpush2.msra.mxu0 0.0
        %945 = vmatprep.subr.mxu0 0.0
        %946 = vmatpush2.msra.mxu0 0.0
        %947 = vmatprep.subr.mxu0 0.0
        %948 = vmatpush2.msra.mxu0 0.0
        %949 = vmatprep.subr.mxu0 0.0
        %950 = vmatpush2.msra.mxu0 0.0
        %951 = vmatprep.subr.mxu0 0.0
        %952 = vmatpush2.msra.mxu0 0.0
        %953 = vmatprep.subr.mxu0 0.0
        %954 = vmatpush2.msra.mxu0 0.0
        %955 = vmatprep.subr.mxu0 0.0
        %956 = vmatpush2.msra.mxu0 0.0
        %957 = vmatprep.subr.mxu0 0.0
        %958 = vmatpush2.msra.mxu0 0.0
        %959 = vmatprep.subr.mxu0 0.0
        %960 = vmatpush2.msra.mxu0 0.0
        %961 = vmatprep.subr.mxu0 0.0
        %962 = vmatpush2.msra.mxu0 0.0
        %963 = vmatprep.subr.mxu0 0.0
        %964 = vmatpush2.msra.mxu0 0.0
        %965 = vmatprep.subr.mxu0 0.0
        %966 = vmatpush2.msra.mxu0 0.0
        %967 = vmatprep.subr.mxu0 0.0
        %968 = vmatpush2.msra.mxu0 0.0
        %969 = vmatprep.subr.mxu0 0.0
        %970 = vmatpush2.msra.mxu0 0.0
        %971 = vmatprep.subr.mxu0 0.0
        %972 = vmatpush2.msra.mxu0 0.0
        %973 = vmatprep.mubr.f32.mxu0 0.0
        %974 = vmatmul.mubr.f32.gmra.mxu0 %v907
        %v975 = vpop.f32.mrf.mxu0
        %v976 = vadd.f32 0.0, %v975
        %v977 = vpop.f32.mrf.mxu0
        %978 = vdwg.mxu0
        %v979 = vmul.f32 %v897, %v890
        %v980 = vadd.f32 %v979, %v976
        %981 = vst.msk [vmem:[%s889] sm:$0xff] %vm727, %v980
        %982 = vst.msk [vmem:[%s887] sm:$0xff] %vm727, %v894
        %984 = vset.pattern.permute.xlu0 0
        %985 = vperm.xlu0 %984, %v897
        %v986 = vpop.permute.xlu0 %985
        %990 = vrot.lane.b32.xlu0 %v552, 120
        %v991 = vpop.permute.xlu0 %990
        %992 = vrot.lane.b32.xlu0 %v553, 120
        %v993 = vpop.permute.xlu0 %992
        %996 = vmatprep.subr.mxu0 0.0
        %997 = vmatpush1.msra.mxu0 0.0
        %998 = vmatprep.subr.mxu0 0.0
        %999 = vmatpush1.msra.mxu0 0.0
        %1000 = vmatprep.subr.mxu0 0.0
        %1001 = vmatpush1.msra.mxu0 0.0
        %1002 = vmatprep.subr.mxu0 0.0
        %1003 = vmatpush1.msra.mxu0 0.0
        %1004 = vmatprep.subr.mxu0 0.0
        %1005 = vmatpush1.msra.mxu0 0.0
        %1006 = vmatprep.subr.mxu0 0.0
        %1007 = vmatpush1.msra.mxu0 0.0
        %1008 = vmatprep.subr.mxu0 0.0
        %1009 = vmatpush1.msra.mxu0 0.0
        %1010 = vmatprep.subr.mxu0 0.0
        %1011 = vmatpush1.msra.mxu0 0.0
        %1012 = vmatprep.subr.mxu0 0.0
        %1013 = vmatpush1.msra.mxu0 0.0
        %1014 = vmatprep.subr.mxu0 0.0
        %1015 = vmatpush1.msra.mxu0 0.0
        %1016 = vmatprep.subr.mxu0 0.0
        %1017 = vmatpush1.msra.mxu0 0.0
        %1018 = vmatprep.subr.mxu0 0.0
        %1019 = vmatpush1.msra.mxu0 0.0
        %1020 = vmatprep.subr.mxu0 0.0
        %1021 = vmatpush1.msra.mxu0 0.0
        %1022 = vmatprep.subr.mxu0 0.0
        %1023 = vmatpush1.msra.mxu0 0.0
        %1024 = vmatprep.subr.mxu0 0.0
        %1025 = vmatpush1.msra.mxu0 %v993
        %1026 = vmatprep.subr.mxu0 0.0
        %1027 = vmatpush1.msra.mxu0 %v991
        %1028 = vmatprep.subr.mxu0 0.0
        %1029 = vmatpush2.msra.mxu0 0.0
        %1030 = vmatprep.subr.mxu0 0.0
        %1031 = vmatpush2.msra.mxu0 0.0
        %1032 = vmatprep.subr.mxu0 0.0
        %1033 = vmatpush2.msra.mxu0 0.0
        %1034 = vmatprep.subr.mxu0 0.0
        %1035 = vmatpush2.msra.mxu0 0.0
        %1036 = vmatprep.subr.mxu0 0.0
        %1037 = vmatpush2.msra.mxu0 0.0
        %1038 = vmatprep.subr.mxu0 0.0
        %1039 = vmatpush2.msra.mxu0 0.0
        %1040 = vmatprep.subr.mxu0 0.0
        %1041 = vmatpush2.msra.mxu0 0.0
        %1042 = vmatprep.subr.mxu0 0.0
        %1043 = vmatpush2.msra.mxu0 0.0
        %1044 = vmatprep.subr.mxu0 0.0
        %1045 = vmatpush2.msra.mxu0 0.0
        %1046 = vmatprep.subr.mxu0 0.0
        %1047 = vmatpush2.msra.mxu0 0.0
        %1048 = vmatprep.subr.mxu0 0.0
        %1049 = vmatpush2.msra.mxu0 0.0
        %1050 = vmatprep.subr.mxu0 0.0
        %1051 = vmatpush2.msra.mxu0 0.0
        %1052 = vmatprep.subr.mxu0 0.0
        %1053 = vmatpush2.msra.mxu0 0.0
        %1054 = vmatprep.subr.mxu0 0.0
        %1055 = vmatpush2.msra.mxu0 0.0
        %1056 = vmatprep.subr.mxu0 0.0
        %1057 = vmatpush2.msra.mxu0 0.0
        %1058 = vmatprep.subr.mxu0 0.0
        %1059 = vmatpush2.msra.mxu0 0.0
        %1060 = vmatprep.mubr.f32.mxu0 0.0
        %1061 = vmatmul.mubr.f32.gmra.mxu0 %v907
        %v1062 = vpop.f32.mrf.mxu0
        %v1063 = vadd.f32 0.0, %v1062
        %v1064 = vpop.f32.mrf.mxu0
        %1065 = vdwg.mxu0
        %1066 = vrot.lane.b32.xlu0 %v549, 112
        %v1067 = vpop.permute.xlu0 %1066
        %1068 = vrot.lane.b32.xlu0 %v550, 112
        %v1069 = vpop.permute.xlu0 %1068
        %1070 = vrot.lane.b32.xlu0 %v551, 112
        %v1071 = vpop.permute.xlu0 %1070
        %v1072 = vsel %vm554, %v1067, 0
        %v1074 = vsel %vm554, %v1069, 0
        %v1076 = vsel %vm554, %v1071, 0
        %1078 = vmatprep.subr.mxu0 0.0
        %1079 = vmatpush1.xpose.msra.mxu0 0.0
        %1080 = vmatprep.subr.mxu0 0.0
        %1081 = vmatpush1.xpose.msra.mxu0 0.0
        %1082 = vmatprep.subr.mxu0 0.0
        %1083 = vmatpush1.xpose.msra.mxu0 0.0
        %1084 = vmatprep.subr.mxu0 0.0
        %1085 = vmatpush1.xpose.msra.mxu0 0.0
        %1086 = vmatprep.subr.mxu0 0.0
        %1087 = vmatpush1.xpose.msra.mxu0 0.0
        %1088 = vmatprep.subr.mxu0 0.0
        %1089 = vmatpush1.xpose.msra.mxu0 0.0
        %1090 = vmatprep.subr.mxu0 0.0
        %1091 = vmatpush1.xpose.msra.mxu0 0.0
        %1092 = vmatprep.subr.mxu0 0.0
        %1093 = vmatpush1.xpose.msra.mxu0 0.0
        %1094 = vmatprep.subr.mxu0 0.0
        %1095 = vmatpush1.xpose.msra.mxu0 0.0
        %1096 = vmatprep.subr.mxu0 0.0
        %1097 = vmatpush1.xpose.msra.mxu0 0.0
        %1098 = vmatprep.subr.mxu0 0.0
        %1099 = vmatpush1.xpose.msra.mxu0 0.0
        %1100 = vmatprep.subr.mxu0 0.0
        %1101 = vmatpush1.xpose.msra.mxu0 0.0
        %1102 = vmatprep.subr.mxu0 0.0
        %1103 = vmatpush1.xpose.msra.mxu0 0.0
        %1104 = vmatprep.subr.mxu0 0.0
        %1105 = vmatpush1.xpose.msra.mxu0 0.0
        %1106 = vmatprep.subr.mxu0 0.0
        %1107 = vmatpush1.xpose.msra.mxu0 %v1076
        %1108 = vmatprep.subr.mxu0 0.0
        %1109 = vmatpush1.xpose.msra.mxu0 %v1074
        %1110 = vmatprep.subr.mxu0 0.0
        %1111 = vmatpush2.xpose.msra.mxu0 0.0
        %1112 = vmatprep.subr.mxu0 0.0
        %1113 = vmatpush2.xpose.msra.mxu0 0.0
        %1114 = vmatprep.subr.mxu0 0.0
        %1115 = vmatpush2.xpose.msra.mxu0 0.0
        %1116 = vmatprep.subr.mxu0 0.0
        %1117 = vmatpush2.xpose.msra.mxu0 0.0
        %1118 = vmatprep.subr.mxu0 0.0
        %1119 = vmatpush2.xpose.msra.mxu0 0.0
        %1120 = vmatprep.subr.mxu0 0.0
        %1121 = vmatpush2.xpose.msra.mxu0 0.0
        %1122 = vmatprep.subr.mxu0 0.0
        %1123 = vmatpush2.xpose.msra.mxu0 0.0
        %1124 = vmatprep.subr.mxu0 0.0
        %1125 = vmatpush2.xpose.msra.mxu0 0.0
        %1126 = vmatprep.subr.mxu0 0.0
        %1127 = vmatpush2.xpose.msra.mxu0 0.0
        %1128 = vmatprep.subr.mxu0 0.0
        %1129 = vmatpush2.xpose.msra.mxu0 0.0
        %1130 = vmatprep.subr.mxu0 0.0
        %1131 = vmatpush2.xpose.msra.mxu0 0.0
        %1132 = vmatprep.subr.mxu0 0.0
        %1133 = vmatpush2.xpose.msra.mxu0 0.0
        %1134 = vmatprep.subr.mxu0 0.0
        %1135 = vmatpush2.xpose.msra.mxu0 0.0
        %1136 = vmatprep.subr.mxu0 0.0
        %1137 = vmatpush2.xpose.msra.mxu0 0.0
        %1138 = vmatprep.subr.mxu0 0.0
        %1139 = vmatpush2.xpose.msra.mxu0 0.0
        %1140 = vmatprep.subr.mxu0 0.0
        %1141 = vmatpush2.xpose.msra.mxu0 0.0
        %1142 = vmatprep.mubr.f32.mxu0 0.0
        %1143 = vmatmul.mubr.f32.gmra.mxu0 %v1072
        %v1144 = vpop.f32.mrf.mxu0
        %v1145 = vadd.f32 0.0, %v1144
        %v1146 = vpop.f32.mrf.mxu0
        %1147 = vdwg.mxu0
        %s1148 = scalar_lea.vmem [#allocation3], 16
        %v1149 = vld [vmem:[%s1148] sm:$0xff]
        %s1150 = scalar_lea.vmem [#allocation4], 16
        %v1151 = vld [vmem:[%s1150] sm:$0xff]
        %v1152 = vsel %vm636, %v1145, -inf
        %1153 = vmax.xlane.f32.xlu0 %v1152
        %v1154 = vpop.xlane.xlu0 %1153
        %v1155 = vmax.f32 %v1149, %v1154
        %v1156 = vsub.f32 %v1149, %v1155
        %v1157 = vmul.f32 %v1156, 1.442695
        %v1158 = vpow.pop %v1157
        %1160 = vset.pattern.permute.xlu0 0
        %1161 = vperm.xlu0 %1160, %v1155
        %v1162 = vpop.permute.xlu0 %1161
        %v1164 = vsub.f32 %v1145, %v1162
        %v1165 = vmul.f32 %v1164, 1.442695
        %v1166 = vpow.pop %v1165
        %v1168 = vsel %vm636, %v1166, 0
        %1170 = vmatprep.subr.mxu0 0.0
        %1171 = vmatpush1.msra.mxu0 0.0
        %1172 = vmatprep.subr.mxu0 0.0
        %1173 = vmatpush1.msra.mxu0 0.0
        %1174 = vmatprep.subr.mxu0 0.0
        %1175 = vmatpush1.msra.mxu0 0.0
        %1176 = vmatprep.subr.mxu0 0.0
        %1177 = vmatpush1.msra.mxu0 0.0
        %1178 = vmatprep.subr.mxu0 0.0
        %1179 = vmatpush1.msra.mxu0 0.0
        %1180 = vmatprep.subr.mxu0 0.0
        %1181 = vmatpush1.msra.mxu0 0.0
        %1182 = vmatprep.subr.mxu0 0.0
        %1183 = vmatpush1.msra.mxu0 0.0
        %1184 = vmatprep.subr.mxu0 0.0
        %1185 = vmatpush1.msra.mxu0 0.0
        %1186 = vmatprep.subr.mxu0 0.0
        %1187 = vmatpush1.msra.mxu0 0.0
        %1188 = vmatprep.subr.mxu0 0.0
        %1189 = vmatpush1.msra.mxu0 0.0
        %1190 = vmatprep.subr.mxu0 0.0
        %1191 = vmatpush1.msra.mxu0 0.0
        %1192 = vmatprep.subr.mxu0 0.0
        %1193 = vmatpush1.msra.mxu0 0.0
        %1194 = vmatprep.subr.mxu0 0.0
        %1195 = vmatpush1.msra.mxu0 0.0
        %1196 = vmatprep.subr.mxu0 0.0
        %1197 = vmatpush1.msra.mxu0 0.0
        %1198 = vmatprep.subr.mxu0 0.0
        %1199 = vmatpush1.msra.mxu0 1.0
        %1200 = vmatprep.subr.mxu0 0.0
        %1201 = vmatpush1.msra.mxu0 1.0
        %1202 = vmatprep.subr.mxu0 0.0
        %1203 = vmatpush2.msra.mxu0 0.0
        %1204 = vmatprep.subr.mxu0 0.0
        %1205 = vmatpush2.msra.mxu0 0.0
        %1206 = vmatprep.subr.mxu0 0.0
        %1207 = vmatpush2.msra.mxu0 0.0
        %1208 = vmatprep.subr.mxu0 0.0
        %1209 = vmatpush2.msra.mxu0 0.0
        %1210 = vmatprep.subr.mxu0 0.0
        %1211 = vmatpush2.msra.mxu0 0.0
        %1212 = vmatprep.subr.mxu0 0.0
        %1213 = vmatpush2.msra.mxu0 0.0
        %1214 = vmatprep.subr.mxu0 0.0
        %1215 = vmatpush2.msra.mxu0 0.0
        %1216 = vmatprep.subr.mxu0 0.0
        %1217 = vmatpush2.msra.mxu0 0.0
        %1218 = vmatprep.subr.mxu0 0.0
        %1219 = vmatpush2.msra.mxu0 0.0
        %1220 = vmatprep.subr.mxu0 0.0
        %1221 = vmatpush2.msra.mxu0 0.0
        %1222 = vmatprep.subr.mxu0 0.0
        %1223 = vmatpush2.msra.mxu0 0.0
        %1224 = vmatprep.subr.mxu0 0.0
        %1225 = vmatpush2.msra.mxu0 0.0
        %1226 = vmatprep.subr.mxu0 0.0
        %1227 = vmatpush2.msra.mxu0 0.0
        %1228 = vmatprep.subr.mxu0 0.0
        %1229 = vmatpush2.msra.mxu0 0.0
        %1230 = vmatprep.subr.mxu0 0.0
        %1231 = vmatpush2.msra.mxu0 0.0
        %1232 = vmatprep.subr.mxu0 0.0
        %1233 = vmatpush2.msra.mxu0 0.0
        %1234 = vmatprep.mubr.f32.mxu0 0.0
        %1235 = vmatmul.mubr.f32.gmra.mxu0 %v1168
        %v1236 = vpop.f32.mrf.mxu0
        %v1237 = vadd.f32 0.0, %v1236
        %v1238 = vpop.f32.mrf.mxu0
        %1239 = vdwg.mxu0
        %v1240 = vmul.f32 %v1158, %v1151
        %v1241 = vadd.f32 %v1240, %v1237
        %1242 = vst.msk [vmem:[%s1150] sm:$0xff] %vm727, %v1241
        %1243 = vst.msk [vmem:[%s1148] sm:$0xff] %vm727, %v1155
        %1245 = vset.pattern.permute.xlu0 0
        %1246 = vperm.xlu0 %1245, %v1158
        %v1247 = vpop.permute.xlu0 %1246
        %1249 = vrot.lane.b32.xlu0 %v552, 112
        %v1250 = vpop.permute.xlu0 %1249
        %1251 = vrot.lane.b32.xlu0 %v553, 112
        %v1252 = vpop.permute.xlu0 %1251
        %1255 = vmatprep.subr.mxu0 0.0
        %1256 = vmatpush1.msra.mxu0 0.0
        %1257 = vmatprep.subr.mxu0 0.0
        %1258 = vmatpush1.msra.mxu0 0.0
        %1259 = vmatprep.subr.mxu0 0.0
        %1260 = vmatpush1.msra.mxu0 0.0
        %1261 = vmatprep.subr.mxu0 0.0
        %1262 = vmatpush1.msra.mxu0 0.0
        %1263 = vmatprep.subr.mxu0 0.0
        %1264 = vmatpush1.msra.mxu0 0.0
        %1265 = vmatprep.subr.mxu0 0.0
        %1266 = vmatpush1.msra.mxu0 0.0
        %1267 = vmatprep.subr.mxu0 0.0
        %1268 = vmatpush1.msra.mxu0 0.0
        %1269 = vmatprep.subr.mxu0 0.0
        %1270 = vmatpush1.msra.mxu0 0.0
        %1271 = vmatprep.subr.mxu0 0.0
        %1272 = vmatpush1.msra.mxu0 0.0
        %1273 = vmatprep.subr.mxu0 0.0
        %1274 = vmatpush1.msra.mxu0 0.0
        %1275 = vmatprep.subr.mxu0 0.0
        %1276 = vmatpush1.msra.mxu0 0.0
        %1277 = vmatprep.subr.mxu0 0.0
        %1278 = vmatpush1.msra.mxu0 0.0
        %1279 = vmatprep.subr.mxu0 0.0
        %1280 = vmatpush1.msra.mxu0 0.0
        %1281 = vmatprep.subr.mxu0 0.0
        %1282 = vmatpush1.msra.mxu0 0.0
        %1283 = vmatprep.subr.mxu0 0.0
        %1284 = vmatpush1.msra.mxu0 %v1252
        %1285 = vmatprep.subr.mxu0 0.0
        %1286 = vmatpush1.msra.mxu0 %v1250
        %1287 = vmatprep.subr.mxu0 0.0
        %1288 = vmatpush2.msra.mxu0 0.0
        %1289 = vmatprep.subr.mxu0 0.0
        %1290 = vmatpush2.msra.mxu0 0.0
        %1291 = vmatprep.subr.mxu0 0.0
        %1292 = vmatpush2.msra.mxu0 0.0
        %1293 = vmatprep.subr.mxu0 0.0
        %1294 = vmatpush2.msra.mxu0 0.0
        %1295 = vmatprep.subr.mxu0 0.0
        %1296 = vmatpush2.msra.mxu0 0.0
        %1297 = vmatprep.subr.mxu0 0.0
        %1298 = vmatpush2.msra.mxu0 0.0
        %1299 = vmatprep.subr.mxu0 0.0
        %1300 = vmatpush2.msra.mxu0 0.0
        %1301 = vmatprep.subr.mxu0 0.0
        %1302 = vmatpush2.msra.mxu0 0.0
        %1303 = vmatprep.subr.mxu0 0.0
        %1304 = vmatpush2.msra.mxu0 0.0
        %1305 = vmatprep.subr.mxu0 0.0
        %1306 = vmatpush2.msra.mxu0 0.0
        %1307 = vmatprep.subr.mxu0 0.0
        %1308 = vmatpush2.msra.mxu0 0.0
        %1309 = vmatprep.subr.mxu0 0.0
        %1310 = vmatpush2.msra.mxu0 0.0
        %1311 = vmatprep.subr.mxu0 0.0
        %1312 = vmatpush2.msra.mxu0 0.0
        %1313 = vmatprep.subr.mxu0 0.0
        %1314 = vmatpush2.msra.mxu0 0.0
        %1315 = vmatprep.subr.mxu0 0.0
        %1316 = vmatpush2.msra.mxu0 0.0
        %1317 = vmatprep.subr.mxu0 0.0
        %1318 = vmatpush2.msra.mxu0 0.0
        %1319 = vmatprep.mubr.f32.mxu0 0.0
        %1320 = vmatmul.mubr.f32.gmra.mxu0 %v1168
        %v1321 = vpop.f32.mrf.mxu0
        %v1322 = vadd.f32 0.0, %v1321
        %v1323 = vpop.f32.mrf.mxu0
        %1324 = vdwg.mxu0
        %1325 = vrot.lane.b32.xlu0 %v549, 104
        %v1326 = vpop.permute.xlu0 %1325
        %1327 = vrot.lane.b32.xlu0 %v550, 104
        %v1328 = vpop.permute.xlu0 %1327
        %1329 = vrot.lane.b32.xlu0 %v551, 104
        %v1330 = vpop.permute.xlu0 %1329
        %v1331 = vsel %vm554, %v1326, 0
        %v1333 = vsel %vm554, %v1328, 0
        %v1335 = vsel %vm554, %v1330, 0
        %1337 = vmatprep.subr.mxu0 0.0
        %1338 = vmatpush1.xpose.msra.mxu0 0.0
        %1339 = vmatprep.subr.mxu0 0.0
        %1340 = vmatpush1.xpose.msra.mxu0 0.0
        %1341 = vmatprep.subr.mxu0 0.0
        %1342 = vmatpush1.xpose.msra.mxu0 0.0
        %1343 = vmatprep.subr.mxu0 0.0
        %1344 = vmatpush1.xpose.msra.mxu0 0.0
        %1345 = vmatprep.subr.mxu0 0.0
        %1346 = vmatpush1.xpose.msra.mxu0 0.0
        %1347 = vmatprep.subr.mxu0 0.0
        %1348 = vmatpush1.xpose.msra.mxu0 0.0
        %1349 = vmatprep.subr.mxu0 0.0
        %1350 = vmatpush1.xpose.msra.mxu0 0.0
        %1351 = vmatprep.subr.mxu0 0.0
        %1352 = vmatpush1.xpose.msra.mxu0 0.0
        %1353 = vmatprep.subr.mxu0 0.0
        %1354 = vmatpush1.xpose.msra.mxu0 0.0
        %1355 = vmatprep.subr.mxu0 0.0
        %1356 = vmatpush1.xpose.msra.mxu0 0.0
        %1357 = vmatprep.subr.mxu0 0.0
        %1358 = vmatpush1.xpose.msra.mxu0 0.0
        %1359 = vmatprep.subr.mxu0 0.0
        %1360 = vmatpush1.xpose.msra.mxu0 0.0
        %1361 = vmatprep.subr.mxu0 0.0
        %1362 = vmatpush1.xpose.msra.mxu0 0.0
        %1363 = vmatprep.subr.mxu0 0.0
        %1364 = vmatpush1.xpose.msra.mxu0 0.0
        %1365 = vmatprep.subr.mxu0 0.0
        %1366 = vmatpush1.xpose.msra.mxu0 %v1335
        %1367 = vmatprep.subr.mxu0 0.0
        %1368 = vmatpush1.xpose.msra.mxu0 %v1333
        %1369 = vmatprep.subr.mxu0 0.0
        %1370 = vmatpush2.xpose.msra.mxu0 0.0
        %1371 = vmatprep.subr.mxu0 0.0
        %1372 = vmatpush2.xpose.msra.mxu0 0.0
        %1373 = vmatprep.subr.mxu0 0.0
        %1374 = vmatpush2.xpose.msra.mxu0 0.0
        %1375 = vmatprep.subr.mxu0 0.0
        %1376 = vmatpush2.xpose.msra.mxu0 0.0
        %1377 = vmatprep.subr.mxu0 0.0
        %1378 = vmatpush2.xpose.msra.mxu0 0.0
        %1379 = vmatprep.subr.mxu0 0.0
        %1380 = vmatpush2.xpose.msra.mxu0 0.0
        %1381 = vmatprep.subr.mxu0 0.0
        %1382 = vmatpush2.xpose.msra.mxu0 0.0
        %1383 = vmatprep.subr.mxu0 0.0
        %1384 = vmatpush2.xpose.msra.mxu0 0.0
        %1385 = vmatprep.subr.mxu0 0.0
        %1386 = vmatpush2.xpose.msra.mxu0 0.0
        %1387 = vmatprep.subr.mxu0 0.0
        %1388 = vmatpush2.xpose.msra.mxu0 0.0
        %1389 = vmatprep.subr.mxu0 0.0
        %1390 = vmatpush2.xpose.msra.mxu0 0.0
        %1391 = vmatprep.subr.mxu0 0.0
        %1392 = vmatpush2.xpose.msra.mxu0 0.0
        %1393 = vmatprep.subr.mxu0 0.0
        %1394 = vmatpush2.xpose.msra.mxu0 0.0
        %1395 = vmatprep.subr.mxu0 0.0
        %1396 = vmatpush2.xpose.msra.mxu0 0.0
        %1397 = vmatprep.subr.mxu0 0.0
        %1398 = vmatpush2.xpose.msra.mxu0 0.0
        %1399 = vmatprep.subr.mxu0 0.0
        %1400 = vmatpush2.xpose.msra.mxu0 0.0
        %1401 = vmatprep.mubr.f32.mxu0 0.0
        %1402 = vmatmul.mubr.f32.gmra.mxu0 %v1331
        %v1403 = vpop.f32.mrf.mxu0
        %v1404 = vadd.f32 0.0, %v1403
        %v1405 = vpop.f32.mrf.mxu0
        %1406 = vdwg.mxu0
        %s1407 = scalar_lea.vmem [#allocation3], 24
        %v1408 = vld [vmem:[%s1407] sm:$0xff]
        %s1409 = scalar_lea.vmem [#allocation4], 24
        %v1410 = vld [vmem:[%s1409] sm:$0xff]
        %v1411 = vsel %vm636, %v1404, -inf
        %1412 = vmax.xlane.f32.xlu0 %v1411
        %v1413 = vpop.xlane.xlu0 %1412
        %v1414 = vmax.f32 %v1408, %v1413
        %v1415 = vsub.f32 %v1408, %v1414
        %v1416 = vmul.f32 %v1415, 1.442695
        %v1417 = vpow.pop %v1416
        %1419 = vset.pattern.permute.xlu0 0
        %1420 = vperm.xlu0 %1419, %v1414
        %v1421 = vpop.permute.xlu0 %1420
        %v1423 = vsub.f32 %v1404, %v1421
        %v1424 = vmul.f32 %v1423, 1.442695
        %v1425 = vpow.pop %v1424
        %v1427 = vsel %vm636, %v1425, 0
        %1429 = vmatprep.subr.mxu0 0.0
        %1430 = vmatpush1.msra.mxu0 0.0
        %1431 = vmatprep.subr.mxu0 0.0
        %1432 = vmatpush1.msra.mxu0 0.0
        %1433 = vmatprep.subr.mxu0 0.0
        %1434 = vmatpush1.msra.mxu0 0.0
        %1435 = vmatprep.subr.mxu0 0.0
        %1436 = vmatpush1.msra.mxu0 0.0
        %1437 = vmatprep.subr.mxu0 0.0
        %1438 = vmatpush1.msra.mxu0 0.0
        %1439 = vmatprep.subr.mxu0 0.0
        %1440 = vmatpush1.msra.mxu0 0.0
        %1441 = vmatprep.subr.mxu0 0.0
        %1442 = vmatpush1.msra.mxu0 0.0
        %1443 = vmatprep.subr.mxu0 0.0
        %1444 = vmatpush1.msra.mxu0 0.0
        %1445 = vmatprep.subr.mxu0 0.0
        %1446 = vmatpush1.msra.mxu0 0.0
        %1447 = vmatprep.subr.mxu0 0.0
        %1448 = vmatpush1.msra.mxu0 0.0
        %1449 = vmatprep.subr.mxu0 0.0
        %1450 = vmatpush1.msra.mxu0 0.0
        %1451 = vmatprep.subr.mxu0 0.0
        %1452 = vmatpush1.msra.mxu0 0.0
        %1453 = vmatprep.subr.mxu0 0.0
        %1454 = vmatpush1.msra.mxu0 0.0
        %1455 = vmatprep.subr.mxu0 0.0
        %1456 = vmatpush1.msra.mxu0 0.0
        %1457 = vmatprep.subr.mxu0 0.0
        %1458 = vmatpush1.msra.mxu0 1.0
        %1459 = vmatprep.subr.mxu0 0.0
        %1460 = vmatpush1.msra.mxu0 1.0
        %1461 = vmatprep.subr.mxu0 0.0
        %1462 = vmatpush2.msra.mxu0 0.0
        %1463 = vmatprep.subr.mxu0 0.0
        %1464 = vmatpush2.msra.mxu0 0.0
        %1465 = vmatprep.subr.mxu0 0.0
        %1466 = vmatpush2.msra.mxu0 0.0
        %1467 = vmatprep.subr.mxu0 0.0
        %1468 = vmatpush2.msra.mxu0 0.0
        %1469 = vmatprep.subr.mxu0 0.0
        %1470 = vmatpush2.msra.mxu0 0.0
        %1471 = vmatprep.subr.mxu0 0.0
        %1472 = vmatpush2.msra.mxu0 0.0
        %1473 = vmatprep.subr.mxu0 0.0
        %1474 = vmatpush2.msra.mxu0 0.0
        %1475 = vmatprep.subr.mxu0 0.0
        %1476 = vmatpush2.msra.mxu0 0.0
        %1477 = vmatprep.subr.mxu0 0.0
        %1478 = vmatpush2.msra.mxu0 0.0
        %1479 = vmatprep.subr.mxu0 0.0
        %1480 = vmatpush2.msra.mxu0 0.0
        %1481 = vmatprep.subr.mxu0 0.0
        %1482 = vmatpush2.msra.mxu0 0.0
        %1483 = vmatprep.subr.mxu0 0.0
        %1484 = vmatpush2.msra.mxu0 0.0
        %1485 = vmatprep.subr.mxu0 0.0
        %1486 = vmatpush2.msra.mxu0 0.0
        %1487 = vmatprep.subr.mxu0 0.0
        %1488 = vmatpush2.msra.mxu0 0.0
        %1489 = vmatprep.subr.mxu0 0.0
        %1490 = vmatpush2.msra.mxu0 0.0
        %1491 = vmatprep.subr.mxu0 0.0
        %1492 = vmatpush2.msra.mxu0 0.0
        %1493 = vmatprep.mubr.f32.mxu0 0.0
        %1494 = vmatmul.mubr.f32.gmra.mxu0 %v1427
        %v1495 = vpop.f32.mrf.mxu0
        %v1496 = vadd.f32 0.0, %v1495
        %v1497 = vpop.f32.mrf.mxu0
        %1498 = vdwg.mxu0
        %v1499 = vmul.f32 %v1417, %v1410
        %v1500 = vadd.f32 %v1499, %v1496
        %1501 = vst.msk [vmem:[%s1409] sm:$0xff] %vm727, %v1500
        %1502 = vst.msk [vmem:[%s1407] sm:$0xff] %vm727, %v1414
        %1504 = vset.pattern.permute.xlu0 0
        %1505 = vperm.xlu0 %1504, %v1417
        %v1506 = vpop.permute.xlu0 %1505
        %1508 = vrot.lane.b32.xlu0 %v552, 104
        %v1509 = vpop.permute.xlu0 %1508
        %1510 = vrot.lane.b32.xlu0 %v553, 104
        %v1511 = vpop.permute.xlu0 %1510
        %1514 = vmatprep.subr.mxu0 0.0
        %1515 = vmatpush1.msra.mxu0 0.0
        %1516 = vmatprep.subr.mxu0 0.0
        %1517 = vmatpush1.msra.mxu0 0.0
        %1518 = vmatprep.subr.mxu0 0.0
        %1519 = vmatpush1.msra.mxu0 0.0
        %1520 = vmatprep.subr.mxu0 0.0
        %1521 = vmatpush1.msra.mxu0 0.0
        %1522 = vmatprep.subr.mxu0 0.0
        %1523 = vmatpush1.msra.mxu0 0.0
        %1524 = vmatprep.subr.mxu0 0.0
        %1525 = vmatpush1.msra.mxu0 0.0
        %1526 = vmatprep.subr.mxu0 0.0
        %1527 = vmatpush1.msra.mxu0 0.0
        %1528 = vmatprep.subr.mxu0 0.0
        %1529 = vmatpush1.msra.mxu0 0.0
        %1530 = vmatprep.subr.mxu0 0.0
        %1531 = vmatpush1.msra.mxu0 0.0
        %1532 = vmatprep.subr.mxu0 0.0
        %1533 = vmatpush1.msra.mxu0 0.0
        %1534 = vmatprep.subr.mxu0 0.0
        %1535 = vmatpush1.msra.mxu0 0.0
        %1536 = vmatprep.subr.mxu0 0.0
        %1537 = vmatpush1.msra.mxu0 0.0
        %1538 = vmatprep.subr.mxu0 0.0
        %1539 = vmatpush1.msra.mxu0 0.0
        %1540 = vmatprep.subr.mxu0 0.0
        %1541 = vmatpush1.msra.mxu0 0.0
        %1542 = vmatprep.subr.mxu0 0.0
        %1543 = vmatpush1.msra.mxu0 %v1511
        %1544 = vmatprep.subr.mxu0 0.0
        %1545 = vmatpush1.msra.mxu0 %v1509
        %1546 = vmatprep.subr.mxu0 0.0
        %1547 = vmatpush2.msra.mxu0 0.0
        %1548 = vmatprep.subr.mxu0 0.0
        %1549 = vmatpush2.msra.mxu0 0.0
        %1550 = vmatprep.subr.mxu0 0.0
        %1551 = vmatpush2.msra.mxu0 0.0
        %1552 = vmatprep.subr.mxu0 0.0
        %1553 = vmatpush2.msra.mxu0 0.0
        %1554 = vmatprep.subr.mxu0 0.0
        %1555 = vmatpush2.msra.mxu0 0.0
        %1556 = vmatprep.subr.mxu0 0.0
        %1557 = vmatpush2.msra.mxu0 0.0
        %1558 = vmatprep.subr.mxu0 0.0
        %1559 = vmatpush2.msra.mxu0 0.0
        %1560 = vmatprep.subr.mxu0 0.0
        %1561 = vmatpush2.msra.mxu0 0.0
        %1562 = vmatprep.subr.mxu0 0.0
        %1563 = vmatpush2.msra.mxu0 0.0
        %1564 = vmatprep.subr.mxu0 0.0
        %1565 = vmatpush2.msra.mxu0 0.0
        %1566 = vmatprep.subr.mxu0 0.0
        %1567 = vmatpush2.msra.mxu0 0.0
        %1568 = vmatprep.subr.mxu0 0.0
        %1569 = vmatpush2.msra.mxu0 0.0
        %1570 = vmatprep.subr.mxu0 0.0
        %1571 = vmatpush2.msra.mxu0 0.0
        %1572 = vmatprep.subr.mxu0 0.0
        %1573 = vmatpush2.msra.mxu0 0.0
        %1574 = vmatprep.subr.mxu0 0.0
        %1575 = vmatpush2.msra.mxu0 0.0
        %1576 = vmatprep.subr.mxu0 0.0
        %1577 = vmatpush2.msra.mxu0 0.0
        %1578 = vmatprep.mubr.f32.mxu0 0.0
        %1579 = vmatmul.mubr.f32.gmra.mxu0 %v1427
        %v1580 = vpop.f32.mrf.mxu0
        %v1581 = vadd.f32 0.0, %v1580
        %v1582 = vpop.f32.mrf.mxu0
        %1583 = vdwg.mxu0
        %1584 = vrot.lane.b32.xlu0 %v549, 96
        %v1585 = vpop.permute.xlu0 %1584
        %1586 = vrot.lane.b32.xlu0 %v550, 96
        %v1587 = vpop.permute.xlu0 %1586
        %1588 = vrot.lane.b32.xlu0 %v551, 96
        %v1589 = vpop.permute.xlu0 %1588
        %v1590 = vsel %vm554, %v1585, 0
        %v1592 = vsel %vm554, %v1587, 0
        %v1594 = vsel %vm554, %v1589, 0
        %1596 = vmatprep.subr.mxu0 0.0
        %1597 = vmatpush1.xpose.msra.mxu0 0.0
        %1598 = vmatprep.subr.mxu0 0.0
        %1599 = vmatpush1.xpose.msra.mxu0 0.0
        %1600 = vmatprep.subr.mxu0 0.0
        %1601 = vmatpush1.xpose.msra.mxu0 0.0
        %1602 = vmatprep.subr.mxu0 0.0
        %1603 = vmatpush1.xpose.msra.mxu0 0.0
        %1604 = vmatprep.subr.mxu0 0.0
        %1605 = vmatpush1.xpose.msra.mxu0 0.0
        %1606 = vmatprep.subr.mxu0 0.0
        %1607 = vmatpush1.xpose.msra.mxu0 0.0
        %1608 = vmatprep.subr.mxu0 0.0
        %1609 = vmatpush1.xpose.msra.mxu0 0.0
        %1610 = vmatprep.subr.mxu0 0.0
        %1611 = vmatpush1.xpose.msra.mxu0 0.0
        %1612 = vmatprep.subr.mxu0 0.0
        %1613 = vmatpush1.xpose.msra.mxu0 0.0
        %1614 = vmatprep.subr.mxu0 0.0
        %1615 = vmatpush1.xpose.msra.mxu0 0.0
        %1616 = vmatprep.subr.mxu0 0.0
        %1617 = vmatpush1.xpose.msra.mxu0 0.0
        %1618 = vmatprep.subr.mxu0 0.0
        %1619 = vmatpush1.xpose.msra.mxu0 0.0
        %1620 = vmatprep.subr.mxu0 0.0
        %1621 = vmatpush1.xpose.msra.mxu0 0.0
        %1622 = vmatprep.subr.mxu0 0.0
        %1623 = vmatpush1.xpose.msra.mxu0 0.0
        %1624 = vmatprep.subr.mxu0 0.0
        %1625 = vmatpush1.xpose.msra.mxu0 %v1594
        %1626 = vmatprep.subr.mxu0 0.0
        %1627 = vmatpush1.xpose.msra.mxu0 %v1592
        %1628 = vmatprep.subr.mxu0 0.0
        %1629 = vmatpush2.xpose.msra.mxu0 0.0
        %1630 = vmatprep.subr.mxu0 0.0
        %1631 = vmatpush2.xpose.msra.mxu0 0.0
        %1632 = vmatprep.subr.mxu0 0.0
        %1633 = vmatpush2.xpose.msra.mxu0 0.0
        %1634 = vmatprep.subr.mxu0 0.0
        %1635 = vmatpush2.xpose.msra.mxu0 0.0
        %1636 = vmatprep.subr.mxu0 0.0
        %1637 = vmatpush2.xpose.msra.mxu0 0.0
        %1638 = vmatprep.subr.mxu0 0.0
        %1639 = vmatpush2.xpose.msra.mxu0 0.0
        %1640 = vmatprep.subr.mxu0 0.0
        %1641 = vmatpush2.xpose.msra.mxu0 0.0
        %1642 = vmatprep.subr.mxu0 0.0
        %1643 = vmatpush2.xpose.msra.mxu0 0.0
        %1644 = vmatprep.subr.mxu0 0.0
        %1645 = vmatpush2.xpose.msra.mxu0 0.0
        %1646 = vmatprep.subr.mxu0 0.0
        %1647 = vmatpush2.xpose.msra.mxu0 0.0
        %1648 = vmatprep.subr.mxu0 0.0
        %1649 = vmatpush2.xpose.msra.mxu0 0.0
        %1650 = vmatprep.subr.mxu0 0.0
        %1651 = vmatpush2.xpose.msra.mxu0 0.0
        %1652 = vmatprep.subr.mxu0 0.0
        %1653 = vmatpush2.xpose.msra.mxu0 0.0
        %1654 = vmatprep.subr.mxu0 0.0
        %1655 = vmatpush2.xpose.msra.mxu0 0.0
        %1656 = vmatprep.subr.mxu0 0.0
        %1657 = vmatpush2.xpose.msra.mxu0 0.0
        %1658 = vmatprep.subr.mxu0 0.0
        %1659 = vmatpush2.xpose.msra.mxu0 0.0
        %1660 = vmatprep.mubr.f32.mxu0 0.0
        %1661 = vmatmul.mubr.f32.gmra.mxu0 %v1590
        %v1662 = vpop.f32.mrf.mxu0
        %v1663 = vadd.f32 0.0, %v1662
        %v1664 = vpop.f32.mrf.mxu0
        %1665 = vdwg.mxu0
        %s1666 = scalar_lea.vmem [#allocation3], 32
        %v1667 = vld [vmem:[%s1666] sm:$0xff]
        %s1668 = scalar_lea.vmem [#allocation4], 32
        %v1669 = vld [vmem:[%s1668] sm:$0xff]
        %v1670 = vsel %vm636, %v1663, -inf
        %1671 = vmax.xlane.f32.xlu0 %v1670
        %v1672 = vpop.xlane.xlu0 %1671
        %v1673 = vmax.f32 %v1667, %v1672
        %v1674 = vsub.f32 %v1667, %v1673
        %v1675 = vmul.f32 %v1674, 1.442695
        %v1676 = vpow.pop %v1675
        %1678 = vset.pattern.permute.xlu0 0
        %1679 = vperm.xlu0 %1678, %v1673
        %v1680 = vpop.permute.xlu0 %1679
        %v1682 = vsub.f32 %v1663, %v1680
        %v1683 = vmul.f32 %v1682, 1.442695
        %v1684 = vpow.pop %v1683
        %v1686 = vsel %vm636, %v1684, 0
        %1688 = vmatprep.subr.mxu0 0.0
        %1689 = vmatpush1.msra.mxu0 0.0
        %1690 = vmatprep.subr.mxu0 0.0
        %1691 = vmatpush1.msra.mxu0 0.0
        %1692 = vmatprep.subr.mxu0 0.0
        %1693 = vmatpush1.msra.mxu0 0.0
        %1694 = vmatprep.subr.mxu0 0.0
        %1695 = vmatpush1.msra.mxu0 0.0
        %1696 = vmatprep.subr.mxu0 0.0
        %1697 = vmatpush1.msra.mxu0 0.0
        %1698 = vmatprep.subr.mxu0 0.0
        %1699 = vmatpush1.msra.mxu0 0.0
        %1700 = vmatprep.subr.mxu0 0.0
        %1701 = vmatpush1.msra.mxu0 0.0
        %1702 = vmatprep.subr.mxu0 0.0
        %1703 = vmatpush1.msra.mxu0 0.0
        %1704 = vmatprep.subr.mxu0 0.0
        %1705 = vmatpush1.msra.mxu0 0.0
        %1706 = vmatprep.subr.mxu0 0.0
        %1707 = vmatpush1.msra.mxu0 0.0
        %1708 = vmatprep.subr.mxu0 0.0
        %1709 = vmatpush1.msra.mxu0 0.0
        %1710 = vmatprep.subr.mxu0 0.0
        %1711 = vmatpush1.msra.mxu0 0.0
        %1712 = vmatprep.subr.mxu0 0.0
        %1713 = vmatpush1.msra.mxu0 0.0
        %1714 = vmatprep.subr.mxu0 0.0
        %1715 = vmatpush1.msra.mxu0 0.0
        %1716 = vmatprep.subr.mxu0 0.0
        %1717 = vmatpush1.msra.mxu0 1.0
        %1718 = vmatprep.subr.mxu0 0.0
        %1719 = vmatpush1.msra.mxu0 1.0
        %1720 = vmatprep.subr.mxu0 0.0
        %1721 = vmatpush2.msra.mxu0 0.0
        %1722 = vmatprep.subr.mxu0 0.0
        %1723 = vmatpush2.msra.mxu0 0.0
        %1724 = vmatprep.subr.mxu0 0.0
        %1725 = vmatpush2.msra.mxu0 0.0
        %1726 = vmatprep.subr.mxu0 0.0
        %1727 = vmatpush2.msra.mxu0 0.0
        %1728 = vmatprep.subr.mxu0 0.0
        %1729 = vmatpush2.msra.mxu0 0.0
        %1730 = vmatprep.subr.mxu0 0.0
        %1731 = vmatpush2.msra.mxu0 0.0
        %1732 = vmatprep.subr.mxu0 0.0
        %1733 = vmatpush2.msra.mxu0 0.0
        %1734 = vmatprep.subr.mxu0 0.0
        %1735 = vmatpush2.msra.mxu0 0.0
        %1736 = vmatprep.subr.mxu0 0.0
        %1737 = vmatpush2.msra.mxu0 0.0
        %1738 = vmatprep.subr.mxu0 0.0
        %1739 = vmatpush2.msra.mxu0 0.0
        %1740 = vmatprep.subr.mxu0 0.0
        %1741 = vmatpush2.msra.mxu0 0.0
        %1742 = vmatprep.subr.mxu0 0.0
        %1743 = vmatpush2.msra.mxu0 0.0
        %1744 = vmatprep.subr.mxu0 0.0
        %1745 = vmatpush2.msra.mxu0 0.0
        %1746 = vmatprep.subr.mxu0 0.0
        %1747 = vmatpush2.msra.mxu0 0.0
        %1748 = vmatprep.subr.mxu0 0.0
        %1749 = vmatpush2.msra.mxu0 0.0
        %1750 = vmatprep.subr.mxu0 0.0
        %1751 = vmatpush2.msra.mxu0 0.0
        %1752 = vmatprep.mubr.f32.mxu0 0.0
        %1753 = vmatmul.mubr.f32.gmra.mxu0 %v1686
        %v1754 = vpop.f32.mrf.mxu0
        %v1755 = vadd.f32 0.0, %v1754
        %v1756 = vpop.f32.mrf.mxu0
        %1757 = vdwg.mxu0
        %v1758 = vmul.f32 %v1676, %v1669
        %v1759 = vadd.f32 %v1758, %v1755
        %1760 = vst.msk [vmem:[%s1668] sm:$0xff] %vm727, %v1759
        %1761 = vst.msk [vmem:[%s1666] sm:$0xff] %vm727, %v1673
        %1763 = vset.pattern.permute.xlu0 0
        %1764 = vperm.xlu0 %1763, %v1676
        %v1765 = vpop.permute.xlu0 %1764
        %1767 = vrot.lane.b32.xlu0 %v552, 96
        %v1768 = vpop.permute.xlu0 %1767
        %1769 = vrot.lane.b32.xlu0 %v553, 96
        %v1770 = vpop.permute.xlu0 %1769
        %1773 = vmatprep.subr.mxu0 0.0
        %1774 = vmatpush1.msra.mxu0 0.0
        %1775 = vmatprep.subr.mxu0 0.0
        %1776 = vmatpush1.msra.mxu0 0.0
        %1777 = vmatprep.subr.mxu0 0.0
        %1778 = vmatpush1.msra.mxu0 0.0
        %1779 = vmatprep.subr.mxu0 0.0
        %1780 = vmatpush1.msra.mxu0 0.0
        %1781 = vmatprep.subr.mxu0 0.0
        %1782 = vmatpush1.msra.mxu0 0.0
        %1783 = vmatprep.subr.mxu0 0.0
        %1784 = vmatpush1.msra.mxu0 0.0
        %1785 = vmatprep.subr.mxu0 0.0
        %1786 = vmatpush1.msra.mxu0 0.0
        %1787 = vmatprep.subr.mxu0 0.0
        %1788 = vmatpush1.msra.mxu0 0.0
        %1789 = vmatprep.subr.mxu0 0.0
        %1790 = vmatpush1.msra.mxu0 0.0
        %1791 = vmatprep.subr.mxu0 0.0
        %1792 = vmatpush1.msra.mxu0 0.0
        %1793 = vmatprep.subr.mxu0 0.0
        %1794 = vmatpush1.msra.mxu0 0.0
        %1795 = vmatprep.subr.mxu0 0.0
        %1796 = vmatpush1.msra.mxu0 0.0
        %1797 = vmatprep.subr.mxu0 0.0
        %1798 = vmatpush1.msra.mxu0 0.0
        %1799 = vmatprep.subr.mxu0 0.0
        %1800 = vmatpush1.msra.mxu0 0.0
        %1801 = vmatprep.subr.mxu0 0.0
        %1802 = vmatpush1.msra.mxu0 %v1770
        %1803 = vmatprep.subr.mxu0 0.0
        %1804 = vmatpush1.msra.mxu0 %v1768
        %1805 = vmatprep.subr.mxu0 0.0
        %1806 = vmatpush2.msra.mxu0 0.0
        %1807 = vmatprep.subr.mxu0 0.0
        %1808 = vmatpush2.msra.mxu0 0.0
        %1809 = vmatprep.subr.mxu0 0.0
        %1810 = vmatpush2.msra.mxu0 0.0
        %1811 = vmatprep.subr.mxu0 0.0
        %1812 = vmatpush2.msra.mxu0 0.0
        %1813 = vmatprep.subr.mxu0 0.0
        %1814 = vmatpush2.msra.mxu0 0.0
        %1815 = vmatprep.subr.mxu0 0.0
        %1816 = vmatpush2.msra.mxu0 0.0
        %1817 = vmatprep.subr.mxu0 0.0
        %1818 = vmatpush2.msra.mxu0 0.0
        %1819 = vmatprep.subr.mxu0 0.0
        %1820 = vmatpush2.msra.mxu0 0.0
        %1821 = vmatprep.subr.mxu0 0.0
        %1822 = vmatpush2.msra.mxu0 0.0
        %1823 = vmatprep.subr.mxu0 0.0
        %1824 = vmatpush2.msra.mxu0 0.0
        %1825 = vmatprep.subr.mxu0 0.0
        %1826 = vmatpush2.msra.mxu0 0.0
        %1827 = vmatprep.subr.mxu0 0.0
        %1828 = vmatpush2.msra.mxu0 0.0
        %1829 = vmatprep.subr.mxu0 0.0
        %1830 = vmatpush2.msra.mxu0 0.0
        %1831 = vmatprep.subr.mxu0 0.0
        %1832 = vmatpush2.msra.mxu0 0.0
        %1833 = vmatprep.subr.mxu0 0.0
        %1834 = vmatpush2.msra.mxu0 0.0
        %1835 = vmatprep.subr.mxu0 0.0
        %1836 = vmatpush2.msra.mxu0 0.0
        %1837 = vmatprep.mubr.f32.mxu0 0.0
        %1838 = vmatmul.mubr.f32.gmra.mxu0 %v1686
        %v1839 = vpop.f32.mrf.mxu0
        %v1840 = vadd.f32 0.0, %v1839
        %v1841 = vpop.f32.mrf.mxu0
        %1842 = vdwg.mxu0
        %1843 = vrot.lane.b32.xlu0 %v549, 88
        %v1844 = vpop.permute.xlu0 %1843
        %1845 = vrot.lane.b32.xlu0 %v550, 88
        %v1846 = vpop.permute.xlu0 %1845
        %1847 = vrot.lane.b32.xlu0 %v551, 88
        %v1848 = vpop.permute.xlu0 %1847
        %v1849 = vsel %vm554, %v1844, 0
        %v1851 = vsel %vm554, %v1846, 0
        %v1853 = vsel %vm554, %v1848, 0
        %1855 = vmatprep.subr.mxu0 0.0
        %1856 = vmatpush1.xpose.msra.mxu0 0.0
        %1857 = vmatprep.subr.mxu0 0.0
        %1858 = vmatpush1.xpose.msra.mxu0 0.0
        %1859 = vmatprep.subr.mxu0 0.0
        %1860 = vmatpush1.xpose.msra.mxu0 0.0
        %1861 = vmatprep.subr.mxu0 0.0
        %1862 = vmatpush1.xpose.msra.mxu0 0.0
        %1863 = vmatprep.subr.mxu0 0.0
        %1864 = vmatpush1.xpose.msra.mxu0 0.0
        %1865 = vmatprep.subr.mxu0 0.0
        %1866 = vmatpush1.xpose.msra.mxu0 0.0
        %1867 = vmatprep.subr.mxu0 0.0
        %1868 = vmatpush1.xpose.msra.mxu0 0.0
        %1869 = vmatprep.subr.mxu0 0.0
        %1870 = vmatpush1.xpose.msra.mxu0 0.0
        %1871 = vmatprep.subr.mxu0 0.0
        %1872 = vmatpush1.xpose.msra.mxu0 0.0
        %1873 = vmatprep.subr.mxu0 0.0
        %1874 = vmatpush1.xpose.msra.mxu0 0.0
        %1875 = vmatprep.subr.mxu0 0.0
        %1876 = vmatpush1.xpose.msra.mxu0 0.0
        %1877 = vmatprep.subr.mxu0 0.0
        %1878 = vmatpush1.xpose.msra.mxu0 0.0
        %1879 = vmatprep.subr.mxu0 0.0
        %1880 = vmatpush1.xpose.msra.mxu0 0.0
        %1881 = vmatprep.subr.mxu0 0.0
        %1882 = vmatpush1.xpose.msra.mxu0 0.0
        %1883 = vmatprep.subr.mxu0 0.0
        %1884 = vmatpush1.xpose.msra.mxu0 %v1853
        %1885 = vmatprep.subr.mxu0 0.0
        %1886 = vmatpush1.xpose.msra.mxu0 %v1851
        %1887 = vmatprep.subr.mxu0 0.0
        %1888 = vmatpush2.xpose.msra.mxu0 0.0
        %1889 = vmatprep.subr.mxu0 0.0
        %1890 = vmatpush2.xpose.msra.mxu0 0.0
        %1891 = vmatprep.subr.mxu0 0.0
        %1892 = vmatpush2.xpose.msra.mxu0 0.0
        %1893 = vmatprep.subr.mxu0 0.0
        %1894 = vmatpush2.xpose.msra.mxu0 0.0
        %1895 = vmatprep.subr.mxu0 0.0
        %1896 = vmatpush2.xpose.msra.mxu0 0.0
        %1897 = vmatprep.subr.mxu0 0.0
        %1898 = vmatpush2.xpose.msra.mxu0 0.0
        %1899 = vmatprep.subr.mxu0 0.0
        %1900 = vmatpush2.xpose.msra.mxu0 0.0
        %1901 = vmatprep.subr.mxu0 0.0
        %1902 = vmatpush2.xpose.msra.mxu0 0.0
        %1903 = vmatprep.subr.mxu0 0.0
        %1904 = vmatpush2.xpose.msra.mxu0 0.0
        %1905 = vmatprep.subr.mxu0 0.0
        %1906 = vmatpush2.xpose.msra.mxu0 0.0
        %1907 = vmatprep.subr.mxu0 0.0
        %1908 = vmatpush2.xpose.msra.mxu0 0.0
        %1909 = vmatprep.subr.mxu0 0.0
        %1910 = vmatpush2.xpose.msra.mxu0 0.0
        %1911 = vmatprep.subr.mxu0 0.0
        %1912 = vmatpush2.xpose.msra.mxu0 0.0
        %1913 = vmatprep.subr.mxu0 0.0
        %1914 = vmatpush2.xpose.msra.mxu0 0.0
        %1915 = vmatprep.subr.mxu0 0.0
        %1916 = vmatpush2.xpose.msra.mxu0 0.0
        %1917 = vmatprep.subr.mxu0 0.0
        %1918 = vmatpush2.xpose.msra.mxu0 0.0
        %1919 = vmatprep.mubr.f32.mxu0 0.0
        %1920 = vmatmul.mubr.f32.gmra.mxu0 %v1849
        %v1921 = vpop.f32.mrf.mxu0
        %v1922 = vadd.f32 0.0, %v1921
        %v1923 = vpop.f32.mrf.mxu0
        %1924 = vdwg.mxu0
        %s1925 = scalar_lea.vmem [#allocation3], 40
        %v1926 = vld [vmem:[%s1925] sm:$0xff]
        %s1927 = scalar_lea.vmem [#allocation4], 40
        %v1928 = vld [vmem:[%s1927] sm:$0xff]
        %v1929 = vsel %vm636, %v1922, -inf
        %1930 = vmax.xlane.f32.xlu0 %v1929
        %v1931 = vpop.xlane.xlu0 %1930
        %v1932 = vmax.f32 %v1926, %v1931
        %v1933 = vsub.f32 %v1926, %v1932
        %v1934 = vmul.f32 %v1933, 1.442695
        %v1935 = vpow.pop %v1934
        %1937 = vset.pattern.permute.xlu0 0
        %1938 = vperm.xlu0 %1937, %v1932
        %v1939 = vpop.permute.xlu0 %1938
        %v1941 = vsub.f32 %v1922, %v1939
        %v1942 = vmul.f32 %v1941, 1.442695
        %v1943 = vpow.pop %v1942
        %v1945 = vsel %vm636, %v1943, 0
        %1947 = vmatprep.subr.mxu0 0.0
        %1948 = vmatpush1.msra.mxu0 0.0
        %1949 = vmatprep.subr.mxu0 0.0
        %1950 = vmatpush1.msra.mxu0 0.0
        %1951 = vmatprep.subr.mxu0 0.0
        %1952 = vmatpush1.msra.mxu0 0.0
        %1953 = vmatprep.subr.mxu0 0.0
        %1954 = vmatpush1.msra.mxu0 0.0
        %1955 = vmatprep.subr.mxu0 0.0
        %1956 = vmatpush1.msra.mxu0 0.0
        %1957 = vmatprep.subr.mxu0 0.0
        %1958 = vmatpush1.msra.mxu0 0.0
        %1959 = vmatprep.subr.mxu0 0.0
        %1960 = vmatpush1.msra.mxu0 0.0
        %1961 = vmatprep.subr.mxu0 0.0
        %1962 = vmatpush1.msra.mxu0 0.0
        %1963 = vmatprep.subr.mxu0 0.0
        %1964 = vmatpush1.msra.mxu0 0.0
        %1965 = vmatprep.subr.mxu0 0.0
        %1966 = vmatpush1.msra.mxu0 0.0
        %1967 = vmatprep.subr.mxu0 0.0
        %1968 = vmatpush1.msra.mxu0 0.0
        %1969 = vmatprep.subr.mxu0 0.0
        %1970 = vmatpush1.msra.mxu0 0.0
        %1971 = vmatprep.subr.mxu0 0.0
        %1972 = vmatpush1.msra.mxu0 0.0
        %1973 = vmatprep.subr.mxu0 0.0
        %1974 = vmatpush1.msra.mxu0 0.0
        %1975 = vmatprep.subr.mxu0 0.0
        %1976 = vmatpush1.msra.mxu0 1.0
        %1977 = vmatprep.subr.mxu0 0.0
        %1978 = vmatpush1.msra.mxu0 1.0
        %1979 = vmatprep.subr.mxu0 0.0
        %1980 = vmatpush2.msra.mxu0 0.0
        %1981 = vmatprep.subr.mxu0 0.0
        %1982 = vmatpush2.msra.mxu0 0.0
        %1983 = vmatprep.subr.mxu0 0.0
        %1984 = vmatpush2.msra.mxu0 0.0
        %1985 = vmatprep.subr.mxu0 0.0
        %1986 = vmatpush2.msra.mxu0 0.0
        %1987 = vmatprep.subr.mxu0 0.0
        %1988 = vmatpush2.msra.mxu0 0.0
        %1989 = vmatprep.subr.mxu0 0.0
        %1990 = vmatpush2.msra.mxu0 0.0
        %1991 = vmatprep.subr.mxu0 0.0
        %1992 = vmatpush2.msra.mxu0 0.0
        %1993 = vmatprep.subr.mxu0 0.0
        %1994 = vmatpush2.msra.mxu0 0.0
        %1995 = vmatprep.subr.mxu0 0.0
        %1996 = vmatpush2.msra.mxu0 0.0
        %1997 = vmatprep.subr.mxu0 0.0
        %1998 = vmatpush2.msra.mxu0 0.0
        %1999 = vmatprep.subr.mxu0 0.0
        %2000 = vmatpush2.msra.mxu0 0.0
        %2001 = vmatprep.subr.mxu0 0.0
        %2002 = vmatpush2.msra.mxu0 0.0
        %2003 = vmatprep.subr.mxu0 0.0
        %2004 = vmatpush2.msra.mxu0 0.0
        %2005 = vmatprep.subr.mxu0 0.0
        %2006 = vmatpush2.msra.mxu0 0.0
        %2007 = vmatprep.subr.mxu0 0.0
        %2008 = vmatpush2.msra.mxu0 0.0
        %2009 = vmatprep.subr.mxu0 0.0
        %2010 = vmatpush2.msra.mxu0 0.0
        %2011 = vmatprep.mubr.f32.mxu0 0.0
        %2012 = vmatmul.mubr.f32.gmra.mxu0 %v1945
        %v2013 = vpop.f32.mrf.mxu0
        %v2014 = vadd.f32 0.0, %v2013
        %v2015 = vpop.f32.mrf.mxu0
        %2016 = vdwg.mxu0
        %v2017 = vmul.f32 %v1935, %v1928
        %v2018 = vadd.f32 %v2017, %v2014
        %2019 = vst.msk [vmem:[%s1927] sm:$0xff] %vm727, %v2018
        %2020 = vst.msk [vmem:[%s1925] sm:$0xff] %vm727, %v1932
        %2022 = vset.pattern.permute.xlu0 0
        %2023 = vperm.xlu0 %2022, %v1935
        %v2024 = vpop.permute.xlu0 %2023
        %2026 = vrot.lane.b32.xlu0 %v552, 88
        %v2027 = vpop.permute.xlu0 %2026
        %2028 = vrot.lane.b32.xlu0 %v553, 88
        %v2029 = vpop.permute.xlu0 %2028
        %2032 = vmatprep.subr.mxu0 0.0
        %2033 = vmatpush1.msra.mxu0 0.0
        %2034 = vmatprep.subr.mxu0 0.0
        %2035 = vmatpush1.msra.mxu0 0.0
        %2036 = vmatprep.subr.mxu0 0.0
        %2037 = vmatpush1.msra.mxu0 0.0
        %2038 = vmatprep.subr.mxu0 0.0
        %2039 = vmatpush1.msra.mxu0 0.0
        %2040 = vmatprep.subr.mxu0 0.0
        %2041 = vmatpush1.msra.mxu0 0.0
        %2042 = vmatprep.subr.mxu0 0.0
        %2043 = vmatpush1.msra.mxu0 0.0
        %2044 = vmatprep.subr.mxu0 0.0
        %2045 = vmatpush1.msra.mxu0 0.0
        %2046 = vmatprep.subr.mxu0 0.0
        %2047 = vmatpush1.msra.mxu0 0.0
        %2048 = vmatprep.subr.mxu0 0.0
        %2049 = vmatpush1.msra.mxu0 0.0
        %2050 = vmatprep.subr.mxu0 0.0
        %2051 = vmatpush1.msra.mxu0 0.0
        %2052 = vmatprep.subr.mxu0 0.0
        %2053 = vmatpush1.msra.mxu0 0.0
        %2054 = vmatprep.subr.mxu0 0.0
        %2055 = vmatpush1.msra.mxu0 0.0
        %2056 = vmatprep.subr.mxu0 0.0
        %2057 = vmatpush1.msra.mxu0 0.0
        %2058 = vmatprep.subr.mxu0 0.0
        %2059 = vmatpush1.msra.mxu0 0.0
        %2060 = vmatprep.subr.mxu0 0.0
        %2061 = vmatpush1.msra.mxu0 %v2029
        %2062 = vmatprep.subr.mxu0 0.0
        %2063 = vmatpush1.msra.mxu0 %v2027
        %2064 = vmatprep.subr.mxu0 0.0
        %2065 = vmatpush2.msra.mxu0 0.0
        %2066 = vmatprep.subr.mxu0 0.0
        %2067 = vmatpush2.msra.mxu0 0.0
        %2068 = vmatprep.subr.mxu0 0.0
        %2069 = vmatpush2.msra.mxu0 0.0
        %2070 = vmatprep.subr.mxu0 0.0
        %2071 = vmatpush2.msra.mxu0 0.0
        %2072 = vmatprep.subr.mxu0 0.0
        %2073 = vmatpush2.msra.mxu0 0.0
        %2074 = vmatprep.subr.mxu0 0.0
        %2075 = vmatpush2.msra.mxu0 0.0
        %2076 = vmatprep.subr.mxu0 0.0
        %2077 = vmatpush2.msra.mxu0 0.0
        %2078 = vmatprep.subr.mxu0 0.0
        %2079 = vmatpush2.msra.mxu0 0.0
        %2080 = vmatprep.subr.mxu0 0.0
        %2081 = vmatpush2.msra.mxu0 0.0
        %2082 = vmatprep.subr.mxu0 0.0
        %2083 = vmatpush2.msra.mxu0 0.0
        %2084 = vmatprep.subr.mxu0 0.0
        %2085 = vmatpush2.msra.mxu0 0.0
        %2086 = vmatprep.subr.mxu0 0.0
        %2087 = vmatpush2.msra.mxu0 0.0
        %2088 = vmatprep.subr.mxu0 0.0
        %2089 = vmatpush2.msra.mxu0 0.0
        %2090 = vmatprep.subr.mxu0 0.0
        %2091 = vmatpush2.msra.mxu0 0.0
        %2092 = vmatprep.subr.mxu0 0.0
        %2093 = vmatpush2.msra.mxu0 0.0
        %2094 = vmatprep.subr.mxu0 0.0
        %2095 = vmatpush2.msra.mxu0 0.0
        %2096 = vmatprep.mubr.f32.mxu0 0.0
        %2097 = vmatmul.mubr.f32.gmra.mxu0 %v1945
        %v2098 = vpop.f32.mrf.mxu0
        %v2099 = vadd.f32 0.0, %v2098
        %v2100 = vpop.f32.mrf.mxu0
        %2101 = vdwg.mxu0
        %2102 = vrot.lane.b32.xlu0 %v549, 80
        %v2103 = vpop.permute.xlu0 %2102
        %2104 = vrot.lane.b32.xlu0 %v550, 80
        %v2105 = vpop.permute.xlu0 %2104
        %2106 = vrot.lane.b32.xlu0 %v551, 80
        %v2107 = vpop.permute.xlu0 %2106
        %v2108 = vsel %vm554, %v2103, 0
        %v2110 = vsel %vm554, %v2105, 0
        %v2112 = vsel %vm554, %v2107, 0
        %2114 = vmatprep.subr.mxu0 0.0
        %2115 = vmatpush1.xpose.msra.mxu0 0.0
        %2116 = vmatprep.subr.mxu0 0.0
        %2117 = vmatpush1.xpose.msra.mxu0 0.0
        %2118 = vmatprep.subr.mxu0 0.0
        %2119 = vmatpush1.xpose.msra.mxu0 0.0
        %2120 = vmatprep.subr.mxu0 0.0
        %2121 = vmatpush1.xpose.msra.mxu0 0.0
        %2122 = vmatprep.subr.mxu0 0.0
        %2123 = vmatpush1.xpose.msra.mxu0 0.0
        %2124 = vmatprep.subr.mxu0 0.0
        %2125 = vmatpush1.xpose.msra.mxu0 0.0
        %2126 = vmatprep.subr.mxu0 0.0
        %2127 = vmatpush1.xpose.msra.mxu0 0.0
        %2128 = vmatprep.subr.mxu0 0.0
        %2129 = vmatpush1.xpose.msra.mxu0 0.0
        %2130 = vmatprep.subr.mxu0 0.0
        %2131 = vmatpush1.xpose.msra.mxu0 0.0
        %2132 = vmatprep.subr.mxu0 0.0
        %2133 = vmatpush1.xpose.msra.mxu0 0.0
        %2134 = vmatprep.subr.mxu0 0.0
        %2135 = vmatpush1.xpose.msra.mxu0 0.0
        %2136 = vmatprep.subr.mxu0 0.0
        %2137 = vmatpush1.xpose.msra.mxu0 0.0
        %2138 = vmatprep.subr.mxu0 0.0
        %2139 = vmatpush1.xpose.msra.mxu0 0.0
        %2140 = vmatprep.subr.mxu0 0.0
        %2141 = vmatpush1.xpose.msra.mxu0 0.0
        %2142 = vmatprep.subr.mxu0 0.0
        %2143 = vmatpush1.xpose.msra.mxu0 %v2112
        %2144 = vmatprep.subr.mxu0 0.0
        %2145 = vmatpush1.xpose.msra.mxu0 %v2110
        %2146 = vmatprep.subr.mxu0 0.0
        %2147 = vmatpush2.xpose.msra.mxu0 0.0
        %2148 = vmatprep.subr.mxu0 0.0
        %2149 = vmatpush2.xpose.msra.mxu0 0.0
        %2150 = vmatprep.subr.mxu0 0.0
        %2151 = vmatpush2.xpose.msra.mxu0 0.0
        %2152 = vmatprep.subr.mxu0 0.0
        %2153 = vmatpush2.xpose.msra.mxu0 0.0
        %2154 = vmatprep.subr.mxu0 0.0
        %2155 = vmatpush2.xpose.msra.mxu0 0.0
        %2156 = vmatprep.subr.mxu0 0.0
        %2157 = vmatpush2.xpose.msra.mxu0 0.0
        %2158 = vmatprep.subr.mxu0 0.0
        %2159 = vmatpush2.xpose.msra.mxu0 0.0
        %2160 = vmatprep.subr.mxu0 0.0
        %2161 = vmatpush2.xpose.msra.mxu0 0.0
        %2162 = vmatprep.subr.mxu0 0.0
        %2163 = vmatpush2.xpose.msra.mxu0 0.0
        %2164 = vmatprep.subr.mxu0 0.0
        %2165 = vmatpush2.xpose.msra.mxu0 0.0
        %2166 = vmatprep.subr.mxu0 0.0
        %2167 = vmatpush2.xpose.msra.mxu0 0.0
        %2168 = vmatprep.subr.mxu0 0.0
        %2169 = vmatpush2.xpose.msra.mxu0 0.0
        %2170 = vmatprep.subr.mxu0 0.0
        %2171 = vmatpush2.xpose.msra.mxu0 0.0
        %2172 = vmatprep.subr.mxu0 0.0
        %2173 = vmatpush2.xpose.msra.mxu0 0.0
        %2174 = vmatprep.subr.mxu0 0.0
        %2175 = vmatpush2.xpose.msra.mxu0 0.0
        %2176 = vmatprep.subr.mxu0 0.0
        %2177 = vmatpush2.xpose.msra.mxu0 0.0
        %2178 = vmatprep.mubr.f32.mxu0 0.0
        %2179 = vmatmul.mubr.f32.gmra.mxu0 %v2108
        %v2180 = vpop.f32.mrf.mxu0
        %v2181 = vadd.f32 0.0, %v2180
        %v2182 = vpop.f32.mrf.mxu0
        %2183 = vdwg.mxu0
        %s2184 = scalar_lea.vmem [#allocation3], 48
        %v2185 = vld [vmem:[%s2184] sm:$0xff]
        %s2186 = scalar_lea.vmem [#allocation4], 48
        %v2187 = vld [vmem:[%s2186] sm:$0xff]
        %v2188 = vsel %vm636, %v2181, -inf
        %2189 = vmax.xlane.f32.xlu0 %v2188
        %v2190 = vpop.xlane.xlu0 %2189
        %v2191 = vmax.f32 %v2185, %v2190
        %v2192 = vsub.f32 %v2185, %v2191
        %v2193 = vmul.f32 %v2192, 1.442695
        %v2194 = vpow.pop %v2193
        %2196 = vset.pattern.permute.xlu0 0
        %2197 = vperm.xlu0 %2196, %v2191
        %v2198 = vpop.permute.xlu0 %2197
        %v2200 = vsub.f32 %v2181, %v2198
        %v2201 = vmul.f32 %v2200, 1.442695
        %v2202 = vpow.pop %v2201
        %v2204 = vsel %vm636, %v2202, 0
        %2206 = vmatprep.subr.mxu0 0.0
        %2207 = vmatpush1.msra.mxu0 0.0
        %2208 = vmatprep.subr.mxu0 0.0
        %2209 = vmatpush1.msra.mxu0 0.0
        %2210 = vmatprep.subr.mxu0 0.0
        %2211 = vmatpush1.msra.mxu0 0.0
        %2212 = vmatprep.subr.mxu0 0.0
        %2213 = vmatpush1.msra.mxu0 0.0
        %2214 = vmatprep.subr.mxu0 0.0
        %2215 = vmatpush1.msra.mxu0 0.0
        %2216 = vmatprep.subr.mxu0 0.0
        %2217 = vmatpush1.msra.mxu0 0.0
        %2218 = vmatprep.subr.mxu0 0.0
        %2219 = vmatpush1.msra.mxu0 0.0
        %2220 = vmatprep.subr.mxu0 0.0
        %2221 = vmatpush1.msra.mxu0 0.0
        %2222 = vmatprep.subr.mxu0 0.0
        %2223 = vmatpush1.msra.mxu0 0.0
        %2224 = vmatprep.subr.mxu0 0.0
        %2225 = vmatpush1.msra.mxu0 0.0
        %2226 = vmatprep.subr.mxu0 0.0
        %2227 = vmatpush1.msra.mxu0 0.0
        %2228 = vmatprep.subr.mxu0 0.0
        %2229 = vmatpush1.msra.mxu0 0.0
        %2230 = vmatprep.subr.mxu0 0.0
        %2231 = vmatpush1.msra.mxu0 0.0
        %2232 = vmatprep.subr.mxu0 0.0
        %2233 = vmatpush1.msra.mxu0 0.0
        %2234 = vmatprep.subr.mxu0 0.0
        %2235 = vmatpush1.msra.mxu0 1.0
        %2236 = vmatprep.subr.mxu0 0.0
        %2237 = vmatpush1.msra.mxu0 1.0
        %2238 = vmatprep.subr.mxu0 0.0
        %2239 = vmatpush2.msra.mxu0 0.0
        %2240 = vmatprep.subr.mxu0 0.0
        %2241 = vmatpush2.msra.mxu0 0.0
        %2242 = vmatprep.subr.mxu0 0.0
        %2243 = vmatpush2.msra.mxu0 0.0
        %2244 = vmatprep.subr.mxu0 0.0
        %2245 = vmatpush2.msra.mxu0 0.0
        %2246 = vmatprep.subr.mxu0 0.0
        %2247 = vmatpush2.msra.mxu0 0.0
        %2248 = vmatprep.subr.mxu0 0.0
        %2249 = vmatpush2.msra.mxu0 0.0
        %2250 = vmatprep.subr.mxu0 0.0
        %2251 = vmatpush2.msra.mxu0 0.0
        %2252 = vmatprep.subr.mxu0 0.0
        %2253 = vmatpush2.msra.mxu0 0.0
        %2254 = vmatprep.subr.mxu0 0.0
        %2255 = vmatpush2.msra.mxu0 0.0
        %2256 = vmatprep.subr.mxu0 0.0
        %2257 = vmatpush2.msra.mxu0 0.0
        %2258 = vmatprep.subr.mxu0 0.0
        %2259 = vmatpush2.msra.mxu0 0.0
        %2260 = vmatprep.subr.mxu0 0.0
        %2261 = vmatpush2.msra.mxu0 0.0
        %2262 = vmatprep.subr.mxu0 0.0
        %2263 = vmatpush2.msra.mxu0 0.0
        %2264 = vmatprep.subr.mxu0 0.0
        %2265 = vmatpush2.msra.mxu0 0.0
        %2266 = vmatprep.subr.mxu0 0.0
        %2267 = vmatpush2.msra.mxu0 0.0
        %2268 = vmatprep.subr.mxu0 0.0
        %2269 = vmatpush2.msra.mxu0 0.0
        %2270 = vmatprep.mubr.f32.mxu0 0.0
        %2271 = vmatmul.mubr.f32.gmra.mxu0 %v2204
        %v2272 = vpop.f32.mrf.mxu0
        %v2273 = vadd.f32 0.0, %v2272
        %v2274 = vpop.f32.mrf.mxu0
        %2275 = vdwg.mxu0
        %v2276 = vmul.f32 %v2194, %v2187
        %v2277 = vadd.f32 %v2276, %v2273
        %2278 = vst.msk [vmem:[%s2186] sm:$0xff] %vm727, %v2277
        %2279 = vst.msk [vmem:[%s2184] sm:$0xff] %vm727, %v2191
        %2281 = vset.pattern.permute.xlu0 0
        %2282 = vperm.xlu0 %2281, %v2194
        %v2283 = vpop.permute.xlu0 %2282
        %2285 = vrot.lane.b32.xlu0 %v552, 80
        %v2286 = vpop.permute.xlu0 %2285
        %2287 = vrot.lane.b32.xlu0 %v553, 80
        %v2288 = vpop.permute.xlu0 %2287
        %2291 = vmatprep.subr.mxu0 0.0
        %2292 = vmatpush1.msra.mxu0 0.0
        %2293 = vmatprep.subr.mxu0 0.0
        %2294 = vmatpush1.msra.mxu0 0.0
        %2295 = vmatprep.subr.mxu0 0.0
        %2296 = vmatpush1.msra.mxu0 0.0
        %2297 = vmatprep.subr.mxu0 0.0
        %2298 = vmatpush1.msra.mxu0 0.0
        %2299 = vmatprep.subr.mxu0 0.0
        %2300 = vmatpush1.msra.mxu0 0.0
        %2301 = vmatprep.subr.mxu0 0.0
        %2302 = vmatpush1.msra.mxu0 0.0
        %2303 = vmatprep.subr.mxu0 0.0
        %2304 = vmatpush1.msra.mxu0 0.0
        %2305 = vmatprep.subr.mxu0 0.0
        %2306 = vmatpush1.msra.mxu0 0.0
        %2307 = vmatprep.subr.mxu0 0.0
        %2308 = vmatpush1.msra.mxu0 0.0
        %2309 = vmatprep.subr.mxu0 0.0
        %2310 = vmatpush1.msra.mxu0 0.0
        %2311 = vmatprep.subr.mxu0 0.0
        %2312 = vmatpush1.msra.mxu0 0.0
        %2313 = vmatprep.subr.mxu0 0.0
        %2314 = vmatpush1.msra.mxu0 0.0
        %2315 = vmatprep.subr.mxu0 0.0
        %2316 = vmatpush1.msra.mxu0 0.0
        %2317 = vmatprep.subr.mxu0 0.0
        %2318 = vmatpush1.msra.mxu0 0.0
        %2319 = vmatprep.subr.mxu0 0.0
        %2320 = vmatpush1.msra.mxu0 %v2288
        %2321 = vmatprep.subr.mxu0 0.0
        %2322 = vmatpush1.msra.mxu0 %v2286
        %2323 = vmatprep.subr.mxu0 0.0
        %2324 = vmatpush2.msra.mxu0 0.0
        %2325 = vmatprep.subr.mxu0 0.0
        %2326 = vmatpush2.msra.mxu0 0.0
        %2327 = vmatprep.subr.mxu0 0.0
        %2328 = vmatpush2.msra.mxu0 0.0
        %2329 = vmatprep.subr.mxu0 0.0
        %2330 = vmatpush2.msra.mxu0 0.0
        %2331 = vmatprep.subr.mxu0 0.0
        %2332 = vmatpush2.msra.mxu0 0.0
        %2333 = vmatprep.subr.mxu0 0.0
        %2334 = vmatpush2.msra.mxu0 0.0
        %2335 = vmatprep.subr.mxu0 0.0
        %2336 = vmatpush2.msra.mxu0 0.0
        %2337 = vmatprep.subr.mxu0 0.0
        %2338 = vmatpush2.msra.mxu0 0.0
        %2339 = vmatprep.subr.mxu0 0.0
        %2340 = vmatpush2.msra.mxu0 0.0
        %2341 = vmatprep.subr.mxu0 0.0
        %2342 = vmatpush2.msra.mxu0 0.0
        %2343 = vmatprep.subr.mxu0 0.0
        %2344 = vmatpush2.msra.mxu0 0.0
        %2345 = vmatprep.subr.mxu0 0.0
        %2346 = vmatpush2.msra.mxu0 0.0
        %2347 = vmatprep.subr.mxu0 0.0
        %2348 = vmatpush2.msra.mxu0 0.0
        %2349 = vmatprep.subr.mxu0 0.0
        %2350 = vmatpush2.msra.mxu0 0.0
        %2351 = vmatprep.subr.mxu0 0.0
        %2352 = vmatpush2.msra.mxu0 0.0
        %2353 = vmatprep.subr.mxu0 0.0
        %2354 = vmatpush2.msra.mxu0 0.0
        %2355 = vmatprep.mubr.f32.mxu0 0.0
        %2356 = vmatmul.mubr.f32.gmra.mxu0 %v2204
        %v2357 = vpop.f32.mrf.mxu0
        %v2358 = vadd.f32 0.0, %v2357
        %v2359 = vpop.f32.mrf.mxu0
        %2360 = vdwg.mxu0
        %2361 = vrot.lane.b32.xlu0 %v549, 72
        %v2362 = vpop.permute.xlu0 %2361
        %2363 = vrot.lane.b32.xlu0 %v550, 72
        %v2364 = vpop.permute.xlu0 %2363
        %2365 = vrot.lane.b32.xlu0 %v551, 72
        %v2366 = vpop.permute.xlu0 %2365
        %v2367 = vsel %vm554, %v2362, 0
        %v2369 = vsel %vm554, %v2364, 0
        %v2371 = vsel %vm554, %v2366, 0
        %2373 = vmatprep.subr.mxu0 0.0
        %2374 = vmatpush1.xpose.msra.mxu0 0.0
        %2375 = vmatprep.subr.mxu0 0.0
        %2376 = vmatpush1.xpose.msra.mxu0 0.0
        %2377 = vmatprep.subr.mxu0 0.0
        %2378 = vmatpush1.xpose.msra.mxu0 0.0
        %2379 = vmatprep.subr.mxu0 0.0
        %2380 = vmatpush1.xpose.msra.mxu0 0.0
        %2381 = vmatprep.subr.mxu0 0.0
        %2382 = vmatpush1.xpose.msra.mxu0 0.0
        %2383 = vmatprep.subr.mxu0 0.0
        %2384 = vmatpush1.xpose.msra.mxu0 0.0
        %2385 = vmatprep.subr.mxu0 0.0
        %2386 = vmatpush1.xpose.msra.mxu0 0.0
        %2387 = vmatprep.subr.mxu0 0.0
        %2388 = vmatpush1.xpose.msra.mxu0 0.0
        %2389 = vmatprep.subr.mxu0 0.0
        %2390 = vmatpush1.xpose.msra.mxu0 0.0
        %2391 = vmatprep.subr.mxu0 0.0
        %2392 = vmatpush1.xpose.msra.mxu0 0.0
        %2393 = vmatprep.subr.mxu0 0.0
        %2394 = vmatpush1.xpose.msra.mxu0 0.0
        %2395 = vmatprep.subr.mxu0 0.0
        %2396 = vmatpush1.xpose.msra.mxu0 0.0
        %2397 = vmatprep.subr.mxu0 0.0
        %2398 = vmatpush1.xpose.msra.mxu0 0.0
        %2399 = vmatprep.subr.mxu0 0.0
        %2400 = vmatpush1.xpose.msra.mxu0 0.0
        %2401 = vmatprep.subr.mxu0 0.0
        %2402 = vmatpush1.xpose.msra.mxu0 %v2371
        %2403 = vmatprep.subr.mxu0 0.0
        %2404 = vmatpush1.xpose.msra.mxu0 %v2369
        %2405 = vmatprep.subr.mxu0 0.0
        %2406 = vmatpush2.xpose.msra.mxu0 0.0
        %2407 = vmatprep.subr.mxu0 0.0
        %2408 = vmatpush2.xpose.msra.mxu0 0.0
        %2409 = vmatprep.subr.mxu0 0.0
        %2410 = vmatpush2.xpose.msra.mxu0 0.0
        %2411 = vmatprep.subr.mxu0 0.0
        %2412 = vmatpush2.xpose.msra.mxu0 0.0
        %2413 = vmatprep.subr.mxu0 0.0
        %2414 = vmatpush2.xpose.msra.mxu0 0.0
        %2415 = vmatprep.subr.mxu0 0.0
        %2416 = vmatpush2.xpose.msra.mxu0 0.0
        %2417 = vmatprep.subr.mxu0 0.0
        %2418 = vmatpush2.xpose.msra.mxu0 0.0
        %2419 = vmatprep.subr.mxu0 0.0
        %2420 = vmatpush2.xpose.msra.mxu0 0.0
        %2421 = vmatprep.subr.mxu0 0.0
        %2422 = vmatpush2.xpose.msra.mxu0 0.0
        %2423 = vmatprep.subr.mxu0 0.0
        %2424 = vmatpush2.xpose.msra.mxu0 0.0
        %2425 = vmatprep.subr.mxu0 0.0
        %2426 = vmatpush2.xpose.msra.mxu0 0.0
        %2427 = vmatprep.subr.mxu0 0.0
        %2428 = vmatpush2.xpose.msra.mxu0 0.0
        %2429 = vmatprep.subr.mxu0 0.0
        %2430 = vmatpush2.xpose.msra.mxu0 0.0
        %2431 = vmatprep.subr.mxu0 0.0
        %2432 = vmatpush2.xpose.msra.mxu0 0.0
        %2433 = vmatprep.subr.mxu0 0.0
        %2434 = vmatpush2.xpose.msra.mxu0 0.0
        %2435 = vmatprep.subr.mxu0 0.0
        %2436 = vmatpush2.xpose.msra.mxu0 0.0
        %2437 = vmatprep.mubr.f32.mxu0 0.0
        %2438 = vmatmul.mubr.f32.gmra.mxu0 %v2367
        %v2439 = vpop.f32.mrf.mxu0
        %v2440 = vadd.f32 0.0, %v2439
        %v2441 = vpop.f32.mrf.mxu0
        %2442 = vdwg.mxu0
        %s2443 = scalar_lea.vmem [#allocation3], 56
        %v2444 = vld [vmem:[%s2443] sm:$0xff]
        %s2445 = scalar_lea.vmem [#allocation4], 56
        %v2446 = vld [vmem:[%s2445] sm:$0xff]
        %v2447 = vsel %vm636, %v2440, -inf
        %2448 = vmax.xlane.f32.xlu0 %v2447
        %v2449 = vpop.xlane.xlu0 %2448
        %v2450 = vmax.f32 %v2444, %v2449
        %v2451 = vsub.f32 %v2444, %v2450
        %v2452 = vmul.f32 %v2451, 1.442695
        %v2453 = vpow.pop %v2452
        %2455 = vset.pattern.permute.xlu0 0
        %2456 = vperm.xlu0 %2455, %v2450
        %v2457 = vpop.permute.xlu0 %2456
        %v2459 = vsub.f32 %v2440, %v2457
        %v2460 = vmul.f32 %v2459, 1.442695
        %v2461 = vpow.pop %v2460
        %v2463 = vsel %vm636, %v2461, 0
        %2465 = vmatprep.subr.mxu0 0.0
        %2466 = vmatpush1.msra.mxu0 0.0
        %2467 = vmatprep.subr.mxu0 0.0
        %2468 = vmatpush1.msra.mxu0 0.0
        %2469 = vmatprep.subr.mxu0 0.0
        %2470 = vmatpush1.msra.mxu0 0.0
        %2471 = vmatprep.subr.mxu0 0.0
        %2472 = vmatpush1.msra.mxu0 0.0
        %2473 = vmatprep.subr.mxu0 0.0
        %2474 = vmatpush1.msra.mxu0 0.0
        %2475 = vmatprep.subr.mxu0 0.0
        %2476 = vmatpush1.msra.mxu0 0.0
        %2477 = vmatprep.subr.mxu0 0.0
        %2478 = vmatpush1.msra.mxu0 0.0
        %2479 = vmatprep.subr.mxu0 0.0
        %2480 = vmatpush1.msra.mxu0 0.0
        %2481 = vmatprep.subr.mxu0 0.0
        %2482 = vmatpush1.msra.mxu0 0.0
        %2483 = vmatprep.subr.mxu0 0.0
        %2484 = vmatpush1.msra.mxu0 0.0
        %2485 = vmatprep.subr.mxu0 0.0
        %2486 = vmatpush1.msra.mxu0 0.0
        %2487 = vmatprep.subr.mxu0 0.0
        %2488 = vmatpush1.msra.mxu0 0.0
        %2489 = vmatprep.subr.mxu0 0.0
        %2490 = vmatpush1.msra.mxu0 0.0
        %2491 = vmatprep.subr.mxu0 0.0
        %2492 = vmatpush1.msra.mxu0 0.0
        %2493 = vmatprep.subr.mxu0 0.0
        %2494 = vmatpush1.msra.mxu0 1.0
        %2495 = vmatprep.subr.mxu0 0.0
        %2496 = vmatpush1.msra.mxu0 1.0
        %2497 = vmatprep.subr.mxu0 0.0
        %2498 = vmatpush2.msra.mxu0 0.0
        %2499 = vmatprep.subr.mxu0 0.0
        %2500 = vmatpush2.msra.mxu0 0.0
        %2501 = vmatprep.subr.mxu0 0.0
        %2502 = vmatpush2.msra.mxu0 0.0
        %2503 = vmatprep.subr.mxu0 0.0
        %2504 = vmatpush2.msra.mxu0 0.0
        %2505 = vmatprep.subr.mxu0 0.0
        %2506 = vmatpush2.msra.mxu0 0.0
        %2507 = vmatprep.subr.mxu0 0.0
        %2508 = vmatpush2.msra.mxu0 0.0
        %2509 = vmatprep.subr.mxu0 0.0
        %2510 = vmatpush2.msra.mxu0 0.0
        %2511 = vmatprep.subr.mxu0 0.0
        %2512 = vmatpush2.msra.mxu0 0.0
        %2513 = vmatprep.subr.mxu0 0.0
        %2514 = vmatpush2.msra.mxu0 0.0
        %2515 = vmatprep.subr.mxu0 0.0
        %2516 = vmatpush2.msra.mxu0 0.0
        %2517 = vmatprep.subr.mxu0 0.0
        %2518 = vmatpush2.msra.mxu0 0.0
        %2519 = vmatprep.subr.mxu0 0.0
        %2520 = vmatpush2.msra.mxu0 0.0
        %2521 = vmatprep.subr.mxu0 0.0
        %2522 = vmatpush2.msra.mxu0 0.0
        %2523 = vmatprep.subr.mxu0 0.0
        %2524 = vmatpush2.msra.mxu0 0.0
        %2525 = vmatprep.subr.mxu0 0.0
        %2526 = vmatpush2.msra.mxu0 0.0
        %2527 = vmatprep.subr.mxu0 0.0
        %2528 = vmatpush2.msra.mxu0 0.0
        %2529 = vmatprep.mubr.f32.mxu0 0.0
        %2530 = vmatmul.mubr.f32.gmra.mxu0 %v2463
        %v2531 = vpop.f32.mrf.mxu0
        %v2532 = vadd.f32 0.0, %v2531
        %v2533 = vpop.f32.mrf.mxu0
        %2534 = vdwg.mxu0
        %v2535 = vmul.f32 %v2453, %v2446
        %v2536 = vadd.f32 %v2535, %v2532
        %2537 = vst.msk [vmem:[%s2445] sm:$0xff] %vm727, %v2536
        %2538 = vst.msk [vmem:[%s2443] sm:$0xff] %vm727, %v2450
        %2540 = vset.pattern.permute.xlu0 0
        %2541 = vperm.xlu0 %2540, %v2453
        %v2542 = vpop.permute.xlu0 %2541
        %2544 = vrot.lane.b32.xlu0 %v552, 72
        %v2545 = vpop.permute.xlu0 %2544
        %2546 = vrot.lane.b32.xlu0 %v553, 72
        %v2547 = vpop.permute.xlu0 %2546
        %2550 = vmatprep.subr.mxu0 0.0
        %2551 = vmatpush1.msra.mxu0 0.0
        %2552 = vmatprep.subr.mxu0 0.0
        %2553 = vmatpush1.msra.mxu0 0.0
        %2554 = vmatprep.subr.mxu0 0.0
        %2555 = vmatpush1.msra.mxu0 0.0
        %2556 = vmatprep.subr.mxu0 0.0
        %2557 = vmatpush1.msra.mxu0 0.0
        %2558 = vmatprep.subr.mxu0 0.0
        %2559 = vmatpush1.msra.mxu0 0.0
        %2560 = vmatprep.subr.mxu0 0.0
        %2561 = vmatpush1.msra.mxu0 0.0
        %2562 = vmatprep.subr.mxu0 0.0
        %2563 = vmatpush1.msra.mxu0 0.0
        %2564 = vmatprep.subr.mxu0 0.0
        %2565 = vmatpush1.msra.mxu0 0.0
        %2566 = vmatprep.subr.mxu0 0.0
        %2567 = vmatpush1.msra.mxu0 0.0
        %2568 = vmatprep.subr.mxu0 0.0
        %2569 = vmatpush1.msra.mxu0 0.0
        %2570 = vmatprep.subr.mxu0 0.0
        %2571 = vmatpush1.msra.mxu0 0.0
        %2572 = vmatprep.subr.mxu0 0.0
        %2573 = vmatpush1.msra.mxu0 0.0
        %2574 = vmatprep.subr.mxu0 0.0
        %2575 = vmatpush1.msra.mxu0 0.0
        %2576 = vmatprep.subr.mxu0 0.0
        %2577 = vmatpush1.msra.mxu0 0.0
        %2578 = vmatprep.subr.mxu0 0.0
        %2579 = vmatpush1.msra.mxu0 %v2547
        %2580 = vmatprep.subr.mxu0 0.0
        %2581 = vmatpush1.msra.mxu0 %v2545
        %2582 = vmatprep.subr.mxu0 0.0
        %2583 = vmatpush2.msra.mxu0 0.0
        %2584 = vmatprep.subr.mxu0 0.0
        %2585 = vmatpush2.msra.mxu0 0.0
        %2586 = vmatprep.subr.mxu0 0.0
        %2587 = vmatpush2.msra.mxu0 0.0
        %2588 = vmatprep.subr.mxu0 0.0
        %2589 = vmatpush2.msra.mxu0 0.0
        %2590 = vmatprep.subr.mxu0 0.0
        %2591 = vmatpush2.msra.mxu0 0.0
        %2592 = vmatprep.subr.mxu0 0.0
        %2593 = vmatpush2.msra.mxu0 0.0
        %2594 = vmatprep.subr.mxu0 0.0
        %2595 = vmatpush2.msra.mxu0 0.0
        %2596 = vmatprep.subr.mxu0 0.0
        %2597 = vmatpush2.msra.mxu0 0.0
        %2598 = vmatprep.subr.mxu0 0.0
        %2599 = vmatpush2.msra.mxu0 0.0
        %2600 = vmatprep.subr.mxu0 0.0
        %2601 = vmatpush2.msra.mxu0 0.0
        %2602 = vmatprep.subr.mxu0 0.0
        %2603 = vmatpush2.msra.mxu0 0.0
        %2604 = vmatprep.subr.mxu0 0.0
        %2605 = vmatpush2.msra.mxu0 0.0
        %2606 = vmatprep.subr.mxu0 0.0
        %2607 = vmatpush2.msra.mxu0 0.0
        %2608 = vmatprep.subr.mxu0 0.0
        %2609 = vmatpush2.msra.mxu0 0.0
        %2610 = vmatprep.subr.mxu0 0.0
        %2611 = vmatpush2.msra.mxu0 0.0
        %2612 = vmatprep.subr.mxu0 0.0
        %2613 = vmatpush2.msra.mxu0 0.0
        %2614 = vmatprep.mubr.f32.mxu0 0.0
        %2615 = vmatmul.mubr.f32.gmra.mxu0 %v2463
        %v2616 = vpop.f32.mrf.mxu0
        %v2617 = vadd.f32 0.0, %v2616
        %v2618 = vpop.f32.mrf.mxu0
        %2619 = vdwg.mxu0
        %v2620 = vsel %vm554, %v733, %v986
        %v2621 = vsel %vm636, %v2620, %v1247
        %vm2622 = vcmask 195584
        %v2623 = vsel %vm2622, %v2621, %v1506
        %vm2624 = vcmask 261120
        %v2625 = vsel %vm2624, %v2623, %v1765
        %vm2626 = vcmask 326656
        %v2627 = vsel %vm2626, %v2625, %v2024
        %vm2628 = vcmask 392192
        %v2629 = vsel %vm2628, %v2627, %v2283
        %vm2630 = vcmask 457728
        %v2631 = vsel %vm2630, %v2629, %v2542
        %2633 = vrot.lane.b32.xlu0 %v1063, 8
        %v2634 = vpop.permute.xlu0 %2633
        %2637 = vrot.lane.b32.xlu0 %v1322, 16
        %v2638 = vpop.permute.xlu0 %2637
        %2641 = vrot.lane.b32.xlu0 %v1581, 24
        %v2642 = vpop.permute.xlu0 %2641
        %2645 = vrot.lane.b32.xlu0 %v1840, 32
        %v2646 = vpop.permute.xlu0 %2645
        %2649 = vrot.lane.b32.xlu0 %v2099, 40
        %v2650 = vpop.permute.xlu0 %2649
        %2653 = vrot.lane.b32.xlu0 %v2358, 48
        %v2654 = vpop.permute.xlu0 %2653
        %2657 = vrot.lane.b32.xlu0 %v2617, 56
        %v2658 = vpop.permute.xlu0 %2657
        %v2660 = vsel %vm554, %v802, %v2634
        %v2661 = vsel %vm636, %v2660, %v2638
        %v2662 = vsel %vm2622, %v2661, %v2642
        %v2663 = vsel %vm2624, %v2662, %v2646
        %v2664 = vsel %vm2626, %v2663, %v2650
        %v2665 = vsel %vm2628, %v2664, %v2654
        %v2666 = vsel %vm2630, %v2665, %v2658
        %v2667 = vld [vmem:[#allocation5] sm:$0xff]
        %v2668 = vmul.f32 %v2631, %v2667
        %v2669 = vadd.f32 %v2668, %v2666
        %vm2670 = vcmask 523264
        %2671 = vst.msk [vmem:[#allocation5] sm:$0xff] %vm2670, %v2669
        %p2672 = scmp.eq.s32.totalorder %s35, 1
        // Predicated region
        $region73: #{tpu_custom_call.1} parent=47 // pred_check
          %p2673 = pneg %p2672
        $region74: #{tpu_custom_call.1} parent=47 // pred_check_branch
          %2675 = sbr.rel (%p2673) target = $region76
        $region75: #{tpu_custom_call.1} parent=47 // pred_region
          %v2676 = vld [vmem:[#allocation4] sm:$0xff]
          %v2677 = vrcp.pop %v2676
          %2679 = vset.pattern.permute.xlu0 0
          %2680 = vperm.xlu0 %2679, %v2677
          %v2681 = vpop.permute.xlu0 %2680
          %v2683 = vld [vmem:[%s889] sm:$0xff]
          %v2684 = vrcp.pop %v2683
          %2686 = vset.pattern.permute.xlu0 0
          %2687 = vperm.xlu0 %2686, %v2684
          %v2688 = vpop.permute.xlu0 %2687
          %v2690 = vld [vmem:[%s1150] sm:$0xff]
          %v2691 = vrcp.pop %v2690
          %2693 = vset.pattern.permute.xlu0 0
          %2694 = vperm.xlu0 %2693, %v2691
          %v2695 = vpop.permute.xlu0 %2694
          %v2697 = vld [vmem:[%s1409] sm:$0xff]
          %v2698 = vrcp.pop %v2697
          %2700 = vset.pattern.permute.xlu0 0
          %2701 = vperm.xlu0 %2700, %v2698
          %v2702 = vpop.permute.xlu0 %2701
          %v2704 = vld [vmem:[%s1668] sm:$0xff]
          %v2705 = vrcp.pop %v2704
          %2707 = vset.pattern.permute.xlu0 0
          %2708 = vperm.xlu0 %2707, %v2705
          %v2709 = vpop.permute.xlu0 %2708
          %v2711 = vld [vmem:[%s1927] sm:$0xff]
          %v2712 = vrcp.pop %v2711
          %2714 = vset.pattern.permute.xlu0 0
          %2715 = vperm.xlu0 %2714, %v2712
          %v2716 = vpop.permute.xlu0 %2715
          %v2718 = vld [vmem:[%s2186] sm:$0xff]
          %v2719 = vrcp.pop %v2718
          %2721 = vset.pattern.permute.xlu0 0
          %2722 = vperm.xlu0 %2721, %v2719
          %v2723 = vpop.permute.xlu0 %2722
          %v2725 = vld [vmem:[%s2445] sm:$0xff]
          %v2726 = vrcp.pop %v2725
          %2728 = vset.pattern.permute.xlu0 0
          %2729 = vperm.xlu0 %2728, %v2726
          %v2730 = vpop.permute.xlu0 %2729
          %v2732 = vsel %vm554, %v2681, %v2688
          %v2733 = vsel %vm636, %v2732, %v2695
          %v2734 = vsel %vm2622, %v2733, %v2702
          %v2735 = vsel %vm2624, %v2734, %v2709
          %v2736 = vsel %vm2626, %v2735, %v2716
          %v2737 = vsel %vm2628, %v2736, %v2723
          %v2738 = vsel %vm2630, %v2737, %v2730
          %v2739 = vld [vmem:[#allocation5] sm:$0xff]
          %v2740 = vmul.f32 %v2739, %v2738
          %v2741 = vld [vmem:[#allocation14] sm:$0xff]
          %v2742 = vld [vmem:[#allocation14 + $0x8] sm:$0xff]
          %v2743 = vld [vmem:[#allocation14 + $0x10] sm:$0xff]
          %v2744 = vld [vmem:[#allocation14 + $0x18] sm:$0xff]
          %v2745 = vld [vmem:[#allocation14 + $0x20] sm:$0xff]
          %v2746 = vld [vmem:[#allocation14 + $0x28] sm:$0xff]
          %v2747 = vld [vmem:[#allocation14 + $0x30] sm:$0xff]
          %v2748 = vld [vmem:[#allocation14 + $0x38] sm:$0xff]
          %v2749 = vld [vmem:[%s6] sm:$0x1]
          %v2751 = vlaneseq
          %v2752 = vshrl.u32 %v2751, 7
          %v2753 = vsub.s32 0, %v2752
          %v2754 = vrot.slane %v2749, %v2753
          %v2757 = vsel %vm2670, %v2740, 0
          %2759 = vmatprep.subr.mxu0 0.0
          %2760 = vmatpush1.msra.mxu0 0.0
          %2761 = vmatprep.subr.mxu0 0.0
          %2762 = vmatpush1.msra.mxu0 0.0
          %2763 = vmatprep.subr.mxu0 0.0
          %2764 = vmatpush1.msra.mxu0 0.0
          %2765 = vmatprep.subr.mxu0 0.0
          %2766 = vmatpush1.msra.mxu0 0.0
          %2767 = vmatprep.subr.mxu0 0.0
          %2768 = vmatpush1.msra.mxu0 0.0
          %2769 = vmatprep.subr.mxu0 0.0
          %2770 = vmatpush1.msra.mxu0 0.0
          %2771 = vmatprep.subr.mxu0 0.0
          %2772 = vmatpush1.msra.mxu0 0.0
          %2773 = vmatprep.subr.mxu0 0.0
          %2774 = vmatpush1.msra.mxu0 0.0
          %2775 = vmatprep.subr.mxu0 0.0
          %2776 = vmatpush1.msra.mxu0 %v2748
          %2777 = vmatprep.subr.mxu0 0.0
          %2778 = vmatpush1.msra.mxu0 %v2747
          %2779 = vmatprep.subr.mxu0 0.0
          %2780 = vmatpush1.msra.mxu0 %v2746
          %2781 = vmatprep.subr.mxu0 0.0
          %2782 = vmatpush1.msra.mxu0 %v2745
          %2783 = vmatprep.subr.mxu0 0.0
          %2784 = vmatpush1.msra.mxu0 %v2744
          %2785 = vmatprep.subr.mxu0 0.0
          %2786 = vmatpush1.msra.mxu0 %v2743
          %2787 = vmatprep.subr.mxu0 0.0
          %2788 = vmatpush1.msra.mxu0 %v2742
          %2789 = vmatprep.subr.mxu0 0.0
          %2790 = vmatpush1.msra.mxu0 %v2741
          %2791 = vmatprep.subr.mxu0 0.0
          %2792 = vmatpush2.msra.mxu0 0.0
          %2793 = vmatprep.subr.mxu0 0.0
          %2794 = vmatpush2.msra.mxu0 0.0
          %2795 = vmatprep.subr.mxu0 0.0
          %2796 = vmatpush2.msra.mxu0 0.0
          %2797 = vmatprep.subr.mxu0 0.0
          %2798 = vmatpush2.msra.mxu0 0.0
          %2799 = vmatprep.subr.mxu0 0.0
          %2800 = vmatpush2.msra.mxu0 0.0
          %2801 = vmatprep.subr.mxu0 0.0
          %2802 = vmatpush2.msra.mxu0 0.0
          %2803 = vmatprep.subr.mxu0 0.0
          %2804 = vmatpush2.msra.mxu0 0.0
          %2805 = vmatprep.subr.mxu0 0.0
          %2806 = vmatpush2.msra.mxu0 0.0
          %2807 = vmatprep.subr.mxu0 0.0
          %2808 = vmatpush2.msra.mxu0 0.0
          %2809 = vmatprep.subr.mxu0 0.0
          %2810 = vmatpush2.msra.mxu0 0.0
          %2811 = vmatprep.subr.mxu0 0.0
          %2812 = vmatpush2.msra.mxu0 0.0
          %2813 = vmatprep.subr.mxu0 0.0
          %2814 = vmatpush2.msra.mxu0 0.0
          %2815 = vmatprep.subr.mxu0 0.0
          %2816 = vmatpush2.msra.mxu0 0.0
          %2817 = vmatprep.subr.mxu0 0.0
          %2818 = vmatpush2.msra.mxu0 0.0
          %2819 = vmatprep.subr.mxu0 0.0
          %2820 = vmatpush2.msra.mxu0 0.0
          %2821 = vmatprep.subr.mxu0 0.0
          %2822 = vmatpush2.msra.mxu0 0.0
          %2823 = vmatprep.mubr.f32.mxu0 0.0
          %2824 = vmatmul.mubr.f32.gmra.mxu0 %v2757
          %v2825 = vpop.f32.mrf.mxu0
          %v2826 = vadd.f32 %v2754, %v2825
          %v2827 = vpop.f32.mrf.mxu0
          %2828 = vdwg.mxu0
          %2829 = vst.msk [vmem:[%s432] sm:$0xff] %vm2670, %v2826
        $region76: #{tpu_custom_call.1} parent=47 // pred_fallthru
          _
        %s2830 = sand.u32 %s225, 1
        %s2831 = scalar_lea.sflag [#allocation8], %s2830
        %s2832 = sand.u32 %s225, 1
        %s2833 = smul.addr %s2832, 8
        %s2834 = scalar_lea.vmem [#allocation15], %s2833
        // Predicated region
        $region77: #{tpu_custom_call.1} parent=47 // pred_check
          %p2835 = pneg %p235
        $region78: #{tpu_custom_call.1} parent=47 // pred_check_branch
          %2837 = sbr.rel (%p2835) target = $region80
        $region79: #{tpu_custom_call.1} parent=47 // pred_region
          %s2839 = ssub.s32 128, 128
          %2840 = vsyncadd %s2831, %s2839
          %s2841 = smul.addr %s33, 2
          %s2842 = sadd.s32 %s34, %s2841
          %s2843 = smul.addr %s2842, 128
          %s2844 = scalar_lea.hbm %s7, %s2843
          %s2846 = sshll.u32 %s2834, 4
          %s2847 = int_to_ptr.vmem [resolvable:$true] %s2846
          %2849 = dma.vmem_to_hbm [thread:$0]  %s2847, 128, %s2844, %s2831
        $region80: #{tpu_custom_call.1} parent=47 // pred_fallthru
          _
      $region48: #{tpu_custom_call.1} parent=5 // pred_fallthru
        _
      %p2850 = scmp.le.s32.totalorder 2, %s23
      // Predicated region
      $region81: #{tpu_custom_call.1} parent=5 // pred_check
        %p2851 = pneg %p2850
      $region82: #{tpu_custom_call.1} parent=5 // pred_check_branch
        %2853 = sbr.rel (%p2851) target = $region84
      $region83: #{tpu_custom_call.1} parent=5 // pred_region
        %s2854 = ssub.s32 %s23, 2
        // Predicated region
        $region85: #{tpu_custom_call.1} parent=83 // pred_check
          %p2855 = pneg %p241
        $region86: #{tpu_custom_call.1} parent=83 // pred_check_branch
          %2857 = sbr.rel (%p2855) target = $region88
        $region87: #{tpu_custom_call.1} parent=83 // pred_region
          %s2858 = sand.u32 %s226, 1
          %s2859 = scalar_lea.sflag [#allocation8], %s2858
          %s2860 = sand.u32 %s226, 1
          %s2861 = smul.addr %s2860, 8
          %s2862 = scalar_lea.vmem [#allocation15], %s2861
          %2863 = dma.done %s2859, 128
        $region88: #{tpu_custom_call.1} parent=83 // pred_fallthru
          _
      $region84: #{tpu_custom_call.1} parent=5 // pred_fallthru
        _
    $region6: #{tpu_custom_call.1} parent=1 // loop_footer
      %s27 = sadd.s32 1, %s23
    $region7: #{tpu_custom_call.1} parent=1 // loop_footer_branch
      %22 = sbr.rel target = $region3
    $region8: #{tpu_custom_call.1} parent=1 // loop_exit
      _
    %2864 = vsyncpa [#allocation7], 1
    %s2865 = scalar_lea.sflag [#allocation7], 1
    %2866 = vsyncpa %s2865, 1
    %2867 = vsyncpa [#allocation10], 1
    %s2868 = scalar_lea.sflag [#allocation10], 1
    %2869 = vsyncpa %s2868, 1
    %2870 = vsyncpa [#allocation13], 1
    %2871 = vsyncpa [#allocation8], 1
    %s2872 = scalar_lea.sflag [#allocation8], 1
    %2873 = vsyncpa %s2872, 1

</llo_original>
